<compile_context>
chip_gen: v7x
topology: tpu7x:2x2x1
jax: 0.10.0
libtpu: 0.0.40
codegen_flags: <defaults>
</compile_context>

<pallas_src>
import math

import jax
import jax.numpy as jnp
import numpy as np
from jax.experimental import pallas as pl
from jax.experimental.pallas import tpu as pltpu


def _ceil_div(a, b):
    return -(-a // b)


# ----------------------------- Pallas kernel ------------------------------- #
def _lc2d_kernel(p_ref, w_ref, b_ref, o_ref):
    # p_ref: (KBLK, Bp, P)     patches for KBLK output locations
    # w_ref: (KBLK, P, OC)     pre-transposed weights (OC on the lane axis)
    # b_ref: (1, KBLK*OC)      lane-dense per-location bias row (f32)
    # o_ref: (Bp, KBLK*OC)     lane-dense output slab
    kblk = p_ref.shape[0]
    cols = []
    for k in range(kblk):                          # static unroll, KBLK is small
        cols.append(jnp.dot(p_ref[k], w_ref[k],    # (Bp,P) @ (P,OC) on the MXU
                            preferred_element_type=jnp.float32))
    out = cols[0] if kblk == 1 else jnp.concatenate(cols, axis=-1)  # (Bp, KBLK*OC)
    o_ref[...] = (out + b_ref[...]).astype(o_ref.dtype)


def _choose_kblk(K, OC, Bp, P, itemsize,
                 max_grid_steps=8, vmem_tile_budget=8 << 20):
    """Pick the per-step block of output locations.

    Single-step fast path: if the whole (padded) problem fits the VMEM budget
    without pipelining, process all K locations in one grid step.  Otherwise
    grow the block (lane-dense: KBLK*OC multiple of 128, KBLK multiple of 8)
    until the grid has few enough steps or the double-buffered tile would
    exceed the budget (budget also fits v7x's smaller VMEM)."""
    base = max(128 // math.gcd(OC, 128), 8)

    def tile_bytes(kb, n_steps):
        nbuf = 1 if n_steps == 1 else 2            # double-buffered only if pipelined
        ins = kb * (Bp * P + P * OC + OC) * itemsize
        outs = Bp * kb * OC * 4
        return nbuf * (ins + outs)

    kb_full = _ceil_div(K, base) * base
    if tile_bytes(kb_full, 1) <= vmem_tile_budget:
        return kb_full                             # whole problem, one grid step

    kblk = base
    while (_ceil_div(K, kblk) > max_grid_steps
           and tile_bytes(kblk * 2, 2) <= vmem_tile_budget):
        kblk *= 2
    return kblk


def _locally_connected_matmul(patches, weights_pko, bias_row, kblk):
    # patches:     (Kp, Bp, P)
    # weights_pko: (Kp, P, OC)
    # bias_row:    (1, Kp*OC) f32
    Kp, Bp, P = patches.shape
    OC = weights_pko.shape[-1]
    n_blocks = Kp // kblk
    return pl.pallas_call(
        _lc2d_kernel,
        out_shape=jax.ShapeDtypeStruct((Bp, Kp * OC), jnp.float32),
        grid_spec=pltpu.PrefetchScalarGridSpec(
            num_scalar_prefetch=0,
            grid=(n_blocks,),
            in_specs=[
                pl.BlockSpec((kblk, Bp, P), lambda k: (k, 0, 0)),
                pl.BlockSpec((kblk, P, OC), lambda k: (k, 0, 0)),
                pl.BlockSpec((1, kblk * OC), lambda k: (0, k)),
            ],
            out_specs=pl.BlockSpec((Bp, kblk * OC), lambda k: (0, k)),
        ),
        compiler_params=pltpu.CompilerParams(
            dimension_semantics=("parallel",),     # lets v7x shard blocks across its 2 TCs
            vmem_limit_bytes=32 * 1024 * 1024,     # explicit, fits v5e/v6e/v7x
        ),
    )(patches, weights_pko, bias_row)


# ------------------------------ Module wrapper ----------------------------- #
class LocallyConnected2dPallas:
    def __init__(self, in_channels, in_dims, out_channels, kernel_dims,
                 stride, padding, num_kernels_out, bias=True, key=None,
                 compute_dtype=jnp.float32):
        assert kernel_dims[0] <= in_dims[0] + 2 * padding[0]
        assert kernel_dims[1] <= in_dims[1] + 2 * padding[1]
        assert math.sqrt(out_channels) % 1 == 0.0

        self.in_height, self.in_width = in_dims
        self.stride_h, self.stride_w = stride
        self.padding_h, self.padding_w = padding
        self.kernel_height, self.kernel_width = kernel_dims
        self.in_channels = in_channels
        self.out_channels = out_channels
        self.num_kernels_h, self.num_kernels_w = num_kernels_out
        self.compute_dtype = compute_dtype
        num_kernels = self.num_kernels_h * self.num_kernels_w

        if key is None:
            key = jax.random.PRNGKey(0)

        # Deterministic init matching reset_parameters():
        #   xavier_normal_ for each weight, zeros_ for bias.
        fan_in = in_channels * self.kernel_height * self.kernel_width
        fan_out = out_channels * self.kernel_height * self.kernel_width
        std = math.sqrt(2.0 / (fan_in + fan_out))
        wkey, _ = jax.random.split(key)
        # weights: (K, OC, IC, kh, kw) — one conv filter bank per output location
        self.weights = std * jax.random.normal(
            wkey,
            (num_kernels, out_channels, in_channels,
             self.kernel_height, self.kernel_width),
            dtype=jnp.float32,
        )
        if bias:
            self.bias = jnp.zeros(
                (out_channels, self.num_kernels_h, self.num_kernels_w),
                dtype=jnp.float32)
        else:
            self.bias = None

    @staticmethod
    def flatten_into_2D(x):
        # x: (B, OC, nh, nw) -> (B, 1, rc*nh, rc*nw)
        b, oc, h, w = x.shape
        rc = int(math.sqrt(oc))
        x = jnp.transpose(x, (0, 2, 3, 1)).reshape(b, h, w, rc, rc)
        x = jnp.transpose(x, (0, 1, 3, 2, 4)).reshape(b, rc * h, rc * w)
        return x[:, None]

    def __call__(self, x, compute_dtype=None):
        cd = self.compute_dtype if compute_dtype is None else compute_dtype
        B = x.shape[0]
        assert x.shape[1] == self.in_channels
        assert x.shape[2] == self.in_height
        assert x.shape[3] == self.in_width
        kh, kw = self.kernel_height, self.kernel_width
        sh, sw = self.stride_h, self.stride_w
        ph, pw = self.padding_h, self.padding_w
        nh, nw = self.num_kernels_h, self.num_kernels_w
        OC = self.out_channels
        K = nh * nw
        P = self.in_channels * kh * kw

        # Glue: fused im2col (feature order is c, kh, kw — same as torch's
        # weight.reshape).  HIGHEST precision keeps the identity conv exact.
        patches = jax.lax.conv_general_dilated_patches(
            x, filter_shape=(kh, kw), window_strides=(sh, sw),
            padding=((ph, ph), (pw, pw)),
            precision=jax.lax.Precision.HIGHEST)          # (B, P, oh, ow)
        assert patches.shape[2] >= nh and patches.shape[3] >= nw
        patches = patches[:, :, :nh, :nw]                 # torch loop covers first nh x nw
        patches = jnp.transpose(patches, (2, 3, 0, 1)).reshape(K, B, P)

        # Pad batch to a multiple of 8 sublanes and K to a multiple of KBLK.
        Bp = max(8, _ceil_div(B, 8) * 8)
        itemsize = np.dtype(cd).itemsize
        kblk = _choose_kblk(K, OC, Bp, P, itemsize)
        Kp = _ceil_div(K, kblk) * kblk
        patches = jnp.pad(patches, ((0, Kp - K), (0, Bp - B), (0, 0))).astype(cd)

        # Weights pre-flattened & pre-transposed to (Kp, P, OC): MXU RHS has OC on lanes.
        w = self.weights.reshape(K, OC, P)
        w = jnp.transpose(w, (0, 2, 1))
        w = jnp.pad(w, ((0, Kp - K), (0, 0), (0, 0))).astype(cd)

        # Bias: (OC, nh, nw) -> lane-dense (1, Kp*OC) row, kept in f32.
        if self.bias is not None:
            b = jnp.transpose(self.bias, (1, 2, 0)).reshape(K * OC)
        else:
            b = jnp.zeros((K * OC,), dtype=jnp.float32)
        b = jnp.pad(b, (0, (Kp - K) * OC)).reshape(1, Kp * OC)

        # Pallas hot path: blocked per-location matmul + bias, lane-dense output.
        out = _locally_connected_matmul(patches, w, b, kblk)   # (Bp, Kp*OC) f32

        # Strip padding and reassemble to (B, OC, nh, nw) like the torch loop.
        out = out[:B, :K * OC].reshape(B, K, OC)
        out = jnp.transpose(out, (0, 2, 1)).reshape(B, OC, nh, nw)
        return self.flatten_into_2D(out), self.weights


# ------------------------------- Reference --------------------------------- #
def _reference(module, x):
    B = x.shape[0]
    kh, kw = module.kernel_height, module.kernel_width
    nh, nw = module.num_kernels_h, module.num_kernels_w
    x_pad = jnp.pad(
        x, ((0, 0), (0, 0),
            (module.padding_h, module.padding_h),
            (module.padding_w, module.padding_w)))
    out = jnp.zeros((B, module.out_channels, nh, nw), dtype=jnp.float32)
    for i in range(nh * nw):
        si = (i // nw) * module.stride_h
        sj = (i % nw) * module.stride_w
        patch = x_pad[:, :, si:si + kh, sj:sj + kw]
        conv = jnp.einsum("bchw,ochw->bo", patch, module.weights[i])
        out = out.at[:, :, i // nw, i % nw].set(conv)
    if module.bias is not None:
        out = out + module.bias[None]
    return module.flatten_into_2D(out)


if __name__ == "__main__":
    key = jax.random.PRNGKey(0)
    kx, kw_ = jax.random.split(key)

    # Small, consistent configuration:
    B, C, H, W = 2, 4, 16, 16
    out_channels = 16                      # perfect square
    kernel_dims = (5, 5)
    stride = (2, 2)
    padding = (0, 0)
    num_kernels_out = ((H - 5) // 2 + 1, (W - 5) // 2 + 1)   # (6, 6)

    module = LocallyConnected2dPallas(
        in_channels=C, in_dims=(H, W), out_channels=out_channels,
        kernel_dims=kernel_dims, stride=stride, padding=padding,
        num_kernels_out=num_kernels_out, bias=True, key=kw_)

    x = jax.random.normal(kx, (B, C, H, W), dtype=jnp.float32)

    rc = int(math.sqrt(out_channels))
    ref = jax.block_until_ready(_reference(module, x))

    # f32 path: tight check against the pure-JAX reference.
    fwd_f32 = jax.jit(lambda v: module(v, compute_dtype=jnp.float32)[0])
    out_f32 = jax.block_until_ready(fwd_f32(x))
    assert out_f32.shape == (B, 1, rc * num_kernels_out[0], rc * num_kernels_out[1])
    np.testing.assert_allclose(np.asarray(out_f32), np.asarray(ref),
                               rtol=1e-5, atol=1e-5)

    # bf16 fast path (halves weight/patch HBM traffic; f32 accumulate on MXU).
    fwd_bf16 = jax.jit(lambda v: module(v, compute_dtype=jnp.bfloat16)[0])
    out_bf16 = jax.block_until_ready(fwd_bf16(x))
    np.testing.assert_allclose(np.asarray(out_bf16), np.asarray(ref),
                               rtol=5e-2, atol=5e-2)

    print("KERNEL_OK")
</pallas_src>

<mosaic_0001>
module attributes {stable_mosaic.version = 11 : i64} {
  func.func @_lc2d_kernel(%arg0: i32, %arg1: memref<40x8x100xf32, #tpu.memory_space<vmem>>, %arg2: memref<40x100x16xf32, #tpu.memory_space<vmem>>, %arg3: memref<1x640xf32, #tpu.memory_space<vmem>>, %arg4: memref<8x640xf32, #tpu.memory_space<vmem>>) attributes {dimension_semantics = [#tpu.dimension_semantics<parallel>], iteration_bounds = array<i64: 1>, scalar_prefetch = 0 : i64, scratch_operands = 0 : i64, tpu.core_type = #tpu.core_type<tc>, window_params = [{transform_indices = @transform_0, window_bounds = array<i64: 40, 8, 100>}, {transform_indices = @transform_1, window_bounds = array<i64: 40, 100, 16>}, {transform_indices = @transform_2, window_bounds = array<i64: 1, 640>}, {transform_indices = @transform_3, window_bounds = array<i64: 8, 640>}]} {
    %c0 = arith.constant 0 : index
    %c0_0 = arith.constant 0 : index
    %c0_1 = arith.constant 0 : index
    %0 = vector.load %arg1[%c0, %c0_0, %c0_1] : memref<40x8x100xf32, #tpu.memory_space<vmem>>, vector<1x8x100xf32>
    %1 = vector.shape_cast %0 : vector<1x8x100xf32> to vector<8x100xf32>
    %c0_2 = arith.constant 0 : index
    %c0_3 = arith.constant 0 : index
    %c0_4 = arith.constant 0 : index
    %2 = vector.load %arg2[%c0_2, %c0_3, %c0_4] : memref<40x100x16xf32, #tpu.memory_space<vmem>>, vector<1x100x16xf32>
    %3 = vector.shape_cast %2 : vector<1x100x16xf32> to vector<100x16xf32>
    %cst = arith.constant dense<0.000000e+00> : vector<8x16xf32>
    %4 = tpu.matmul %1, %3, %cst {dimension_numbers = #tpu.dot_dimension_numbers<[1], [0], [0], [1], [0, 0, 1, 1], [], []>} : vector<8x100xf32>, vector<100x16xf32>, vector<8x16xf32> -> vector<8x16xf32>
    %c1 = arith.constant 1 : index
    %c0_5 = arith.constant 0 : index
    %c0_6 = arith.constant 0 : index
    %5 = vector.load %arg1[%c1, %c0_5, %c0_6] : memref<40x8x100xf32, #tpu.memory_space<vmem>>, vector<1x8x100xf32>
    %6 = vector.shape_cast %5 : vector<1x8x100xf32> to vector<8x100xf32>
    %c1_7 = arith.constant 1 : index
    %c0_8 = arith.constant 0 : index
    %c0_9 = arith.constant 0 : index
    %7 = vector.load %arg2[%c1_7, %c0_8, %c0_9] : memref<40x100x16xf32, #tpu.memory_space<vmem>>, vector<1x100x16xf32>
    %8 = vector.shape_cast %7 : vector<1x100x16xf32> to vector<100x16xf32>
    %cst_10 = arith.constant dense<0.000000e+00> : vector<8x16xf32>
    %9 = tpu.matmul %6, %8, %cst_10 {dimension_numbers = #tpu.dot_dimension_numbers<[1], [0], [0], [1], [0, 0, 1, 1], [], []>} : vector<8x100xf32>, vector<100x16xf32>, vector<8x16xf32> -> vector<8x16xf32>
    %c2 = arith.constant 2 : index
    %c0_11 = arith.constant 0 : index
    %c0_12 = arith.constant 0 : index
    %10 = vector.load %arg1[%c2, %c0_11, %c0_12] : memref<40x8x100xf32, #tpu.memory_space<vmem>>, vector<1x8x100xf32>
    %11 = vector.shape_cast %10 : vector<1x8x100xf32> to vector<8x100xf32>
    %c2_13 = arith.constant 2 : index
    %c0_14 = arith.constant 0 : index
    %c0_15 = arith.constant 0 : index
    %12 = vector.load %arg2[%c2_13, %c0_14, %c0_15] : memref<40x100x16xf32, #tpu.memory_space<vmem>>, vector<1x100x16xf32>
    %13 = vector.shape_cast %12 : vector<1x100x16xf32> to vector<100x16xf32>
    %cst_16 = arith.constant dense<0.000000e+00> : vector<8x16xf32>
    %14 = tpu.matmul %11, %13, %cst_16 {dimension_numbers = #tpu.dot_dimension_numbers<[1], [0], [0], [1], [0, 0, 1, 1], [], []>} : vector<8x100xf32>, vector<100x16xf32>, vector<8x16xf32> -> vector<8x16xf32>
    %c3 = arith.constant 3 : index
    %c0_17 = arith.constant 0 : index
    %c0_18 = arith.constant 0 : index
    %15 = vector.load %arg1[%c3, %c0_17, %c0_18] : memref<40x8x100xf32, #tpu.memory_space<vmem>>, vector<1x8x100xf32>
    %16 = vector.shape_cast %15 : vector<1x8x100xf32> to vector<8x100xf32>
    %c3_19 = arith.constant 3 : index
    %c0_20 = arith.constant 0 : index
    %c0_21 = arith.constant 0 : index
    %17 = vector.load %arg2[%c3_19, %c0_20, %c0_21] : memref<40x100x16xf32, #tpu.memory_space<vmem>>, vector<1x100x16xf32>
    %18 = vector.shape_cast %17 : vector<1x100x16xf32> to vector<100x16xf32>
    %cst_22 = arith.constant dense<0.000000e+00> : vector<8x16xf32>
    %19 = tpu.matmul %16, %18, %cst_22 {dimension_numbers = #tpu.dot_dimension_numbers<[1], [0], [0], [1], [0, 0, 1, 1], [], []>} : vector<8x100xf32>, vector<100x16xf32>, vector<8x16xf32> -> vector<8x16xf32>
    %c4 = arith.constant 4 : index
    %c0_23 = arith.constant 0 : index
    %c0_24 = arith.constant 0 : index
    %20 = vector.load %arg1[%c4, %c0_23, %c0_24] : memref<40x8x100xf32, #tpu.memory_space<vmem>>, vector<1x8x100xf32>
    %21 = vector.shape_cast %20 : vector<1x8x100xf32> to vector<8x100xf32>
    %c4_25 = arith.constant 4 : index
    %c0_26 = arith.constant 0 : index
    %c0_27 = arith.constant 0 : index
    %22 = vector.load %arg2[%c4_25, %c0_26, %c0_27] : memref<40x100x16xf32, #tpu.memory_space<vmem>>, vector<1x100x16xf32>
    %23 = vector.shape_cast %22 : vector<1x100x16xf32> to vector<100x16xf32>
    %cst_28 = arith.constant dense<0.000000e+00> : vector<8x16xf32>
    %24 = tpu.matmul %21, %23, %cst_28 {dimension_numbers = #tpu.dot_dimension_numbers<[1], [0], [0], [1], [0, 0, 1, 1], [], []>} : vector<8x100xf32>, vector<100x16xf32>, vector<8x16xf32> -> vector<8x16xf32>
    %c5 = arith.constant 5 : index
    %c0_29 = arith.constant 0 : index
    %c0_30 = arith.constant 0 : index
    %25 = vector.load %arg1[%c5, %c0_29, %c0_30] : memref<40x8x100xf32, #tpu.memory_space<vmem>>, vector<1x8x100xf32>
    %26 = vector.shape_cast %25 : vector<1x8x100xf32> to vector<8x100xf32>
    %c5_31 = arith.constant 5 : index
    %c0_32 = arith.constant 0 : index
    %c0_33 = arith.constant 0 : index
    %27 = vector.load %arg2[%c5_31, %c0_32, %c0_33] : memref<40x100x16xf32, #tpu.memory_space<vmem>>, vector<1x100x16xf32>
    %28 = vector.shape_cast %27 : vector<1x100x16xf32> to vector<100x16xf32>
    %cst_34 = arith.constant dense<0.000000e+00> : vector<8x16xf32>
    %29 = tpu.matmul %26, %28, %cst_34 {dimension_numbers = #tpu.dot_dimension_numbers<[1], [0], [0], [1], [0, 0, 1, 1], [], []>} : vector<8x100xf32>, vector<100x16xf32>, vector<8x16xf32> -> vector<8x16xf32>
    %c6 = arith.constant 6 : index
    %c0_35 = arith.constant 0 : index
    %c0_36 = arith.constant 0 : index
    %30 = vector.load %arg1[%c6, %c0_35, %c0_36] : memref<40x8x100xf32, #tpu.memory_space<vmem>>, vector<1x8x100xf32>
    %31 = vector.shape_cast %30 : vector<1x8x100xf32> to vector<8x100xf32>
    %c6_37 = arith.constant 6 : index
    %c0_38 = arith.constant 0 : index
    %c0_39 = arith.constant 0 : index
    %32 = vector.load %arg2[%c6_37, %c0_38, %c0_39] : memref<40x100x16xf32, #tpu.memory_space<vmem>>, vector<1x100x16xf32>
    %33 = vector.shape_cast %32 : vector<1x100x16xf32> to vector<100x16xf32>
    %cst_40 = arith.constant dense<0.000000e+00> : vector<8x16xf32>
    %34 = tpu.matmul %31, %33, %cst_40 {dimension_numbers = #tpu.dot_dimension_numbers<[1], [0], [0], [1], [0, 0, 1, 1], [], []>} : vector<8x100xf32>, vector<100x16xf32>, vector<8x16xf32> -> vector<8x16xf32>
    %c7 = arith.constant 7 : index
    %c0_41 = arith.constant 0 : index
    %c0_42 = arith.constant 0 : index
    %35 = vector.load %arg1[%c7, %c0_41, %c0_42] : memref<40x8x100xf32, #tpu.memory_space<vmem>>, vector<1x8x100xf32>
    %36 = vector.shape_cast %35 : vector<1x8x100xf32> to vector<8x100xf32>
    %c7_43 = arith.constant 7 : index
    %c0_44 = arith.constant 0 : index
    %c0_45 = arith.constant 0 : index
    %37 = vector.load %arg2[%c7_43, %c0_44, %c0_45] : memref<40x100x16xf32, #tpu.memory_space<vmem>>, vector<1x100x16xf32>
    %38 = vector.shape_cast %37 : vector<1x100x16xf32> to vector<100x16xf32>
    %cst_46 = arith.constant dense<0.000000e+00> : vector<8x16xf32>
    %39 = tpu.matmul %36, %38, %cst_46 {dimension_numbers = #tpu.dot_dimension_numbers<[1], [0], [0], [1], [0, 0, 1, 1], [], []>} : vector<8x100xf32>, vector<100x16xf32>, vector<8x16xf32> -> vector<8x16xf32>
    %c8 = arith.constant 8 : index
    %c0_47 = arith.constant 0 : index
    %c0_48 = arith.constant 0 : index
    %40 = vector.load %arg1[%c8, %c0_47, %c0_48] : memref<40x8x100xf32, #tpu.memory_space<vmem>>, vector<1x8x100xf32>
    %41 = vector.shape_cast %40 : vector<1x8x100xf32> to vector<8x100xf32>
    %c8_49 = arith.constant 8 : index
    %c0_50 = arith.constant 0 : index
    %c0_51 = arith.constant 0 : index
    %42 = vector.load %arg2[%c8_49, %c0_50, %c0_51] : memref<40x100x16xf32, #tpu.memory_space<vmem>>, vector<1x100x16xf32>
    %43 = vector.shape_cast %42 : vector<1x100x16xf32> to vector<100x16xf32>
    %cst_52 = arith.constant dense<0.000000e+00> : vector<8x16xf32>
    %44 = tpu.matmul %41, %43, %cst_52 {dimension_numbers = #tpu.dot_dimension_numbers<[1], [0], [0], [1], [0, 0, 1, 1], [], []>} : vector<8x100xf32>, vector<100x16xf32>, vector<8x16xf32> -> vector<8x16xf32>
    %c9 = arith.constant 9 : index
    %c0_53 = arith.constant 0 : index
    %c0_54 = arith.constant 0 : index
    %45 = vector.load %arg1[%c9, %c0_53, %c0_54] : memref<40x8x100xf32, #tpu.memory_space<vmem>>, vector<1x8x100xf32>
    %46 = vector.shape_cast %45 : vector<1x8x100xf32> to vector<8x100xf32>
    %c9_55 = arith.constant 9 : index
    %c0_56 = arith.constant 0 : index
    %c0_57 = arith.constant 0 : index
    %47 = vector.load %arg2[%c9_55, %c0_56, %c0_57] : memref<40x100x16xf32, #tpu.memory_space<vmem>>, vector<1x100x16xf32>
    %48 = vector.shape_cast %47 : vector<1x100x16xf32> to vector<100x16xf32>
    %cst_58 = arith.constant dense<0.000000e+00> : vector<8x16xf32>
    %49 = tpu.matmul %46, %48, %cst_58 {dimension_numbers = #tpu.dot_dimension_numbers<[1], [0], [0], [1], [0, 0, 1, 1], [], []>} : vector<8x100xf32>, vector<100x16xf32>, vector<8x16xf32> -> vector<8x16xf32>
    %c10 = arith.constant 10 : index
    %c0_59 = arith.constant 0 : index
    %c0_60 = arith.constant 0 : index
    %50 = vector.load %arg1[%c10, %c0_59, %c0_60] : memref<40x8x100xf32, #tpu.memory_space<vmem>>, vector<1x8x100xf32>
    %51 = vector.shape_cast %50 : vector<1x8x100xf32> to vector<8x100xf32>
    %c10_61 = arith.constant 10 : index
    %c0_62 = arith.constant 0 : index
    %c0_63 = arith.constant 0 : index
    %52 = vector.load %arg2[%c10_61, %c0_62, %c0_63] : memref<40x100x16xf32, #tpu.memory_space<vmem>>, vector<1x100x16xf32>
    %53 = vector.shape_cast %52 : vector<1x100x16xf32> to vector<100x16xf32>
    %cst_64 = arith.constant dense<0.000000e+00> : vector<8x16xf32>
    %54 = tpu.matmul %51, %53, %cst_64 {dimension_numbers = #tpu.dot_dimension_numbers<[1], [0], [0], [1], [0, 0, 1, 1], [], []>} : vector<8x100xf32>, vector<100x16xf32>, vector<8x16xf32> -> vector<8x16xf32>
    %c11 = arith.constant 11 : index
    %c0_65 = arith.constant 0 : index
    %c0_66 = arith.constant 0 : index
    %55 = vector.load %arg1[%c11, %c0_65, %c0_66] : memref<40x8x100xf32, #tpu.memory_space<vmem>>, vector<1x8x100xf32>
    %56 = vector.shape_cast %55 : vector<1x8x100xf32> to vector<8x100xf32>
    %c11_67 = arith.constant 11 : index
    %c0_68 = arith.constant 0 : index
    %c0_69 = arith.constant 0 : index
    %57 = vector.load %arg2[%c11_67, %c0_68, %c0_69] : memref<40x100x16xf32, #tpu.memory_space<vmem>>, vector<1x100x16xf32>
    %58 = vector.shape_cast %57 : vector<1x100x16xf32> to vector<100x16xf32>
    %cst_70 = arith.constant dense<0.000000e+00> : vector<8x16xf32>
    %59 = tpu.matmul %56, %58, %cst_70 {dimension_numbers = #tpu.dot_dimension_numbers<[1], [0], [0], [1], [0, 0, 1, 1], [], []>} : vector<8x100xf32>, vector<100x16xf32>, vector<8x16xf32> -> vector<8x16xf32>
    %c12 = arith.constant 12 : index
    %c0_71 = arith.constant 0 : index
    %c0_72 = arith.constant 0 : index
    %60 = vector.load %arg1[%c12, %c0_71, %c0_72] : memref<40x8x100xf32, #tpu.memory_space<vmem>>, vector<1x8x100xf32>
    %61 = vector.shape_cast %60 : vector<1x8x100xf32> to vector<8x100xf32>
    %c12_73 = arith.constant 12 : index
    %c0_74 = arith.constant 0 : index
    %c0_75 = arith.constant 0 : index
    %62 = vector.load %arg2[%c12_73, %c0_74, %c0_75] : memref<40x100x16xf32, #tpu.memory_space<vmem>>, vector<1x100x16xf32>
    %63 = vector.shape_cast %62 : vector<1x100x16xf32> to vector<100x16xf32>
    %cst_76 = arith.constant dense<0.000000e+00> : vector<8x16xf32>
    %64 = tpu.matmul %61, %63, %cst_76 {dimension_numbers = #tpu.dot_dimension_numbers<[1], [0], [0], [1], [0, 0, 1, 1], [], []>} : vector<8x100xf32>, vector<100x16xf32>, vector<8x16xf32> -> vector<8x16xf32>
    %c13 = arith.constant 13 : index
    %c0_77 = arith.constant 0 : index
    %c0_78 = arith.constant 0 : index
    %65 = vector.load %arg1[%c13, %c0_77, %c0_78] : memref<40x8x100xf32, #tpu.memory_space<vmem>>, vector<1x8x100xf32>
    %66 = vector.shape_cast %65 : vector<1x8x100xf32> to vector<8x100xf32>
    %c13_79 = arith.constant 13 : index
    %c0_80 = arith.constant 0 : index
    %c0_81 = arith.constant 0 : index
    %67 = vector.load %arg2[%c13_79, %c0_80, %c0_81] : memref<40x100x16xf32, #tpu.memory_space<vmem>>, vector<1x100x16xf32>
    %68 = vector.shape_cast %67 : vector<1x100x16xf32> to vector<100x16xf32>
    %cst_82 = arith.constant dense<0.000000e+00> : vector<8x16xf32>
    %69 = tpu.matmul %66, %68, %cst_82 {dimension_numbers = #tpu.dot_dimension_numbers<[1], [0], [0], [1], [0, 0, 1, 1], [], []>} : vector<8x100xf32>, vector<100x16xf32>, vector<8x16xf32> -> vector<8x16xf32>
    %c14 = arith.constant 14 : index
    %c0_83 = arith.constant 0 : index
    %c0_84 = arith.constant 0 : index
    %70 = vector.load %arg1[%c14, %c0_83, %c0_84] : memref<40x8x100xf32, #tpu.memory_space<vmem>>, vector<1x8x100xf32>
    %71 = vector.shape_cast %70 : vector<1x8x100xf32> to vector<8x100xf32>
    %c14_85 = arith.constant 14 : index
    %c0_86 = arith.constant 0 : index
    %c0_87 = arith.constant 0 : index
    %72 = vector.load %arg2[%c14_85, %c0_86, %c0_87] : memref<40x100x16xf32, #tpu.memory_space<vmem>>, vector<1x100x16xf32>
    %73 = vector.shape_cast %72 : vector<1x100x16xf32> to vector<100x16xf32>
    %cst_88 = arith.constant dense<0.000000e+00> : vector<8x16xf32>
    %74 = tpu.matmul %71, %73, %cst_88 {dimension_numbers = #tpu.dot_dimension_numbers<[1], [0], [0], [1], [0, 0, 1, 1], [], []>} : vector<8x100xf32>, vector<100x16xf32>, vector<8x16xf32> -> vector<8x16xf32>
    %c15 = arith.constant 15 : index
    %c0_89 = arith.constant 0 : index
    %c0_90 = arith.constant 0 : index
    %75 = vector.load %arg1[%c15, %c0_89, %c0_90] : memref<40x8x100xf32, #tpu.memory_space<vmem>>, vector<1x8x100xf32>
    %76 = vector.shape_cast %75 : vector<1x8x100xf32> to vector<8x100xf32>
    %c15_91 = arith.constant 15 : index
    %c0_92 = arith.constant 0 : index
    %c0_93 = arith.constant 0 : index
    %77 = vector.load %arg2[%c15_91, %c0_92, %c0_93] : memref<40x100x16xf32, #tpu.memory_space<vmem>>, vector<1x100x16xf32>
    %78 = vector.shape_cast %77 : vector<1x100x16xf32> to vector<100x16xf32>
    %cst_94 = arith.constant dense<0.000000e+00> : vector<8x16xf32>
    %79 = tpu.matmul %76, %78, %cst_94 {dimension_numbers = #tpu.dot_dimension_numbers<[1], [0], [0], [1], [0, 0, 1, 1], [], []>} : vector<8x100xf32>, vector<100x16xf32>, vector<8x16xf32> -> vector<8x16xf32>
    %c16 = arith.constant 16 : index
    %c0_95 = arith.constant 0 : index
    %c0_96 = arith.constant 0 : index
    %80 = vector.load %arg1[%c16, %c0_95, %c0_96] : memref<40x8x100xf32, #tpu.memory_space<vmem>>, vector<1x8x100xf32>
    %81 = vector.shape_cast %80 : vector<1x8x100xf32> to vector<8x100xf32>
    %c16_97 = arith.constant 16 : index
    %c0_98 = arith.constant 0 : index
    %c0_99 = arith.constant 0 : index
    %82 = vector.load %arg2[%c16_97, %c0_98, %c0_99] : memref<40x100x16xf32, #tpu.memory_space<vmem>>, vector<1x100x16xf32>
    %83 = vector.shape_cast %82 : vector<1x100x16xf32> to vector<100x16xf32>
    %cst_100 = arith.constant dense<0.000000e+00> : vector<8x16xf32>
    %84 = tpu.matmul %81, %83, %cst_100 {dimension_numbers = #tpu.dot_dimension_numbers<[1], [0], [0], [1], [0, 0, 1, 1], [], []>} : vector<8x100xf32>, vector<100x16xf32>, vector<8x16xf32> -> vector<8x16xf32>
    %c17 = arith.constant 17 : index
    %c0_101 = arith.constant 0 : index
    %c0_102 = arith.constant 0 : index
    %85 = vector.load %arg1[%c17, %c0_101, %c0_102] : memref<40x8x100xf32, #tpu.memory_space<vmem>>, vector<1x8x100xf32>
    %86 = vector.shape_cast %85 : vector<1x8x100xf32> to vector<8x100xf32>
    %c17_103 = arith.constant 17 : index
    %c0_104 = arith.constant 0 : index
    %c0_105 = arith.constant 0 : index
    %87 = vector.load %arg2[%c17_103, %c0_104, %c0_105] : memref<40x100x16xf32, #tpu.memory_space<vmem>>, vector<1x100x16xf32>
    %88 = vector.shape_cast %87 : vector<1x100x16xf32> to vector<100x16xf32>
    %cst_106 = arith.constant dense<0.000000e+00> : vector<8x16xf32>
    %89 = tpu.matmul %86, %88, %cst_106 {dimension_numbers = #tpu.dot_dimension_numbers<[1], [0], [0], [1], [0, 0, 1, 1], [], []>} : vector<8x100xf32>, vector<100x16xf32>, vector<8x16xf32> -> vector<8x16xf32>
    %c18 = arith.constant 18 : index
    %c0_107 = arith.constant 0 : index
    %c0_108 = arith.constant 0 : index
    %90 = vector.load %arg1[%c18, %c0_107, %c0_108] : memref<40x8x100xf32, #tpu.memory_space<vmem>>, vector<1x8x100xf32>
    %91 = vector.shape_cast %90 : vector<1x8x100xf32> to vector<8x100xf32>
    %c18_109 = arith.constant 18 : index
    %c0_110 = arith.constant 0 : index
    %c0_111 = arith.constant 0 : index
    %92 = vector.load %arg2[%c18_109, %c0_110, %c0_111] : memref<40x100x16xf32, #tpu.memory_space<vmem>>, vector<1x100x16xf32>
    %93 = vector.shape_cast %92 : vector<1x100x16xf32> to vector<100x16xf32>
    %cst_112 = arith.constant dense<0.000000e+00> : vector<8x16xf32>
    %94 = tpu.matmul %91, %93, %cst_112 {dimension_numbers = #tpu.dot_dimension_numbers<[1], [0], [0], [1], [0, 0, 1, 1], [], []>} : vector<8x100xf32>, vector<100x16xf32>, vector<8x16xf32> -> vector<8x16xf32>
    %c19 = arith.constant 19 : index
    %c0_113 = arith.constant 0 : index
    %c0_114 = arith.constant 0 : index
    %95 = vector.load %arg1[%c19, %c0_113, %c0_114] : memref<40x8x100xf32, #tpu.memory_space<vmem>>, vector<1x8x100xf32>
    %96 = vector.shape_cast %95 : vector<1x8x100xf32> to vector<8x100xf32>
    %c19_115 = arith.constant 19 : index
    %c0_116 = arith.constant 0 : index
    %c0_117 = arith.constant 0 : index
    %97 = vector.load %arg2[%c19_115, %c0_116, %c0_117] : memref<40x100x16xf32, #tpu.memory_space<vmem>>, vector<1x100x16xf32>
    %98 = vector.shape_cast %97 : vector<1x100x16xf32> to vector<100x16xf32>
    %cst_118 = arith.constant dense<0.000000e+00> : vector<8x16xf32>
    %99 = tpu.matmul %96, %98, %cst_118 {dimension_numbers = #tpu.dot_dimension_numbers<[1], [0], [0], [1], [0, 0, 1, 1], [], []>} : vector<8x100xf32>, vector<100x16xf32>, vector<8x16xf32> -> vector<8x16xf32>
    %c20 = arith.constant 20 : index
    %c0_119 = arith.constant 0 : index
    %c0_120 = arith.constant 0 : index
    %100 = vector.load %arg1[%c20, %c0_119, %c0_120] : memref<40x8x100xf32, #tpu.memory_space<vmem>>, vector<1x8x100xf32>
    %101 = vector.shape_cast %100 : vector<1x8x100xf32> to vector<8x100xf32>
    %c20_121 = arith.constant 20 : index
    %c0_122 = arith.constant 0 : index
    %c0_123 = arith.constant 0 : index
    %102 = vector.load %arg2[%c20_121, %c0_122, %c0_123] : memref<40x100x16xf32, #tpu.memory_space<vmem>>, vector<1x100x16xf32>
    %103 = vector.shape_cast %102 : vector<1x100x16xf32> to vector<100x16xf32>
    %cst_124 = arith.constant dense<0.000000e+00> : vector<8x16xf32>
    %104 = tpu.matmul %101, %103, %cst_124 {dimension_numbers = #tpu.dot_dimension_numbers<[1], [0], [0], [1], [0, 0, 1, 1], [], []>} : vector<8x100xf32>, vector<100x16xf32>, vector<8x16xf32> -> vector<8x16xf32>
    %c21 = arith.constant 21 : index
    %c0_125 = arith.constant 0 : index
    %c0_126 = arith.constant 0 : index
    %105 = vector.load %arg1[%c21, %c0_125, %c0_126] : memref<40x8x100xf32, #tpu.memory_space<vmem>>, vector<1x8x100xf32>
    %106 = vector.shape_cast %105 : vector<1x8x100xf32> to vector<8x100xf32>
    %c21_127 = arith.constant 21 : index
    %c0_128 = arith.constant 0 : index
    %c0_129 = arith.constant 0 : index
    %107 = vector.load %arg2[%c21_127, %c0_128, %c0_129] : memref<40x100x16xf32, #tpu.memory_space<vmem>>, vector<1x100x16xf32>
    %108 = vector.shape_cast %107 : vector<1x100x16xf32> to vector<100x16xf32>
    %cst_130 = arith.constant dense<0.000000e+00> : vector<8x16xf32>
    %109 = tpu.matmul %106, %108, %cst_130 {dimension_numbers = #tpu.dot_dimension_numbers<[1], [0], [0], [1], [0, 0, 1, 1], [], []>} : vector<8x100xf32>, vector<100x16xf32>, vector<8x16xf32> -> vector<8x16xf32>
    %c22 = arith.constant 22 : index
    %c0_131 = arith.constant 0 : index
    %c0_132 = arith.constant 0 : index
    %110 = vector.load %arg1[%c22, %c0_131, %c0_132] : memref<40x8x100xf32, #tpu.memory_space<vmem>>, vector<1x8x100xf32>
    %111 = vector.shape_cast %110 : vector<1x8x100xf32> to vector<8x100xf32>
    %c22_133 = arith.constant 22 : index
    %c0_134 = arith.constant 0 : index
    %c0_135 = arith.constant 0 : index
    %112 = vector.load %arg2[%c22_133, %c0_134, %c0_135] : memref<40x100x16xf32, #tpu.memory_space<vmem>>, vector<1x100x16xf32>
    %113 = vector.shape_cast %112 : vector<1x100x16xf32> to vector<100x16xf32>
    %cst_136 = arith.constant dense<0.000000e+00> : vector<8x16xf32>
    %114 = tpu.matmul %111, %113, %cst_136 {dimension_numbers = #tpu.dot_dimension_numbers<[1], [0], [0], [1], [0, 0, 1, 1], [], []>} : vector<8x100xf32>, vector<100x16xf32>, vector<8x16xf32> -> vector<8x16xf32>
    %c23 = arith.constant 23 : index
    %c0_137 = arith.constant 0 : index
    %c0_138 = arith.constant 0 : index
    %115 = vector.load %arg1[%c23, %c0_137, %c0_138] : memref<40x8x100xf32, #tpu.memory_space<vmem>>, vector<1x8x100xf32>
    %116 = vector.shape_cast %115 : vector<1x8x100xf32> to vector<8x100xf32>
    %c23_139 = arith.constant 23 : index
    %c0_140 = arith.constant 0 : index
    %c0_141 = arith.constant 0 : index
    %117 = vector.load %arg2[%c23_139, %c0_140, %c0_141] : memref<40x100x16xf32, #tpu.memory_space<vmem>>, vector<1x100x16xf32>
    %118 = vector.shape_cast %117 : vector<1x100x16xf32> to vector<100x16xf32>
    %cst_142 = arith.constant dense<0.000000e+00> : vector<8x16xf32>
    %119 = tpu.matmul %116, %118, %cst_142 {dimension_numbers = #tpu.dot_dimension_numbers<[1], [0], [0], [1], [0, 0, 1, 1], [], []>} : vector<8x100xf32>, vector<100x16xf32>, vector<8x16xf32> -> vector<8x16xf32>
    %c24 = arith.constant 24 : index
    %c0_143 = arith.constant 0 : index
    %c0_144 = arith.constant 0 : index
    %120 = vector.load %arg1[%c24, %c0_143, %c0_144] : memref<40x8x100xf32, #tpu.memory_space<vmem>>, vector<1x8x100xf32>
    %121 = vector.shape_cast %120 : vector<1x8x100xf32> to vector<8x100xf32>
    %c24_145 = arith.constant 24 : index
    %c0_146 = arith.constant 0 : index
    %c0_147 = arith.constant 0 : index
    %122 = vector.load %arg2[%c24_145, %c0_146, %c0_147] : memref<40x100x16xf32, #tpu.memory_space<vmem>>, vector<1x100x16xf32>
    %123 = vector.shape_cast %122 : vector<1x100x16xf32> to vector<100x16xf32>
    %cst_148 = arith.constant dense<0.000000e+00> : vector<8x16xf32>
    %124 = tpu.matmul %121, %123, %cst_148 {dimension_numbers = #tpu.dot_dimension_numbers<[1], [0], [0], [1], [0, 0, 1, 1], [], []>} : vector<8x100xf32>, vector<100x16xf32>, vector<8x16xf32> -> vector<8x16xf32>
    %c25 = arith.constant 25 : index
    %c0_149 = arith.constant 0 : index
    %c0_150 = arith.constant 0 : index
    %125 = vector.load %arg1[%c25, %c0_149, %c0_150] : memref<40x8x100xf32, #tpu.memory_space<vmem>>, vector<1x8x100xf32>
    %126 = vector.shape_cast %125 : vector<1x8x100xf32> to vector<8x100xf32>
    %c25_151 = arith.constant 25 : index
    %c0_152 = arith.constant 0 : index
    %c0_153 = arith.constant 0 : index
    %127 = vector.load %arg2[%c25_151, %c0_152, %c0_153] : memref<40x100x16xf32, #tpu.memory_space<vmem>>, vector<1x100x16xf32>
    %128 = vector.shape_cast %127 : vector<1x100x16xf32> to vector<100x16xf32>
    %cst_154 = arith.constant dense<0.000000e+00> : vector<8x16xf32>
    %129 = tpu.matmul %126, %128, %cst_154 {dimension_numbers = #tpu.dot_dimension_numbers<[1], [0], [0], [1], [0, 0, 1, 1], [], []>} : vector<8x100xf32>, vector<100x16xf32>, vector<8x16xf32> -> vector<8x16xf32>
    %c26 = arith.constant 26 : index
    %c0_155 = arith.constant 0 : index
    %c0_156 = arith.constant 0 : index
    %130 = vector.load %arg1[%c26, %c0_155, %c0_156] : memref<40x8x100xf32, #tpu.memory_space<vmem>>, vector<1x8x100xf32>
    %131 = vector.shape_cast %130 : vector<1x8x100xf32> to vector<8x100xf32>
    %c26_157 = arith.constant 26 : index
    %c0_158 = arith.constant 0 : index
    %c0_159 = arith.constant 0 : index
    %132 = vector.load %arg2[%c26_157, %c0_158, %c0_159] : memref<40x100x16xf32, #tpu.memory_space<vmem>>, vector<1x100x16xf32>
    %133 = vector.shape_cast %132 : vector<1x100x16xf32> to vector<100x16xf32>
    %cst_160 = arith.constant dense<0.000000e+00> : vector<8x16xf32>
    %134 = tpu.matmul %131, %133, %cst_160 {dimension_numbers = #tpu.dot_dimension_numbers<[1], [0], [0], [1], [0, 0, 1, 1], [], []>} : vector<8x100xf32>, vector<100x16xf32>, vector<8x16xf32> -> vector<8x16xf32>
    %c27 = arith.constant 27 : index
    %c0_161 = arith.constant 0 : index
    %c0_162 = arith.constant 0 : index
    %135 = vector.load %arg1[%c27, %c0_161, %c0_162] : memref<40x8x100xf32, #tpu.memory_space<vmem>>, vector<1x8x100xf32>
    %136 = vector.shape_cast %135 : vector<1x8x100xf32> to vector<8x100xf32>
    %c27_163 = arith.constant 27 : index
    %c0_164 = arith.constant 0 : index
    %c0_165 = arith.constant 0 : index
    %137 = vector.load %arg2[%c27_163, %c0_164, %c0_165] : memref<40x100x16xf32, #tpu.memory_space<vmem>>, vector<1x100x16xf32>
    %138 = vector.shape_cast %137 : vector<1x100x16xf32> to vector<100x16xf32>
    %cst_166 = arith.constant dense<0.000000e+00> : vector<8x16xf32>
    %139 = tpu.matmul %136, %138, %cst_166 {dimension_numbers = #tpu.dot_dimension_numbers<[1], [0], [0], [1], [0, 0, 1, 1], [], []>} : vector<8x100xf32>, vector<100x16xf32>, vector<8x16xf32> -> vector<8x16xf32>
    %c28 = arith.constant 28 : index
    %c0_167 = arith.constant 0 : index
    %c0_168 = arith.constant 0 : index
    %140 = vector.load %arg1[%c28, %c0_167, %c0_168] : memref<40x8x100xf32, #tpu.memory_space<vmem>>, vector<1x8x100xf32>
    %141 = vector.shape_cast %140 : vector<1x8x100xf32> to vector<8x100xf32>
    %c28_169 = arith.constant 28 : index
    %c0_170 = arith.constant 0 : index
    %c0_171 = arith.constant 0 : index
    %142 = vector.load %arg2[%c28_169, %c0_170, %c0_171] : memref<40x100x16xf32, #tpu.memory_space<vmem>>, vector<1x100x16xf32>
    %143 = vector.shape_cast %142 : vector<1x100x16xf32> to vector<100x16xf32>
    %cst_172 = arith.constant dense<0.000000e+00> : vector<8x16xf32>
    %144 = tpu.matmul %141, %143, %cst_172 {dimension_numbers = #tpu.dot_dimension_numbers<[1], [0], [0], [1], [0, 0, 1, 1], [], []>} : vector<8x100xf32>, vector<100x16xf32>, vector<8x16xf32> -> vector<8x16xf32>
    %c29 = arith.constant 29 : index
    %c0_173 = arith.constant 0 : index
    %c0_174 = arith.constant 0 : index
    %145 = vector.load %arg1[%c29, %c0_173, %c0_174] : memref<40x8x100xf32, #tpu.memory_space<vmem>>, vector<1x8x100xf32>
    %146 = vector.shape_cast %145 : vector<1x8x100xf32> to vector<8x100xf32>
    %c29_175 = arith.constant 29 : index
    %c0_176 = arith.constant 0 : index
    %c0_177 = arith.constant 0 : index
    %147 = vector.load %arg2[%c29_175, %c0_176, %c0_177] : memref<40x100x16xf32, #tpu.memory_space<vmem>>, vector<1x100x16xf32>
    %148 = vector.shape_cast %147 : vector<1x100x16xf32> to vector<100x16xf32>
    %cst_178 = arith.constant dense<0.000000e+00> : vector<8x16xf32>
    %149 = tpu.matmul %146, %148, %cst_178 {dimension_numbers = #tpu.dot_dimension_numbers<[1], [0], [0], [1], [0, 0, 1, 1], [], []>} : vector<8x100xf32>, vector<100x16xf32>, vector<8x16xf32> -> vector<8x16xf32>
    %c30 = arith.constant 30 : index
    %c0_179 = arith.constant 0 : index
    %c0_180 = arith.constant 0 : index
    %150 = vector.load %arg1[%c30, %c0_179, %c0_180] : memref<40x8x100xf32, #tpu.memory_space<vmem>>, vector<1x8x100xf32>
    %151 = vector.shape_cast %150 : vector<1x8x100xf32> to vector<8x100xf32>
    %c30_181 = arith.constant 30 : index
    %c0_182 = arith.constant 0 : index
    %c0_183 = arith.constant 0 : index
    %152 = vector.load %arg2[%c30_181, %c0_182, %c0_183] : memref<40x100x16xf32, #tpu.memory_space<vmem>>, vector<1x100x16xf32>
    %153 = vector.shape_cast %152 : vector<1x100x16xf32> to vector<100x16xf32>
    %cst_184 = arith.constant dense<0.000000e+00> : vector<8x16xf32>
    %154 = tpu.matmul %151, %153, %cst_184 {dimension_numbers = #tpu.dot_dimension_numbers<[1], [0], [0], [1], [0, 0, 1, 1], [], []>} : vector<8x100xf32>, vector<100x16xf32>, vector<8x16xf32> -> vector<8x16xf32>
    %c31 = arith.constant 31 : index
    %c0_185 = arith.constant 0 : index
    %c0_186 = arith.constant 0 : index
    %155 = vector.load %arg1[%c31, %c0_185, %c0_186] : memref<40x8x100xf32, #tpu.memory_space<vmem>>, vector<1x8x100xf32>
    %156 = vector.shape_cast %155 : vector<1x8x100xf32> to vector<8x100xf32>
    %c31_187 = arith.constant 31 : index
    %c0_188 = arith.constant 0 : index
    %c0_189 = arith.constant 0 : index
    %157 = vector.load %arg2[%c31_187, %c0_188, %c0_189] : memref<40x100x16xf32, #tpu.memory_space<vmem>>, vector<1x100x16xf32>
    %158 = vector.shape_cast %157 : vector<1x100x16xf32> to vector<100x16xf32>
    %cst_190 = arith.constant dense<0.000000e+00> : vector<8x16xf32>
    %159 = tpu.matmul %156, %158, %cst_190 {dimension_numbers = #tpu.dot_dimension_numbers<[1], [0], [0], [1], [0, 0, 1, 1], [], []>} : vector<8x100xf32>, vector<100x16xf32>, vector<8x16xf32> -> vector<8x16xf32>
    %c32 = arith.constant 32 : index
    %c0_191 = arith.constant 0 : index
    %c0_192 = arith.constant 0 : index
    %160 = vector.load %arg1[%c32, %c0_191, %c0_192] : memref<40x8x100xf32, #tpu.memory_space<vmem>>, vector<1x8x100xf32>
    %161 = vector.shape_cast %160 : vector<1x8x100xf32> to vector<8x100xf32>
    %c32_193 = arith.constant 32 : index
    %c0_194 = arith.constant 0 : index
    %c0_195 = arith.constant 0 : index
    %162 = vector.load %arg2[%c32_193, %c0_194, %c0_195] : memref<40x100x16xf32, #tpu.memory_space<vmem>>, vector<1x100x16xf32>
    %163 = vector.shape_cast %162 : vector<1x100x16xf32> to vector<100x16xf32>
    %cst_196 = arith.constant dense<0.000000e+00> : vector<8x16xf32>
    %164 = tpu.matmul %161, %163, %cst_196 {dimension_numbers = #tpu.dot_dimension_numbers<[1], [0], [0], [1], [0, 0, 1, 1], [], []>} : vector<8x100xf32>, vector<100x16xf32>, vector<8x16xf32> -> vector<8x16xf32>
    %c33 = arith.constant 33 : index
    %c0_197 = arith.constant 0 : index
    %c0_198 = arith.constant 0 : index
    %165 = vector.load %arg1[%c33, %c0_197, %c0_198] : memref<40x8x100xf32, #tpu.memory_space<vmem>>, vector<1x8x100xf32>
    %166 = vector.shape_cast %165 : vector<1x8x100xf32> to vector<8x100xf32>
    %c33_199 = arith.constant 33 : index
    %c0_200 = arith.constant 0 : index
    %c0_201 = arith.constant 0 : index
    %167 = vector.load %arg2[%c33_199, %c0_200, %c0_201] : memref<40x100x16xf32, #tpu.memory_space<vmem>>, vector<1x100x16xf32>
    %168 = vector.shape_cast %167 : vector<1x100x16xf32> to vector<100x16xf32>
    %cst_202 = arith.constant dense<0.000000e+00> : vector<8x16xf32>
    %169 = tpu.matmul %166, %168, %cst_202 {dimension_numbers = #tpu.dot_dimension_numbers<[1], [0], [0], [1], [0, 0, 1, 1], [], []>} : vector<8x100xf32>, vector<100x16xf32>, vector<8x16xf32> -> vector<8x16xf32>
    %c34 = arith.constant 34 : index
    %c0_203 = arith.constant 0 : index
    %c0_204 = arith.constant 0 : index
    %170 = vector.load %arg1[%c34, %c0_203, %c0_204] : memref<40x8x100xf32, #tpu.memory_space<vmem>>, vector<1x8x100xf32>
    %171 = vector.shape_cast %170 : vector<1x8x100xf32> to vector<8x100xf32>
    %c34_205 = arith.constant 34 : index
    %c0_206 = arith.constant 0 : index
    %c0_207 = arith.constant 0 : index
    %172 = vector.load %arg2[%c34_205, %c0_206, %c0_207] : memref<40x100x16xf32, #tpu.memory_space<vmem>>, vector<1x100x16xf32>
    %173 = vector.shape_cast %172 : vector<1x100x16xf32> to vector<100x16xf32>
    %cst_208 = arith.constant dense<0.000000e+00> : vector<8x16xf32>
    %174 = tpu.matmul %171, %173, %cst_208 {dimension_numbers = #tpu.dot_dimension_numbers<[1], [0], [0], [1], [0, 0, 1, 1], [], []>} : vector<8x100xf32>, vector<100x16xf32>, vector<8x16xf32> -> vector<8x16xf32>
    %c35 = arith.constant 35 : index
    %c0_209 = arith.constant 0 : index
    %c0_210 = arith.constant 0 : index
    %175 = vector.load %arg1[%c35, %c0_209, %c0_210] : memref<40x8x100xf32, #tpu.memory_space<vmem>>, vector<1x8x100xf32>
    %176 = vector.shape_cast %175 : vector<1x8x100xf32> to vector<8x100xf32>
    %c35_211 = arith.constant 35 : index
    %c0_212 = arith.constant 0 : index
    %c0_213 = arith.constant 0 : index
    %177 = vector.load %arg2[%c35_211, %c0_212, %c0_213] : memref<40x100x16xf32, #tpu.memory_space<vmem>>, vector<1x100x16xf32>
    %178 = vector.shape_cast %177 : vector<1x100x16xf32> to vector<100x16xf32>
    %cst_214 = arith.constant dense<0.000000e+00> : vector<8x16xf32>
    %179 = tpu.matmul %176, %178, %cst_214 {dimension_numbers = #tpu.dot_dimension_numbers<[1], [0], [0], [1], [0, 0, 1, 1], [], []>} : vector<8x100xf32>, vector<100x16xf32>, vector<8x16xf32> -> vector<8x16xf32>
    %c36 = arith.constant 36 : index
    %c0_215 = arith.constant 0 : index
    %c0_216 = arith.constant 0 : index
    %180 = vector.load %arg1[%c36, %c0_215, %c0_216] : memref<40x8x100xf32, #tpu.memory_space<vmem>>, vector<1x8x100xf32>
    %181 = vector.shape_cast %180 : vector<1x8x100xf32> to vector<8x100xf32>
    %c36_217 = arith.constant 36 : index
    %c0_218 = arith.constant 0 : index
    %c0_219 = arith.constant 0 : index
    %182 = vector.load %arg2[%c36_217, %c0_218, %c0_219] : memref<40x100x16xf32, #tpu.memory_space<vmem>>, vector<1x100x16xf32>
    %183 = vector.shape_cast %182 : vector<1x100x16xf32> to vector<100x16xf32>
    %cst_220 = arith.constant dense<0.000000e+00> : vector<8x16xf32>
    %184 = tpu.matmul %181, %183, %cst_220 {dimension_numbers = #tpu.dot_dimension_numbers<[1], [0], [0], [1], [0, 0, 1, 1], [], []>} : vector<8x100xf32>, vector<100x16xf32>, vector<8x16xf32> -> vector<8x16xf32>
    %c37 = arith.constant 37 : index
    %c0_221 = arith.constant 0 : index
    %c0_222 = arith.constant 0 : index
    %185 = vector.load %arg1[%c37, %c0_221, %c0_222] : memref<40x8x100xf32, #tpu.memory_space<vmem>>, vector<1x8x100xf32>
    %186 = vector.shape_cast %185 : vector<1x8x100xf32> to vector<8x100xf32>
    %c37_223 = arith.constant 37 : index
    %c0_224 = arith.constant 0 : index
    %c0_225 = arith.constant 0 : index
    %187 = vector.load %arg2[%c37_223, %c0_224, %c0_225] : memref<40x100x16xf32, #tpu.memory_space<vmem>>, vector<1x100x16xf32>
    %188 = vector.shape_cast %187 : vector<1x100x16xf32> to vector<100x16xf32>
    %cst_226 = arith.constant dense<0.000000e+00> : vector<8x16xf32>
    %189 = tpu.matmul %186, %188, %cst_226 {dimension_numbers = #tpu.dot_dimension_numbers<[1], [0], [0], [1], [0, 0, 1, 1], [], []>} : vector<8x100xf32>, vector<100x16xf32>, vector<8x16xf32> -> vector<8x16xf32>
    %c38 = arith.constant 38 : index
    %c0_227 = arith.constant 0 : index
    %c0_228 = arith.constant 0 : index
    %190 = vector.load %arg1[%c38, %c0_227, %c0_228] : memref<40x8x100xf32, #tpu.memory_space<vmem>>, vector<1x8x100xf32>
    %191 = vector.shape_cast %190 : vector<1x8x100xf32> to vector<8x100xf32>
    %c38_229 = arith.constant 38 : index
    %c0_230 = arith.constant 0 : index
    %c0_231 = arith.constant 0 : index
    %192 = vector.load %arg2[%c38_229, %c0_230, %c0_231] : memref<40x100x16xf32, #tpu.memory_space<vmem>>, vector<1x100x16xf32>
    %193 = vector.shape_cast %192 : vector<1x100x16xf32> to vector<100x16xf32>
    %cst_232 = arith.constant dense<0.000000e+00> : vector<8x16xf32>
    %194 = tpu.matmul %191, %193, %cst_232 {dimension_numbers = #tpu.dot_dimension_numbers<[1], [0], [0], [1], [0, 0, 1, 1], [], []>} : vector<8x100xf32>, vector<100x16xf32>, vector<8x16xf32> -> vector<8x16xf32>
    %c39 = arith.constant 39 : index
    %c0_233 = arith.constant 0 : index
    %c0_234 = arith.constant 0 : index
    %195 = vector.load %arg1[%c39, %c0_233, %c0_234] : memref<40x8x100xf32, #tpu.memory_space<vmem>>, vector<1x8x100xf32>
    %196 = vector.shape_cast %195 : vector<1x8x100xf32> to vector<8x100xf32>
    %c39_235 = arith.constant 39 : index
    %c0_236 = arith.constant 0 : index
    %c0_237 = arith.constant 0 : index
    %197 = vector.load %arg2[%c39_235, %c0_236, %c0_237] : memref<40x100x16xf32, #tpu.memory_space<vmem>>, vector<1x100x16xf32>
    %198 = vector.shape_cast %197 : vector<1x100x16xf32> to vector<100x16xf32>
    %cst_238 = arith.constant dense<0.000000e+00> : vector<8x16xf32>
    %199 = tpu.matmul %196, %198, %cst_238 {dimension_numbers = #tpu.dot_dimension_numbers<[1], [0], [0], [1], [0, 0, 1, 1], [], []>} : vector<8x100xf32>, vector<100x16xf32>, vector<8x16xf32> -> vector<8x16xf32>
    %200 = tpu.concatenate %4, %9, %14, %19, %24, %29, %34, %39, %44, %49, %54, %59, %64, %69, %74, %79 in 1 : vector<8x16xf32>, vector<8x16xf32>, vector<8x16xf32>, vector<8x16xf32>, vector<8x16xf32>, vector<8x16xf32>, vector<8x16xf32>, vector<8x16xf32>, vector<8x16xf32>, vector<8x16xf32>, vector<8x16xf32>, vector<8x16xf32>, vector<8x16xf32>, vector<8x16xf32>, vector<8x16xf32>, vector<8x16xf32> -> vector<8x256xf32>
    %201 = tpu.concatenate %84, %89, %94, %99, %104, %109, %114, %119, %124, %129, %134, %139, %144, %149, %154, %159 in 1 : vector<8x16xf32>, vector<8x16xf32>, vector<8x16xf32>, vector<8x16xf32>, vector<8x16xf32>, vector<8x16xf32>, vector<8x16xf32>, vector<8x16xf32>, vector<8x16xf32>, vector<8x16xf32>, vector<8x16xf32>, vector<8x16xf32>, vector<8x16xf32>, vector<8x16xf32>, vector<8x16xf32>, vector<8x16xf32> -> vector<8x256xf32>
    %202 = tpu.concatenate %164, %169, %174, %179, %184, %189, %194, %199 in 1 : vector<8x16xf32>, vector<8x16xf32>, vector<8x16xf32>, vector<8x16xf32>, vector<8x16xf32>, vector<8x16xf32>, vector<8x16xf32>, vector<8x16xf32> -> vector<8x128xf32>
    %203 = tpu.concatenate %200, %201, %202 in 1 : vector<8x256xf32>, vector<8x256xf32>, vector<8x128xf32> -> vector<8x640xf32>
    %c0_239 = arith.constant 0 : index
    %c0_240 = arith.constant 0 : index
    %204 = vector.load %arg3[%c0_239, %c0_240] : memref<1x640xf32, #tpu.memory_space<vmem>>, vector<1x640xf32>
    %205 = vector.broadcast %204 : vector<1x640xf32> to vector<8x640xf32>
    %206 = arith.addf %203, %205 : vector<8x640xf32>
    %c0_241 = arith.constant 0 : index
    %c0_242 = arith.constant 0 : index
    %207 = vector.load %arg4[%c0_241, %c0_242] : memref<8x640xf32, #tpu.memory_space<vmem>>, vector<8x640xf32>
    tpu.vector_store %arg4[%c0_241, %c0_242], %206 {strides = array<i32>} : memref<8x640xf32, #tpu.memory_space<vmem>>, vector<8x640xf32>,
    return
  }
  func.func @transform_0(%arg0: i32) -> (i32, i32, i32) {
    %c0_i32 = arith.constant 0 : i32
    %c0_i32_0 = arith.constant 0 : i32
    %c0_i32_1 = arith.constant 0 : i32
    return %arg0, %c0_i32, %c0_i32_0 : i32, i32, i32
  }
  func.func @transform_1(%arg0: i32) -> (i32, i32, i32) {
    %c0_i32 = arith.constant 0 : i32
    %c0_i32_0 = arith.constant 0 : i32
    %c0_i32_1 = arith.constant 0 : i32
    return %arg0, %c0_i32, %c0_i32_0 : i32, i32, i32
  }
  func.func @transform_2(%arg0: i32) -> (i32, i32) {
    %c0_i32 = arith.constant 0 : i32
    %c0_i32_0 = arith.constant 0 : i32
    return %c0_i32, %arg0 : i32, i32
  }
  func.func @transform_3(%arg0: i32) -> (i32, i32) {
    %c0_i32 = arith.constant 0 : i32
    %c0_i32_0 = arith.constant 0 : i32
    return %c0_i32, %arg0 : i32, i32
  }
}

</mosaic_0001>

<llo_original>
// kernel: _lambda_.1
$region0: #{_lambda_.1}
  #allocation0 [shape = 'u32[]', space=smem, size = 0x4, offset = 0x4, fixed_abs, tag = 'smem constant byte address 0x4 - core index']
  #allocation1 [shape = 'u32[144,128]{1,0:T(1,128)}', space=vmem, size = 0x12000, scoped, tag = 'internal scratch']
  %s0 = inlined_call_operand.vmem [shape: f32[40,8,100], index: 0, kind: input, shape index: {}]
  %s1 = inlined_call_operand.hbm [shape: f32[40,100,16], index: 1, kind: input, shape index: {}]
  %s2 = inlined_call_operand.vmem [shape: f32[1,640], index: 2, kind: input, shape index: {}]
  %s3 = inlined_call_operand.vmem [shape: f32[8,640], index: 3, kind: output, shape index: {}]
  %s4 = sld [smem:[#allocation0]]
  $region26: #{_lambda_.1} parent=0
    _
  %s6 = ssub.s32 1, %s4
  %s7 = scalar_select 0, %s6, %s4
  $region1: #{_lambda_.1} parent=0
    #allocation2 [shape = 'u8[2129920]{0}', space=vmem, size = 0x208000, scoped, tag = 'input window, operand 1, single buffered']
    #allocation3 [shape = 's32[1]{0}', space=sflag, size = 0x4, scoped, tag = 'scoped memory for _lambda_.1']
    %8 = vsyncpa [#allocation3], 0
    // Predicated region
    $region2: #{_lambda_.1} parent=1 // pred_check
      _
    $region3: #{_lambda_.1} parent=1 // pred_check_branch
      %10 = sbr.rel (0) target = $region5
    $region4: #{_lambda_.1} parent=1 // pred_region
      _
    $region5: #{_lambda_.1} parent=1 // pred_fallthru
      _
    // Predicated region
    $region6: #{_lambda_.1} parent=1 // pred_check
      _
    $region7: #{_lambda_.1} parent=1 // pred_check_branch
      %12 = sbr.rel (0) target = $region9
    $region8: #{_lambda_.1} parent=1 // pred_region
      %s14 = ssub.s32 66560, 66560
      %15 = vsyncadd [#allocation3], %s14
      %s16 = sshll.u32 [#allocation2], 4
      %s17 = int_to_ptr.vmem [resolvable:$true] %s16
      %22 = dma.hbm_to_vmem [thread:$0]  %s1, 66560, %s17, [#allocation3], 128, 128, 8
    $region9: #{_lambda_.1} parent=1 // pred_fallthru
      _
    // Predicated region
    $region10: #{_lambda_.1} parent=1 // pred_check
      _
    $region11: #{_lambda_.1} parent=1 // pred_check_branch
      %24 = sbr.rel (0) target = $region13
    $region12: #{_lambda_.1} parent=1 // pred_region
      _
    $region13: #{_lambda_.1} parent=1 // pred_fallthru
      _
    // Predicated region
    $region14: #{_lambda_.1} parent=1 // pred_check
      _
    $region15: #{_lambda_.1} parent=1 // pred_check_branch
      %26 = sbr.rel (0) target = $region17
    $region16: #{_lambda_.1} parent=1 // pred_region
      %27 = dma.done [#allocation3], 66560
    $region17: #{_lambda_.1} parent=1 // pred_fallthru
      _
    %v28 = vld [vmem:[%s0] sm:$0xff]
    %v29 = vld [vmem:[#allocation2] sm:$0xff]
    %v30 = vld [vmem:[#allocation2 + $0x8] sm:$0xff]
    %v31 = vld [vmem:[#allocation2 + $0x10] sm:$0xff]
    %v32 = vld [vmem:[#allocation2 + $0x18] sm:$0xff]
    %v33 = vld [vmem:[#allocation2 + $0x20] sm:$0xff]
    %v34 = vld [vmem:[#allocation2 + $0x28] sm:$0xff]
    %v35 = vld [vmem:[#allocation2 + $0x30] sm:$0xff]
    %v36 = vld [vmem:[#allocation2 + $0x38] sm:$0xff]
    %v37 = vld [vmem:[#allocation2 + $0x40] sm:$0xff]
    %v38 = vld [vmem:[#allocation2 + $0x48] sm:$0xff]
    %v39 = vld [vmem:[#allocation2 + $0x50] sm:$0xff]
    %v40 = vld [vmem:[#allocation2 + $0x58] sm:$0xff]
    %v41 = vld [vmem:[#allocation2 + $0x60] sm:$0xf]
    %vm42 = vcmask 818176
    %v44 = vsel %vm42, %v28, 0
    %vm46 = vcmask 1043456
    %v48 = vsel %vm46, %v41, 0
    %50 = vmatprep.subr.mxu0 0.0
    %51 = vmatpush1.msra.mxu0 %v29
    %52 = vmatprep.subr.mxu0 0.0
    %53 = vmatpush1.msra.mxu0 %v30
    %54 = vmatprep.subr.mxu0 0.0
    %55 = vmatpush1.msra.mxu0 %v31
    %56 = vmatprep.subr.mxu0 0.0
    %57 = vmatpush1.msra.mxu0 %v32
    %58 = vmatprep.subr.mxu0 0.0
    %59 = vmatpush1.msra.mxu0 %v33
    %60 = vmatprep.subr.mxu0 0.0
    %61 = vmatpush1.msra.mxu0 %v34
    %62 = vmatprep.subr.mxu0 0.0
    %63 = vmatpush1.msra.mxu0 %v35
    %64 = vmatprep.subr.mxu0 0.0
    %65 = vmatpush1.msra.mxu0 %v36
    %66 = vmatprep.subr.mxu0 0.0
    %67 = vmatpush1.msra.mxu0 %v37
    %68 = vmatprep.subr.mxu0 0.0
    %69 = vmatpush1.msra.mxu0 %v38
    %70 = vmatprep.subr.mxu0 0.0
    %71 = vmatpush1.msra.mxu0 %v39
    %72 = vmatprep.subr.mxu0 0.0
    %73 = vmatpush1.msra.mxu0 %v40
    %74 = vmatprep.subr.mxu0 0.0
    %75 = vmatpush1.msra.mxu0 %v48
    %76 = vmatprep.subr.mxu0 0.0
    %77 = vmatpush1.msra.mxu0 0.0
    %78 = vmatprep.subr.mxu0 0.0
    %79 = vmatpush1.msra.mxu0 0.0
    %80 = vmatprep.subr.mxu0 0.0
    %81 = vmatpush1.msra.mxu0 0.0
    %82 = vmatprep.subr.mxu0 0.0
    %83 = vmatpush1.msra.mxu0 0.0
    %84 = vmatprep.subr.mxu0 0.0
    %85 = vmatpush1.msra.mxu0 0.0
    %86 = vmatprep.subr.mxu0 0.0
    %87 = vmatpush1.msra.mxu0 0.0
    %88 = vmatprep.subr.mxu0 0.0
    %89 = vmatpush1.msra.mxu0 0.0
    %90 = vmatprep.subr.mxu0 0.0
    %91 = vmatpush1.msra.mxu0 0.0
    %92 = vmatprep.subr.mxu0 0.0
    %93 = vmatpush1.msra.mxu0 0.0
    %94 = vmatprep.subr.mxu0 0.0
    %95 = vmatpush1.msra.mxu0 0.0
    %96 = vmatprep.subr.mxu0 0.0
    %97 = vmatpush1.msra.mxu0 0.0
    %98 = vmatprep.subr.mxu0 0.0
    %99 = vmatpush1.msra.mxu0 0.0
    %100 = vmatprep.subr.mxu0 0.0
    %101 = vmatpush1.msra.mxu0 0.0
    %102 = vmatprep.subr.mxu0 0.0
    %103 = vmatpush1.msra.mxu0 0.0
    %104 = vmatprep.subr.mxu0 0.0
    %105 = vmatpush1.msra.mxu0 0.0
    %106 = vmatprep.subr.mxu0 0.0
    %107 = vmatpush1.msra.mxu0 0.0
    %108 = vmatprep.subr.mxu0 0.0
    %109 = vmatpush1.msra.mxu0 0.0
    %110 = vmatprep.subr.mxu0 0.0
    %111 = vmatpush1.msra.mxu0 0.0
    %112 = vmatprep.subr.mxu0 0.0
    %113 = vmatpush1.msra.mxu0 0.0
    %114 = vmatprep.mubr.f32.mxu0 0.0
    %115 = vmatmul.mubr.f32.gmra.mrb[0].mxu0 %v44
    %v116 = vpop.f32.mrb[0].mxu0
    %v117 = vadd.f32 0.0, %v116
    %v118 = vpop.f32.mrb[0].mxu0
    %119 = vdwg.mxu0
    %s120 = scalar_lea.vmem %s0, 8
    %v121 = vld [vmem:[%s120] sm:$0xff]
    %s122 = scalar_lea.vmem [#allocation2], 104
    %v123 = vld [vmem:[%s122] sm:$0xff]
    %v124 = vld [vmem:[%s122 + $0x8] sm:$0xff]
    %v125 = vld [vmem:[%s122 + $0x10] sm:$0xff]
    %v126 = vld [vmem:[%s122 + $0x18] sm:$0xff]
    %v127 = vld [vmem:[%s122 + $0x20] sm:$0xff]
    %v128 = vld [vmem:[%s122 + $0x28] sm:$0xff]
    %v129 = vld [vmem:[%s122 + $0x30] sm:$0xff]
    %v130 = vld [vmem:[%s122 + $0x38] sm:$0xff]
    %v131 = vld [vmem:[%s122 + $0x40] sm:$0xff]
    %v132 = vld [vmem:[%s122 + $0x48] sm:$0xff]
    %v133 = vld [vmem:[%s122 + $0x50] sm:$0xff]
    %v134 = vld [vmem:[%s122 + $0x58] sm:$0xff]
    %v135 = vld [vmem:[%s122 + $0x60] sm:$0xf]
    %v137 = vsel %vm42, %v121, 0
    %v140 = vsel %vm46, %v135, 0
    %142 = vmatprep.subr.mxu0 0.0
    %143 = vmatpush1.msra.mxu0 %v123
    %144 = vmatprep.subr.mxu0 0.0
    %145 = vmatpush1.msra.mxu0 %v124
    %146 = vmatprep.subr.mxu0 0.0
    %147 = vmatpush1.msra.mxu0 %v125
    %148 = vmatprep.subr.mxu0 0.0
    %149 = vmatpush1.msra.mxu0 %v126
    %150 = vmatprep.subr.mxu0 0.0
    %151 = vmatpush1.msra.mxu0 %v127
    %152 = vmatprep.subr.mxu0 0.0
    %153 = vmatpush1.msra.mxu0 %v128
    %154 = vmatprep.subr.mxu0 0.0
    %155 = vmatpush1.msra.mxu0 %v129
    %156 = vmatprep.subr.mxu0 0.0
    %157 = vmatpush1.msra.mxu0 %v130
    %158 = vmatprep.subr.mxu0 0.0
    %159 = vmatpush1.msra.mxu0 %v131
    %160 = vmatprep.subr.mxu0 0.0
    %161 = vmatpush1.msra.mxu0 %v132
    %162 = vmatprep.subr.mxu0 0.0
    %163 = vmatpush1.msra.mxu0 %v133
    %164 = vmatprep.subr.mxu0 0.0
    %165 = vmatpush1.msra.mxu0 %v134
    %166 = vmatprep.subr.mxu0 0.0
    %167 = vmatpush1.msra.mxu0 %v140
    %168 = vmatprep.subr.mxu0 0.0
    %169 = vmatpush1.msra.mxu0 0.0
    %170 = vmatprep.subr.mxu0 0.0
    %171 = vmatpush1.msra.mxu0 0.0
    %172 = vmatprep.subr.mxu0 0.0
    %173 = vmatpush1.msra.mxu0 0.0
    %174 = vmatprep.subr.mxu0 0.0
    %175 = vmatpush1.msra.mxu0 0.0
    %176 = vmatprep.subr.mxu0 0.0
    %177 = vmatpush1.msra.mxu0 0.0
    %178 = vmatprep.subr.mxu0 0.0
    %179 = vmatpush1.msra.mxu0 0.0
    %180 = vmatprep.subr.mxu0 0.0
    %181 = vmatpush1.msra.mxu0 0.0
    %182 = vmatprep.subr.mxu0 0.0
    %183 = vmatpush1.msra.mxu0 0.0
    %184 = vmatprep.subr.mxu0 0.0
    %185 = vmatpush1.msra.mxu0 0.0
    %186 = vmatprep.subr.mxu0 0.0
    %187 = vmatpush1.msra.mxu0 0.0
    %188 = vmatprep.subr.mxu0 0.0
    %189 = vmatpush1.msra.mxu0 0.0
    %190 = vmatprep.subr.mxu0 0.0
    %191 = vmatpush1.msra.mxu0 0.0
    %192 = vmatprep.subr.mxu0 0.0
    %193 = vmatpush1.msra.mxu0 0.0
    %194 = vmatprep.subr.mxu0 0.0
    %195 = vmatpush1.msra.mxu0 0.0
    %196 = vmatprep.subr.mxu0 0.0
    %197 = vmatpush1.msra.mxu0 0.0
    %198 = vmatprep.subr.mxu0 0.0
    %199 = vmatpush1.msra.mxu0 0.0
    %200 = vmatprep.subr.mxu0 0.0
    %201 = vmatpush1.msra.mxu0 0.0
    %202 = vmatprep.subr.mxu0 0.0
    %203 = vmatpush1.msra.mxu0 0.0
    %204 = vmatprep.subr.mxu0 0.0
    %205 = vmatpush1.msra.mxu0 0.0
    %206 = vmatprep.mubr.f32.mxu0 0.0
    %207 = vmatmul.mubr.f32.gmra.mrb[0].mxu0 %v137
    %v208 = vpop.f32.mrb[0].mxu0
    %v209 = vadd.f32 0.0, %v208
    %v210 = vpop.f32.mrb[0].mxu0
    %211 = vdwg.mxu0
    %s212 = scalar_lea.vmem %s0, 16
    %v213 = vld [vmem:[%s212] sm:$0xff]
    %s214 = scalar_lea.vmem [#allocation2], 208
    %v215 = vld [vmem:[%s214] sm:$0xff]
    %v216 = vld [vmem:[%s214 + $0x8] sm:$0xff]
    %v217 = vld [vmem:[%s214 + $0x10] sm:$0xff]
    %v218 = vld [vmem:[%s214 + $0x18] sm:$0xff]
    %v219 = vld [vmem:[%s214 + $0x20] sm:$0xff]
    %v220 = vld [vmem:[%s214 + $0x28] sm:$0xff]
    %v221 = vld [vmem:[%s214 + $0x30] sm:$0xff]
    %v222 = vld [vmem:[%s214 + $0x38] sm:$0xff]
    %v223 = vld [vmem:[%s214 + $0x40] sm:$0xff]
    %v224 = vld [vmem:[%s214 + $0x48] sm:$0xff]
    %v225 = vld [vmem:[%s214 + $0x50] sm:$0xff]
    %v226 = vld [vmem:[%s214 + $0x58] sm:$0xff]
    %v227 = vld [vmem:[%s214 + $0x60] sm:$0xf]
    %v229 = vsel %vm42, %v213, 0
    %v232 = vsel %vm46, %v227, 0
    %234 = vmatprep.subr.mxu0 0.0
    %235 = vmatpush1.msra.mxu0 %v215
    %236 = vmatprep.subr.mxu0 0.0
    %237 = vmatpush1.msra.mxu0 %v216
    %238 = vmatprep.subr.mxu0 0.0
    %239 = vmatpush1.msra.mxu0 %v217
    %240 = vmatprep.subr.mxu0 0.0
    %241 = vmatpush1.msra.mxu0 %v218
    %242 = vmatprep.subr.mxu0 0.0
    %243 = vmatpush1.msra.mxu0 %v219
    %244 = vmatprep.subr.mxu0 0.0
    %245 = vmatpush1.msra.mxu0 %v220
    %246 = vmatprep.subr.mxu0 0.0
    %247 = vmatpush1.msra.mxu0 %v221
    %248 = vmatprep.subr.mxu0 0.0
    %249 = vmatpush1.msra.mxu0 %v222
    %250 = vmatprep.subr.mxu0 0.0
    %251 = vmatpush1.msra.mxu0 %v223
    %252 = vmatprep.subr.mxu0 0.0
    %253 = vmatpush1.msra.mxu0 %v224
    %254 = vmatprep.subr.mxu0 0.0
    %255 = vmatpush1.msra.mxu0 %v225
    %256 = vmatprep.subr.mxu0 0.0
    %257 = vmatpush1.msra.mxu0 %v226
    %258 = vmatprep.subr.mxu0 0.0
    %259 = vmatpush1.msra.mxu0 %v232
    %260 = vmatprep.subr.mxu0 0.0
    %261 = vmatpush1.msra.mxu0 0.0
    %262 = vmatprep.subr.mxu0 0.0
    %263 = vmatpush1.msra.mxu0 0.0
    %264 = vmatprep.subr.mxu0 0.0
    %265 = vmatpush1.msra.mxu0 0.0
    %266 = vmatprep.subr.mxu0 0.0
    %267 = vmatpush1.msra.mxu0 0.0
    %268 = vmatprep.subr.mxu0 0.0
    %269 = vmatpush1.msra.mxu0 0.0
    %270 = vmatprep.subr.mxu0 0.0
    %271 = vmatpush1.msra.mxu0 0.0
    %272 = vmatprep.subr.mxu0 0.0
    %273 = vmatpush1.msra.mxu0 0.0
    %274 = vmatprep.subr.mxu0 0.0
    %275 = vmatpush1.msra.mxu0 0.0
    %276 = vmatprep.subr.mxu0 0.0
    %277 = vmatpush1.msra.mxu0 0.0
    %278 = vmatprep.subr.mxu0 0.0
    %279 = vmatpush1.msra.mxu0 0.0
    %280 = vmatprep.subr.mxu0 0.0
    %281 = vmatpush1.msra.mxu0 0.0
    %282 = vmatprep.subr.mxu0 0.0
    %283 = vmatpush1.msra.mxu0 0.0
    %284 = vmatprep.subr.mxu0 0.0
    %285 = vmatpush1.msra.mxu0 0.0
    %286 = vmatprep.subr.mxu0 0.0
    %287 = vmatpush1.msra.mxu0 0.0
    %288 = vmatprep.subr.mxu0 0.0
    %289 = vmatpush1.msra.mxu0 0.0
    %290 = vmatprep.subr.mxu0 0.0
    %291 = vmatpush1.msra.mxu0 0.0
    %292 = vmatprep.subr.mxu0 0.0
    %293 = vmatpush1.msra.mxu0 0.0
    %294 = vmatprep.subr.mxu0 0.0
    %295 = vmatpush1.msra.mxu0 0.0
    %296 = vmatprep.subr.mxu0 0.0
    %297 = vmatpush1.msra.mxu0 0.0
    %298 = vmatprep.mubr.f32.mxu0 0.0
    %299 = vmatmul.mubr.f32.gmra.mrb[0].mxu0 %v229
    %v300 = vpop.f32.mrb[0].mxu0
    %v301 = vadd.f32 0.0, %v300
    %v302 = vpop.f32.mrb[0].mxu0
    %303 = vdwg.mxu0
    %s304 = scalar_lea.vmem %s0, 24
    %v305 = vld [vmem:[%s304] sm:$0xff]
    %s306 = scalar_lea.vmem [#allocation2], 312
    %v307 = vld [vmem:[%s306] sm:$0xff]
    %v308 = vld [vmem:[%s306 + $0x8] sm:$0xff]
    %v309 = vld [vmem:[%s306 + $0x10] sm:$0xff]
    %v310 = vld [vmem:[%s306 + $0x18] sm:$0xff]
    %v311 = vld [vmem:[%s306 + $0x20] sm:$0xff]
    %v312 = vld [vmem:[%s306 + $0x28] sm:$0xff]
    %v313 = vld [vmem:[%s306 + $0x30] sm:$0xff]
    %v314 = vld [vmem:[%s306 + $0x38] sm:$0xff]
    %v315 = vld [vmem:[%s306 + $0x40] sm:$0xff]
    %v316 = vld [vmem:[%s306 + $0x48] sm:$0xff]
    %v317 = vld [vmem:[%s306 + $0x50] sm:$0xff]
    %v318 = vld [vmem:[%s306 + $0x58] sm:$0xff]
    %v319 = vld [vmem:[%s306 + $0x60] sm:$0xf]
    %v321 = vsel %vm42, %v305, 0
    %v324 = vsel %vm46, %v319, 0
    %326 = vmatprep.subr.mxu0 0.0
    %327 = vmatpush1.msra.mxu0 %v307
    %328 = vmatprep.subr.mxu0 0.0
    %329 = vmatpush1.msra.mxu0 %v308
    %330 = vmatprep.subr.mxu0 0.0
    %331 = vmatpush1.msra.mxu0 %v309
    %332 = vmatprep.subr.mxu0 0.0
    %333 = vmatpush1.msra.mxu0 %v310
    %334 = vmatprep.subr.mxu0 0.0
    %335 = vmatpush1.msra.mxu0 %v311
    %336 = vmatprep.subr.mxu0 0.0
    %337 = vmatpush1.msra.mxu0 %v312
    %338 = vmatprep.subr.mxu0 0.0
    %339 = vmatpush1.msra.mxu0 %v313
    %340 = vmatprep.subr.mxu0 0.0
    %341 = vmatpush1.msra.mxu0 %v314
    %342 = vmatprep.subr.mxu0 0.0
    %343 = vmatpush1.msra.mxu0 %v315
    %344 = vmatprep.subr.mxu0 0.0
    %345 = vmatpush1.msra.mxu0 %v316
    %346 = vmatprep.subr.mxu0 0.0
    %347 = vmatpush1.msra.mxu0 %v317
    %348 = vmatprep.subr.mxu0 0.0
    %349 = vmatpush1.msra.mxu0 %v318
    %350 = vmatprep.subr.mxu0 0.0
    %351 = vmatpush1.msra.mxu0 %v324
    %352 = vmatprep.subr.mxu0 0.0
    %353 = vmatpush1.msra.mxu0 0.0
    %354 = vmatprep.subr.mxu0 0.0
    %355 = vmatpush1.msra.mxu0 0.0
    %356 = vmatprep.subr.mxu0 0.0
    %357 = vmatpush1.msra.mxu0 0.0
    %358 = vmatprep.subr.mxu0 0.0
    %359 = vmatpush1.msra.mxu0 0.0
    %360 = vmatprep.subr.mxu0 0.0
    %361 = vmatpush1.msra.mxu0 0.0
    %362 = vmatprep.subr.mxu0 0.0
    %363 = vmatpush1.msra.mxu0 0.0
    %364 = vmatprep.subr.mxu0 0.0
    %365 = vmatpush1.msra.mxu0 0.0
    %366 = vmatprep.subr.mxu0 0.0
    %367 = vmatpush1.msra.mxu0 0.0
    %368 = vmatprep.subr.mxu0 0.0
    %369 = vmatpush1.msra.mxu0 0.0
    %370 = vmatprep.subr.mxu0 0.0
    %371 = vmatpush1.msra.mxu0 0.0
    %372 = vmatprep.subr.mxu0 0.0
    %373 = vmatpush1.msra.mxu0 0.0
    %374 = vmatprep.subr.mxu0 0.0
    %375 = vmatpush1.msra.mxu0 0.0
    %376 = vmatprep.subr.mxu0 0.0
    %377 = vmatpush1.msra.mxu0 0.0
    %378 = vmatprep.subr.mxu0 0.0
    %379 = vmatpush1.msra.mxu0 0.0
    %380 = vmatprep.subr.mxu0 0.0
    %381 = vmatpush1.msra.mxu0 0.0
    %382 = vmatprep.subr.mxu0 0.0
    %383 = vmatpush1.msra.mxu0 0.0
    %384 = vmatprep.subr.mxu0 0.0
    %385 = vmatpush1.msra.mxu0 0.0
    %386 = vmatprep.subr.mxu0 0.0
    %387 = vmatpush1.msra.mxu0 0.0
    %388 = vmatprep.subr.mxu0 0.0
    %389 = vmatpush1.msra.mxu0 0.0
    %390 = vmatprep.mubr.f32.mxu0 0.0
    %391 = vmatmul.mubr.f32.gmra.mrb[0].mxu0 %v321
    %v392 = vpop.f32.mrb[0].mxu0
    %v393 = vadd.f32 0.0, %v392
    %v394 = vpop.f32.mrb[0].mxu0
    %395 = vdwg.mxu0
    %s396 = scalar_lea.vmem %s0, 32
    %v397 = vld [vmem:[%s396] sm:$0xff]
    %s398 = scalar_lea.vmem [#allocation2], 416
    %v399 = vld [vmem:[%s398] sm:$0xff]
    %v400 = vld [vmem:[%s398 + $0x8] sm:$0xff]
    %v401 = vld [vmem:[%s398 + $0x10] sm:$0xff]
    %v402 = vld [vmem:[%s398 + $0x18] sm:$0xff]
    %v403 = vld [vmem:[%s398 + $0x20] sm:$0xff]
    %v404 = vld [vmem:[%s398 + $0x28] sm:$0xff]
    %v405 = vld [vmem:[%s398 + $0x30] sm:$0xff]
    %v406 = vld [vmem:[%s398 + $0x38] sm:$0xff]
    %v407 = vld [vmem:[%s398 + $0x40] sm:$0xff]
    %v408 = vld [vmem:[%s398 + $0x48] sm:$0xff]
    %v409 = vld [vmem:[%s398 + $0x50] sm:$0xff]
    %v410 = vld [vmem:[%s398 + $0x58] sm:$0xff]
    %v411 = vld [vmem:[%s398 + $0x60] sm:$0xf]
    %v413 = vsel %vm42, %v397, 0
    %v416 = vsel %vm46, %v411, 0
    %418 = vmatprep.subr.mxu0 0.0
    %419 = vmatpush1.msra.mxu0 %v399
    %420 = vmatprep.subr.mxu0 0.0
    %421 = vmatpush1.msra.mxu0 %v400
    %422 = vmatprep.subr.mxu0 0.0
    %423 = vmatpush1.msra.mxu0 %v401
    %424 = vmatprep.subr.mxu0 0.0
    %425 = vmatpush1.msra.mxu0 %v402
    %426 = vmatprep.subr.mxu0 0.0
    %427 = vmatpush1.msra.mxu0 %v403
    %428 = vmatprep.subr.mxu0 0.0
    %429 = vmatpush1.msra.mxu0 %v404
    %430 = vmatprep.subr.mxu0 0.0
    %431 = vmatpush1.msra.mxu0 %v405
    %432 = vmatprep.subr.mxu0 0.0
    %433 = vmatpush1.msra.mxu0 %v406
    %434 = vmatprep.subr.mxu0 0.0
    %435 = vmatpush1.msra.mxu0 %v407
    %436 = vmatprep.subr.mxu0 0.0
    %437 = vmatpush1.msra.mxu0 %v408
    %438 = vmatprep.subr.mxu0 0.0
    %439 = vmatpush1.msra.mxu0 %v409
    %440 = vmatprep.subr.mxu0 0.0
    %441 = vmatpush1.msra.mxu0 %v410
    %442 = vmatprep.subr.mxu0 0.0
    %443 = vmatpush1.msra.mxu0 %v416
    %444 = vmatprep.subr.mxu0 0.0
    %445 = vmatpush1.msra.mxu0 0.0
    %446 = vmatprep.subr.mxu0 0.0
    %447 = vmatpush1.msra.mxu0 0.0
    %448 = vmatprep.subr.mxu0 0.0
    %449 = vmatpush1.msra.mxu0 0.0
    %450 = vmatprep.subr.mxu0 0.0
    %451 = vmatpush1.msra.mxu0 0.0
    %452 = vmatprep.subr.mxu0 0.0
    %453 = vmatpush1.msra.mxu0 0.0
    %454 = vmatprep.subr.mxu0 0.0
    %455 = vmatpush1.msra.mxu0 0.0
    %456 = vmatprep.subr.mxu0 0.0
    %457 = vmatpush1.msra.mxu0 0.0
    %458 = vmatprep.subr.mxu0 0.0
    %459 = vmatpush1.msra.mxu0 0.0
    %460 = vmatprep.subr.mxu0 0.0
    %461 = vmatpush1.msra.mxu0 0.0
    %462 = vmatprep.subr.mxu0 0.0
    %463 = vmatpush1.msra.mxu0 0.0
    %464 = vmatprep.subr.mxu0 0.0
    %465 = vmatpush1.msra.mxu0 0.0
    %466 = vmatprep.subr.mxu0 0.0
    %467 = vmatpush1.msra.mxu0 0.0
    %468 = vmatprep.subr.mxu0 0.0
    %469 = vmatpush1.msra.mxu0 0.0
    %470 = vmatprep.subr.mxu0 0.0
    %471 = vmatpush1.msra.mxu0 0.0
    %472 = vmatprep.subr.mxu0 0.0
    %473 = vmatpush1.msra.mxu0 0.0
    %474 = vmatprep.subr.mxu0 0.0
    %475 = vmatpush1.msra.mxu0 0.0
    %476 = vmatprep.subr.mxu0 0.0
    %477 = vmatpush1.msra.mxu0 0.0
    %478 = vmatprep.subr.mxu0 0.0
    %479 = vmatpush1.msra.mxu0 0.0
    %480 = vmatprep.subr.mxu0 0.0
    %481 = vmatpush1.msra.mxu0 0.0
    %482 = vmatprep.mubr.f32.mxu0 0.0
    %483 = vmatmul.mubr.f32.gmra.mrb[0].mxu0 %v413
    %v484 = vpop.f32.mrb[0].mxu0
    %v485 = vadd.f32 0.0, %v484
    %v486 = vpop.f32.mrb[0].mxu0
    %487 = vdwg.mxu0
    %s488 = scalar_lea.vmem %s0, 40
    %v489 = vld [vmem:[%s488] sm:$0xff]
    %s490 = scalar_lea.vmem [#allocation2], 520
    %v491 = vld [vmem:[%s490] sm:$0xff]
    %v492 = vld [vmem:[%s490 + $0x8] sm:$0xff]
    %v493 = vld [vmem:[%s490 + $0x10] sm:$0xff]
    %v494 = vld [vmem:[%s490 + $0x18] sm:$0xff]
    %v495 = vld [vmem:[%s490 + $0x20] sm:$0xff]
    %v496 = vld [vmem:[%s490 + $0x28] sm:$0xff]
    %v497 = vld [vmem:[%s490 + $0x30] sm:$0xff]
    %v498 = vld [vmem:[%s490 + $0x38] sm:$0xff]
    %v499 = vld [vmem:[%s490 + $0x40] sm:$0xff]
    %v500 = vld [vmem:[%s490 + $0x48] sm:$0xff]
    %v501 = vld [vmem:[%s490 + $0x50] sm:$0xff]
    %v502 = vld [vmem:[%s490 + $0x58] sm:$0xff]
    %v503 = vld [vmem:[%s490 + $0x60] sm:$0xf]
    %v505 = vsel %vm42, %v489, 0
    %v508 = vsel %vm46, %v503, 0
    %510 = vmatprep.subr.mxu0 0.0
    %511 = vmatpush1.msra.mxu0 %v491
    %512 = vmatprep.subr.mxu0 0.0
    %513 = vmatpush1.msra.mxu0 %v492
    %514 = vmatprep.subr.mxu0 0.0
    %515 = vmatpush1.msra.mxu0 %v493
    %516 = vmatprep.subr.mxu0 0.0
    %517 = vmatpush1.msra.mxu0 %v494
    %518 = vmatprep.subr.mxu0 0.0
    %519 = vmatpush1.msra.mxu0 %v495
    %520 = vmatprep.subr.mxu0 0.0
    %521 = vmatpush1.msra.mxu0 %v496
    %522 = vmatprep.subr.mxu0 0.0
    %523 = vmatpush1.msra.mxu0 %v497
    %524 = vmatprep.subr.mxu0 0.0
    %525 = vmatpush1.msra.mxu0 %v498
    %526 = vmatprep.subr.mxu0 0.0
    %527 = vmatpush1.msra.mxu0 %v499
    %528 = vmatprep.subr.mxu0 0.0
    %529 = vmatpush1.msra.mxu0 %v500
    %530 = vmatprep.subr.mxu0 0.0
    %531 = vmatpush1.msra.mxu0 %v501
    %532 = vmatprep.subr.mxu0 0.0
    %533 = vmatpush1.msra.mxu0 %v502
    %534 = vmatprep.subr.mxu0 0.0
    %535 = vmatpush1.msra.mxu0 %v508
    %536 = vmatprep.subr.mxu0 0.0
    %537 = vmatpush1.msra.mxu0 0.0
    %538 = vmatprep.subr.mxu0 0.0
    %539 = vmatpush1.msra.mxu0 0.0
    %540 = vmatprep.subr.mxu0 0.0
    %541 = vmatpush1.msra.mxu0 0.0
    %542 = vmatprep.subr.mxu0 0.0
    %543 = vmatpush1.msra.mxu0 0.0
    %544 = vmatprep.subr.mxu0 0.0
    %545 = vmatpush1.msra.mxu0 0.0
    %546 = vmatprep.subr.mxu0 0.0
    %547 = vmatpush1.msra.mxu0 0.0
    %548 = vmatprep.subr.mxu0 0.0
    %549 = vmatpush1.msra.mxu0 0.0
    %550 = vmatprep.subr.mxu0 0.0
    %551 = vmatpush1.msra.mxu0 0.0
    %552 = vmatprep.subr.mxu0 0.0
    %553 = vmatpush1.msra.mxu0 0.0
    %554 = vmatprep.subr.mxu0 0.0
    %555 = vmatpush1.msra.mxu0 0.0
    %556 = vmatprep.subr.mxu0 0.0
    %557 = vmatpush1.msra.mxu0 0.0
    %558 = vmatprep.subr.mxu0 0.0
    %559 = vmatpush1.msra.mxu0 0.0
    %560 = vmatprep.subr.mxu0 0.0
    %561 = vmatpush1.msra.mxu0 0.0
    %562 = vmatprep.subr.mxu0 0.0
    %563 = vmatpush1.msra.mxu0 0.0
    %564 = vmatprep.subr.mxu0 0.0
    %565 = vmatpush1.msra.mxu0 0.0
    %566 = vmatprep.subr.mxu0 0.0
    %567 = vmatpush1.msra.mxu0 0.0
    %568 = vmatprep.subr.mxu0 0.0
    %569 = vmatpush1.msra.mxu0 0.0
    %570 = vmatprep.subr.mxu0 0.0
    %571 = vmatpush1.msra.mxu0 0.0
    %572 = vmatprep.subr.mxu0 0.0
    %573 = vmatpush1.msra.mxu0 0.0
    %574 = vmatprep.mubr.f32.mxu0 0.0
    %575 = vmatmul.mubr.f32.gmra.mrb[0].mxu0 %v505
    %v576 = vpop.f32.mrb[0].mxu0
    %v577 = vadd.f32 0.0, %v576
    %v578 = vpop.f32.mrb[0].mxu0
    %579 = vdwg.mxu0
    %s580 = scalar_lea.vmem %s0, 48
    %v581 = vld [vmem:[%s580] sm:$0xff]
    %s582 = scalar_lea.vmem [#allocation2], 624
    %v583 = vld [vmem:[%s582] sm:$0xff]
    %v584 = vld [vmem:[%s582 + $0x8] sm:$0xff]
    %v585 = vld [vmem:[%s582 + $0x10] sm:$0xff]
    %v586 = vld [vmem:[%s582 + $0x18] sm:$0xff]
    %v587 = vld [vmem:[%s582 + $0x20] sm:$0xff]
    %v588 = vld [vmem:[%s582 + $0x28] sm:$0xff]
    %v589 = vld [vmem:[%s582 + $0x30] sm:$0xff]
    %v590 = vld [vmem:[%s582 + $0x38] sm:$0xff]
    %v591 = vld [vmem:[%s582 + $0x40] sm:$0xff]
    %v592 = vld [vmem:[%s582 + $0x48] sm:$0xff]
    %v593 = vld [vmem:[%s582 + $0x50] sm:$0xff]
    %v594 = vld [vmem:[%s582 + $0x58] sm:$0xff]
    %v595 = vld [vmem:[%s582 + $0x60] sm:$0xf]
    %v597 = vsel %vm42, %v581, 0
    %v600 = vsel %vm46, %v595, 0
    %602 = vmatprep.subr.mxu0 0.0
    %603 = vmatpush1.msra.mxu0 %v583
    %604 = vmatprep.subr.mxu0 0.0
    %605 = vmatpush1.msra.mxu0 %v584
    %606 = vmatprep.subr.mxu0 0.0
    %607 = vmatpush1.msra.mxu0 %v585
    %608 = vmatprep.subr.mxu0 0.0
    %609 = vmatpush1.msra.mxu0 %v586
    %610 = vmatprep.subr.mxu0 0.0
    %611 = vmatpush1.msra.mxu0 %v587
    %612 = vmatprep.subr.mxu0 0.0
    %613 = vmatpush1.msra.mxu0 %v588
    %614 = vmatprep.subr.mxu0 0.0
    %615 = vmatpush1.msra.mxu0 %v589
    %616 = vmatprep.subr.mxu0 0.0
    %617 = vmatpush1.msra.mxu0 %v590
    %618 = vmatprep.subr.mxu0 0.0
    %619 = vmatpush1.msra.mxu0 %v591
    %620 = vmatprep.subr.mxu0 0.0
    %621 = vmatpush1.msra.mxu0 %v592
    %622 = vmatprep.subr.mxu0 0.0
    %623 = vmatpush1.msra.mxu0 %v593
    %624 = vmatprep.subr.mxu0 0.0
    %625 = vmatpush1.msra.mxu0 %v594
    %626 = vmatprep.subr.mxu0 0.0
    %627 = vmatpush1.msra.mxu0 %v600
    %628 = vmatprep.subr.mxu0 0.0
    %629 = vmatpush1.msra.mxu0 0.0
    %630 = vmatprep.subr.mxu0 0.0
    %631 = vmatpush1.msra.mxu0 0.0
    %632 = vmatprep.subr.mxu0 0.0
    %633 = vmatpush1.msra.mxu0 0.0
    %634 = vmatprep.subr.mxu0 0.0
    %635 = vmatpush1.msra.mxu0 0.0
    %636 = vmatprep.subr.mxu0 0.0
    %637 = vmatpush1.msra.mxu0 0.0
    %638 = vmatprep.subr.mxu0 0.0
    %639 = vmatpush1.msra.mxu0 0.0
    %640 = vmatprep.subr.mxu0 0.0
    %641 = vmatpush1.msra.mxu0 0.0
    %642 = vmatprep.subr.mxu0 0.0
    %643 = vmatpush1.msra.mxu0 0.0
    %644 = vmatprep.subr.mxu0 0.0
    %645 = vmatpush1.msra.mxu0 0.0
    %646 = vmatprep.subr.mxu0 0.0
    %647 = vmatpush1.msra.mxu0 0.0
    %648 = vmatprep.subr.mxu0 0.0
    %649 = vmatpush1.msra.mxu0 0.0
    %650 = vmatprep.subr.mxu0 0.0
    %651 = vmatpush1.msra.mxu0 0.0
    %652 = vmatprep.subr.mxu0 0.0
    %653 = vmatpush1.msra.mxu0 0.0
    %654 = vmatprep.subr.mxu0 0.0
    %655 = vmatpush1.msra.mxu0 0.0
    %656 = vmatprep.subr.mxu0 0.0
    %657 = vmatpush1.msra.mxu0 0.0
    %658 = vmatprep.subr.mxu0 0.0
    %659 = vmatpush1.msra.mxu0 0.0
    %660 = vmatprep.subr.mxu0 0.0
    %661 = vmatpush1.msra.mxu0 0.0
    %662 = vmatprep.subr.mxu0 0.0
    %663 = vmatpush1.msra.mxu0 0.0
    %664 = vmatprep.subr.mxu0 0.0
    %665 = vmatpush1.msra.mxu0 0.0
    %666 = vmatprep.mubr.f32.mxu0 0.0
    %667 = vmatmul.mubr.f32.gmra.mrb[0].mxu0 %v597
    %v668 = vpop.f32.mrb[0].mxu0
    %v669 = vadd.f32 0.0, %v668
    %v670 = vpop.f32.mrb[0].mxu0
    %671 = vdwg.mxu0
    %s672 = scalar_lea.vmem %s0, 56
    %v673 = vld [vmem:[%s672] sm:$0xff]
    %s674 = scalar_lea.vmem [#allocation2], 728
    %v675 = vld [vmem:[%s674] sm:$0xff]
    %v676 = vld [vmem:[%s674 + $0x8] sm:$0xff]
    %v677 = vld [vmem:[%s674 + $0x10] sm:$0xff]
    %v678 = vld [vmem:[%s674 + $0x18] sm:$0xff]
    %v679 = vld [vmem:[%s674 + $0x20] sm:$0xff]
    %v680 = vld [vmem:[%s674 + $0x28] sm:$0xff]
    %v681 = vld [vmem:[%s674 + $0x30] sm:$0xff]
    %v682 = vld [vmem:[%s674 + $0x38] sm:$0xff]
    %v683 = vld [vmem:[%s674 + $0x40] sm:$0xff]
    %v684 = vld [vmem:[%s674 + $0x48] sm:$0xff]
    %v685 = vld [vmem:[%s674 + $0x50] sm:$0xff]
    %v686 = vld [vmem:[%s674 + $0x58] sm:$0xff]
    %v687 = vld [vmem:[%s674 + $0x60] sm:$0xf]
    %v689 = vsel %vm42, %v673, 0
    %v692 = vsel %vm46, %v687, 0
    %694 = vmatprep.subr.mxu0 0.0
    %695 = vmatpush1.msra.mxu0 %v675
    %696 = vmatprep.subr.mxu0 0.0
    %697 = vmatpush1.msra.mxu0 %v676
    %698 = vmatprep.subr.mxu0 0.0
    %699 = vmatpush1.msra.mxu0 %v677
    %700 = vmatprep.subr.mxu0 0.0
    %701 = vmatpush1.msra.mxu0 %v678
    %702 = vmatprep.subr.mxu0 0.0
    %703 = vmatpush1.msra.mxu0 %v679
    %704 = vmatprep.subr.mxu0 0.0
    %705 = vmatpush1.msra.mxu0 %v680
    %706 = vmatprep.subr.mxu0 0.0
    %707 = vmatpush1.msra.mxu0 %v681
    %708 = vmatprep.subr.mxu0 0.0
    %709 = vmatpush1.msra.mxu0 %v682
    %710 = vmatprep.subr.mxu0 0.0
    %711 = vmatpush1.msra.mxu0 %v683
    %712 = vmatprep.subr.mxu0 0.0
    %713 = vmatpush1.msra.mxu0 %v684
    %714 = vmatprep.subr.mxu0 0.0
    %715 = vmatpush1.msra.mxu0 %v685
    %716 = vmatprep.subr.mxu0 0.0
    %717 = vmatpush1.msra.mxu0 %v686
    %718 = vmatprep.subr.mxu0 0.0
    %719 = vmatpush1.msra.mxu0 %v692
    %720 = vmatprep.subr.mxu0 0.0
    %721 = vmatpush1.msra.mxu0 0.0
    %722 = vmatprep.subr.mxu0 0.0
    %723 = vmatpush1.msra.mxu0 0.0
    %724 = vmatprep.subr.mxu0 0.0
    %725 = vmatpush1.msra.mxu0 0.0
    %726 = vmatprep.subr.mxu0 0.0
    %727 = vmatpush1.msra.mxu0 0.0
    %728 = vmatprep.subr.mxu0 0.0
    %729 = vmatpush1.msra.mxu0 0.0
    %730 = vmatprep.subr.mxu0 0.0
    %731 = vmatpush1.msra.mxu0 0.0
    %732 = vmatprep.subr.mxu0 0.0
    %733 = vmatpush1.msra.mxu0 0.0
    %734 = vmatprep.subr.mxu0 0.0
    %735 = vmatpush1.msra.mxu0 0.0
    %736 = vmatprep.subr.mxu0 0.0
    %737 = vmatpush1.msra.mxu0 0.0
    %738 = vmatprep.subr.mxu0 0.0
    %739 = vmatpush1.msra.mxu0 0.0
    %740 = vmatprep.subr.mxu0 0.0
    %741 = vmatpush1.msra.mxu0 0.0
    %742 = vmatprep.subr.mxu0 0.0
    %743 = vmatpush1.msra.mxu0 0.0
    %744 = vmatprep.subr.mxu0 0.0
    %745 = vmatpush1.msra.mxu0 0.0
    %746 = vmatprep.subr.mxu0 0.0
    %747 = vmatpush1.msra.mxu0 0.0
    %748 = vmatprep.subr.mxu0 0.0
    %749 = vmatpush1.msra.mxu0 0.0
    %750 = vmatprep.subr.mxu0 0.0
    %751 = vmatpush1.msra.mxu0 0.0
    %752 = vmatprep.subr.mxu0 0.0
    %753 = vmatpush1.msra.mxu0 0.0
    %754 = vmatprep.subr.mxu0 0.0
    %755 = vmatpush1.msra.mxu0 0.0
    %756 = vmatprep.subr.mxu0 0.0
    %757 = vmatpush1.msra.mxu0 0.0
    %758 = vmatprep.mubr.f32.mxu0 0.0
    %759 = vmatmul.mubr.f32.gmra.mrb[0].mxu0 %v689
    %v760 = vpop.f32.mrb[0].mxu0
    %v761 = vadd.f32 0.0, %v760
    %v762 = vpop.f32.mrb[0].mxu0
    %763 = vdwg.mxu0
    %s764 = scalar_lea.vmem %s0, 64
    %v765 = vld [vmem:[%s764] sm:$0xff]
    %s766 = scalar_lea.vmem [#allocation2], 832
    %v767 = vld [vmem:[%s766] sm:$0xff]
    %v768 = vld [vmem:[%s766 + $0x8] sm:$0xff]
    %v769 = vld [vmem:[%s766 + $0x10] sm:$0xff]
    %v770 = vld [vmem:[%s766 + $0x18] sm:$0xff]
    %v771 = vld [vmem:[%s766 + $0x20] sm:$0xff]
    %v772 = vld [vmem:[%s766 + $0x28] sm:$0xff]
    %v773 = vld [vmem:[%s766 + $0x30] sm:$0xff]
    %v774 = vld [vmem:[%s766 + $0x38] sm:$0xff]
    %v775 = vld [vmem:[%s766 + $0x40] sm:$0xff]
    %v776 = vld [vmem:[%s766 + $0x48] sm:$0xff]
    %v777 = vld [vmem:[%s766 + $0x50] sm:$0xff]
    %v778 = vld [vmem:[%s766 + $0x58] sm:$0xff]
    %v779 = vld [vmem:[%s766 + $0x60] sm:$0xf]
    %v781 = vsel %vm42, %v765, 0
    %v784 = vsel %vm46, %v779, 0
    %786 = vmatprep.subr.mxu0 0.0
    %787 = vmatpush1.msra.mxu0 %v767
    %788 = vmatprep.subr.mxu0 0.0
    %789 = vmatpush1.msra.mxu0 %v768
    %790 = vmatprep.subr.mxu0 0.0
    %791 = vmatpush1.msra.mxu0 %v769
    %792 = vmatprep.subr.mxu0 0.0
    %793 = vmatpush1.msra.mxu0 %v770
    %794 = vmatprep.subr.mxu0 0.0
    %795 = vmatpush1.msra.mxu0 %v771
    %796 = vmatprep.subr.mxu0 0.0
    %797 = vmatpush1.msra.mxu0 %v772
    %798 = vmatprep.subr.mxu0 0.0
    %799 = vmatpush1.msra.mxu0 %v773
    %800 = vmatprep.subr.mxu0 0.0
    %801 = vmatpush1.msra.mxu0 %v774
    %802 = vmatprep.subr.mxu0 0.0
    %803 = vmatpush1.msra.mxu0 %v775
    %804 = vmatprep.subr.mxu0 0.0
    %805 = vmatpush1.msra.mxu0 %v776
    %806 = vmatprep.subr.mxu0 0.0
    %807 = vmatpush1.msra.mxu0 %v777
    %808 = vmatprep.subr.mxu0 0.0
    %809 = vmatpush1.msra.mxu0 %v778
    %810 = vmatprep.subr.mxu0 0.0
    %811 = vmatpush1.msra.mxu0 %v784
    %812 = vmatprep.subr.mxu0 0.0
    %813 = vmatpush1.msra.mxu0 0.0
    %814 = vmatprep.subr.mxu0 0.0
    %815 = vmatpush1.msra.mxu0 0.0
    %816 = vmatprep.subr.mxu0 0.0
    %817 = vmatpush1.msra.mxu0 0.0
    %818 = vmatprep.subr.mxu0 0.0
    %819 = vmatpush1.msra.mxu0 0.0
    %820 = vmatprep.subr.mxu0 0.0
    %821 = vmatpush1.msra.mxu0 0.0
    %822 = vmatprep.subr.mxu0 0.0
    %823 = vmatpush1.msra.mxu0 0.0
    %824 = vmatprep.subr.mxu0 0.0
    %825 = vmatpush1.msra.mxu0 0.0
    %826 = vmatprep.subr.mxu0 0.0
    %827 = vmatpush1.msra.mxu0 0.0
    %828 = vmatprep.subr.mxu0 0.0
    %829 = vmatpush1.msra.mxu0 0.0
    %830 = vmatprep.subr.mxu0 0.0
    %831 = vmatpush1.msra.mxu0 0.0
    %832 = vmatprep.subr.mxu0 0.0
    %833 = vmatpush1.msra.mxu0 0.0
    %834 = vmatprep.subr.mxu0 0.0
    %835 = vmatpush1.msra.mxu0 0.0
    %836 = vmatprep.subr.mxu0 0.0
    %837 = vmatpush1.msra.mxu0 0.0
    %838 = vmatprep.subr.mxu0 0.0
    %839 = vmatpush1.msra.mxu0 0.0
    %840 = vmatprep.subr.mxu0 0.0
    %841 = vmatpush1.msra.mxu0 0.0
    %842 = vmatprep.subr.mxu0 0.0
    %843 = vmatpush1.msra.mxu0 0.0
    %844 = vmatprep.subr.mxu0 0.0
    %845 = vmatpush1.msra.mxu0 0.0
    %846 = vmatprep.subr.mxu0 0.0
    %847 = vmatpush1.msra.mxu0 0.0
    %848 = vmatprep.subr.mxu0 0.0
    %849 = vmatpush1.msra.mxu0 0.0
    %850 = vmatprep.mubr.f32.mxu0 0.0
    %851 = vmatmul.mubr.f32.gmra.mrb[0].mxu0 %v781
    %v852 = vpop.f32.mrb[0].mxu0
    %v853 = vadd.f32 0.0, %v852
    %v854 = vpop.f32.mrb[0].mxu0
    %855 = vdwg.mxu0
    %s856 = scalar_lea.vmem %s0, 72
    %v857 = vld [vmem:[%s856] sm:$0xff]
    %s858 = scalar_lea.vmem [#allocation2], 936
    %v859 = vld [vmem:[%s858] sm:$0xff]
    %v860 = vld [vmem:[%s858 + $0x8] sm:$0xff]
    %v861 = vld [vmem:[%s858 + $0x10] sm:$0xff]
    %v862 = vld [vmem:[%s858 + $0x18] sm:$0xff]
    %v863 = vld [vmem:[%s858 + $0x20] sm:$0xff]
    %v864 = vld [vmem:[%s858 + $0x28] sm:$0xff]
    %v865 = vld [vmem:[%s858 + $0x30] sm:$0xff]
    %v866 = vld [vmem:[%s858 + $0x38] sm:$0xff]
    %v867 = vld [vmem:[%s858 + $0x40] sm:$0xff]
    %v868 = vld [vmem:[%s858 + $0x48] sm:$0xff]
    %v869 = vld [vmem:[%s858 + $0x50] sm:$0xff]
    %v870 = vld [vmem:[%s858 + $0x58] sm:$0xff]
    %v871 = vld [vmem:[%s858 + $0x60] sm:$0xf]
    %v873 = vsel %vm42, %v857, 0
    %v876 = vsel %vm46, %v871, 0
    %878 = vmatprep.subr.mxu0 0.0
    %879 = vmatpush1.msra.mxu0 %v859
    %880 = vmatprep.subr.mxu0 0.0
    %881 = vmatpush1.msra.mxu0 %v860
    %882 = vmatprep.subr.mxu0 0.0
    %883 = vmatpush1.msra.mxu0 %v861
    %884 = vmatprep.subr.mxu0 0.0
    %885 = vmatpush1.msra.mxu0 %v862
    %886 = vmatprep.subr.mxu0 0.0
    %887 = vmatpush1.msra.mxu0 %v863
    %888 = vmatprep.subr.mxu0 0.0
    %889 = vmatpush1.msra.mxu0 %v864
    %890 = vmatprep.subr.mxu0 0.0
    %891 = vmatpush1.msra.mxu0 %v865
    %892 = vmatprep.subr.mxu0 0.0
    %893 = vmatpush1.msra.mxu0 %v866
    %894 = vmatprep.subr.mxu0 0.0
    %895 = vmatpush1.msra.mxu0 %v867
    %896 = vmatprep.subr.mxu0 0.0
    %897 = vmatpush1.msra.mxu0 %v868
    %898 = vmatprep.subr.mxu0 0.0
    %899 = vmatpush1.msra.mxu0 %v869
    %900 = vmatprep.subr.mxu0 0.0
    %901 = vmatpush1.msra.mxu0 %v870
    %902 = vmatprep.subr.mxu0 0.0
    %903 = vmatpush1.msra.mxu0 %v876
    %904 = vmatprep.subr.mxu0 0.0
    %905 = vmatpush1.msra.mxu0 0.0
    %906 = vmatprep.subr.mxu0 0.0
    %907 = vmatpush1.msra.mxu0 0.0
    %908 = vmatprep.subr.mxu0 0.0
    %909 = vmatpush1.msra.mxu0 0.0
    %910 = vmatprep.subr.mxu0 0.0
    %911 = vmatpush1.msra.mxu0 0.0
    %912 = vmatprep.subr.mxu0 0.0
    %913 = vmatpush1.msra.mxu0 0.0
    %914 = vmatprep.subr.mxu0 0.0
    %915 = vmatpush1.msra.mxu0 0.0
    %916 = vmatprep.subr.mxu0 0.0
    %917 = vmatpush1.msra.mxu0 0.0
    %918 = vmatprep.subr.mxu0 0.0
    %919 = vmatpush1.msra.mxu0 0.0
    %920 = vmatprep.subr.mxu0 0.0
    %921 = vmatpush1.msra.mxu0 0.0
    %922 = vmatprep.subr.mxu0 0.0
    %923 = vmatpush1.msra.mxu0 0.0
    %924 = vmatprep.subr.mxu0 0.0
    %925 = vmatpush1.msra.mxu0 0.0
    %926 = vmatprep.subr.mxu0 0.0
    %927 = vmatpush1.msra.mxu0 0.0
    %928 = vmatprep.subr.mxu0 0.0
    %929 = vmatpush1.msra.mxu0 0.0
    %930 = vmatprep.subr.mxu0 0.0
    %931 = vmatpush1.msra.mxu0 0.0
    %932 = vmatprep.subr.mxu0 0.0
    %933 = vmatpush1.msra.mxu0 0.0
    %934 = vmatprep.subr.mxu0 0.0
    %935 = vmatpush1.msra.mxu0 0.0
    %936 = vmatprep.subr.mxu0 0.0
    %937 = vmatpush1.msra.mxu0 0.0
    %938 = vmatprep.subr.mxu0 0.0
    %939 = vmatpush1.msra.mxu0 0.0
    %940 = vmatprep.subr.mxu0 0.0
    %941 = vmatpush1.msra.mxu0 0.0
    %942 = vmatprep.mubr.f32.mxu0 0.0
    %943 = vmatmul.mubr.f32.gmra.mrb[0].mxu0 %v873
    %v944 = vpop.f32.mrb[0].mxu0
    %v945 = vadd.f32 0.0, %v944
    %v946 = vpop.f32.mrb[0].mxu0
    %947 = vdwg.mxu0
    %s948 = scalar_lea.vmem %s0, 80
    %v949 = vld [vmem:[%s948] sm:$0xff]
    %s950 = scalar_lea.vmem [#allocation2], 1040
    %v951 = vld [vmem:[%s950] sm:$0xff]
    %v952 = vld [vmem:[%s950 + $0x8] sm:$0xff]
    %v953 = vld [vmem:[%s950 + $0x10] sm:$0xff]
    %v954 = vld [vmem:[%s950 + $0x18] sm:$0xff]
    %v955 = vld [vmem:[%s950 + $0x20] sm:$0xff]
    %v956 = vld [vmem:[%s950 + $0x28] sm:$0xff]
    %v957 = vld [vmem:[%s950 + $0x30] sm:$0xff]
    %v958 = vld [vmem:[%s950 + $0x38] sm:$0xff]
    %v959 = vld [vmem:[%s950 + $0x40] sm:$0xff]
    %v960 = vld [vmem:[%s950 + $0x48] sm:$0xff]
    %v961 = vld [vmem:[%s950 + $0x50] sm:$0xff]
    %v962 = vld [vmem:[%s950 + $0x58] sm:$0xff]
    %v963 = vld [vmem:[%s950 + $0x60] sm:$0xf]
    %v965 = vsel %vm42, %v949, 0
    %v968 = vsel %vm46, %v963, 0
    %970 = vmatprep.subr.mxu0 0.0
    %971 = vmatpush1.msra.mxu0 %v951
    %972 = vmatprep.subr.mxu0 0.0
    %973 = vmatpush1.msra.mxu0 %v952
    %974 = vmatprep.subr.mxu0 0.0
    %975 = vmatpush1.msra.mxu0 %v953
    %976 = vmatprep.subr.mxu0 0.0
    %977 = vmatpush1.msra.mxu0 %v954
    %978 = vmatprep.subr.mxu0 0.0
    %979 = vmatpush1.msra.mxu0 %v955
    %980 = vmatprep.subr.mxu0 0.0
    %981 = vmatpush1.msra.mxu0 %v956
    %982 = vmatprep.subr.mxu0 0.0
    %983 = vmatpush1.msra.mxu0 %v957
    %984 = vmatprep.subr.mxu0 0.0
    %985 = vmatpush1.msra.mxu0 %v958
    %986 = vmatprep.subr.mxu0 0.0
    %987 = vmatpush1.msra.mxu0 %v959
    %988 = vmatprep.subr.mxu0 0.0
    %989 = vmatpush1.msra.mxu0 %v960
    %990 = vmatprep.subr.mxu0 0.0
    %991 = vmatpush1.msra.mxu0 %v961
    %992 = vmatprep.subr.mxu0 0.0
    %993 = vmatpush1.msra.mxu0 %v962
    %994 = vmatprep.subr.mxu0 0.0
    %995 = vmatpush1.msra.mxu0 %v968
    %996 = vmatprep.subr.mxu0 0.0
    %997 = vmatpush1.msra.mxu0 0.0
    %998 = vmatprep.subr.mxu0 0.0
    %999 = vmatpush1.msra.mxu0 0.0
    %1000 = vmatprep.subr.mxu0 0.0
    %1001 = vmatpush1.msra.mxu0 0.0
    %1002 = vmatprep.subr.mxu0 0.0
    %1003 = vmatpush1.msra.mxu0 0.0
    %1004 = vmatprep.subr.mxu0 0.0
    %1005 = vmatpush1.msra.mxu0 0.0
    %1006 = vmatprep.subr.mxu0 0.0
    %1007 = vmatpush1.msra.mxu0 0.0
    %1008 = vmatprep.subr.mxu0 0.0
    %1009 = vmatpush1.msra.mxu0 0.0
    %1010 = vmatprep.subr.mxu0 0.0
    %1011 = vmatpush1.msra.mxu0 0.0
    %1012 = vmatprep.subr.mxu0 0.0
    %1013 = vmatpush1.msra.mxu0 0.0
    %1014 = vmatprep.subr.mxu0 0.0
    %1015 = vmatpush1.msra.mxu0 0.0
    %1016 = vmatprep.subr.mxu0 0.0
    %1017 = vmatpush1.msra.mxu0 0.0
    %1018 = vmatprep.subr.mxu0 0.0
    %1019 = vmatpush1.msra.mxu0 0.0
    %1020 = vmatprep.subr.mxu0 0.0
    %1021 = vmatpush1.msra.mxu0 0.0
    %1022 = vmatprep.subr.mxu0 0.0
    %1023 = vmatpush1.msra.mxu0 0.0
    %1024 = vmatprep.subr.mxu0 0.0
    %1025 = vmatpush1.msra.mxu0 0.0
    %1026 = vmatprep.subr.mxu0 0.0
    %1027 = vmatpush1.msra.mxu0 0.0
    %1028 = vmatprep.subr.mxu0 0.0
    %1029 = vmatpush1.msra.mxu0 0.0
    %1030 = vmatprep.subr.mxu0 0.0
    %1031 = vmatpush1.msra.mxu0 0.0
    %1032 = vmatprep.subr.mxu0 0.0
    %1033 = vmatpush1.msra.mxu0 0.0
    %1034 = vmatprep.mubr.f32.mxu0 0.0
    %1035 = vmatmul.mubr.f32.gmra.mrb[0].mxu0 %v965
    %v1036 = vpop.f32.mrb[0].mxu0
    %v1037 = vadd.f32 0.0, %v1036
    %v1038 = vpop.f32.mrb[0].mxu0
    %1039 = vdwg.mxu0
    %s1040 = scalar_lea.vmem %s0, 88
    %v1041 = vld [vmem:[%s1040] sm:$0xff]
    %s1042 = scalar_lea.vmem [#allocation2], 1144
    %v1043 = vld [vmem:[%s1042] sm:$0xff]
    %v1044 = vld [vmem:[%s1042 + $0x8] sm:$0xff]
    %v1045 = vld [vmem:[%s1042 + $0x10] sm:$0xff]
    %v1046 = vld [vmem:[%s1042 + $0x18] sm:$0xff]
    %v1047 = vld [vmem:[%s1042 + $0x20] sm:$0xff]
    %v1048 = vld [vmem:[%s1042 + $0x28] sm:$0xff]
    %v1049 = vld [vmem:[%s1042 + $0x30] sm:$0xff]
    %v1050 = vld [vmem:[%s1042 + $0x38] sm:$0xff]
    %v1051 = vld [vmem:[%s1042 + $0x40] sm:$0xff]
    %v1052 = vld [vmem:[%s1042 + $0x48] sm:$0xff]
    %v1053 = vld [vmem:[%s1042 + $0x50] sm:$0xff]
    %v1054 = vld [vmem:[%s1042 + $0x58] sm:$0xff]
    %v1055 = vld [vmem:[%s1042 + $0x60] sm:$0xf]
    %v1057 = vsel %vm42, %v1041, 0
    %v1060 = vsel %vm46, %v1055, 0
    %1062 = vmatprep.subr.mxu0 0.0
    %1063 = vmatpush1.msra.mxu0 %v1043
    %1064 = vmatprep.subr.mxu0 0.0
    %1065 = vmatpush1.msra.mxu0 %v1044
    %1066 = vmatprep.subr.mxu0 0.0
    %1067 = vmatpush1.msra.mxu0 %v1045
    %1068 = vmatprep.subr.mxu0 0.0
    %1069 = vmatpush1.msra.mxu0 %v1046
    %1070 = vmatprep.subr.mxu0 0.0
    %1071 = vmatpush1.msra.mxu0 %v1047
    %1072 = vmatprep.subr.mxu0 0.0
    %1073 = vmatpush1.msra.mxu0 %v1048
    %1074 = vmatprep.subr.mxu0 0.0
    %1075 = vmatpush1.msra.mxu0 %v1049
    %1076 = vmatprep.subr.mxu0 0.0
    %1077 = vmatpush1.msra.mxu0 %v1050
    %1078 = vmatprep.subr.mxu0 0.0
    %1079 = vmatpush1.msra.mxu0 %v1051
    %1080 = vmatprep.subr.mxu0 0.0
    %1081 = vmatpush1.msra.mxu0 %v1052
    %1082 = vmatprep.subr.mxu0 0.0
    %1083 = vmatpush1.msra.mxu0 %v1053
    %1084 = vmatprep.subr.mxu0 0.0
    %1085 = vmatpush1.msra.mxu0 %v1054
    %1086 = vmatprep.subr.mxu0 0.0
    %1087 = vmatpush1.msra.mxu0 %v1060
    %1088 = vmatprep.subr.mxu0 0.0
    %1089 = vmatpush1.msra.mxu0 0.0
    %1090 = vmatprep.subr.mxu0 0.0
    %1091 = vmatpush1.msra.mxu0 0.0
    %1092 = vmatprep.subr.mxu0 0.0
    %1093 = vmatpush1.msra.mxu0 0.0
    %1094 = vmatprep.subr.mxu0 0.0
    %1095 = vmatpush1.msra.mxu0 0.0
    %1096 = vmatprep.subr.mxu0 0.0
    %1097 = vmatpush1.msra.mxu0 0.0
    %1098 = vmatprep.subr.mxu0 0.0
    %1099 = vmatpush1.msra.mxu0 0.0
    %1100 = vmatprep.subr.mxu0 0.0
    %1101 = vmatpush1.msra.mxu0 0.0
    %1102 = vmatprep.subr.mxu0 0.0
    %1103 = vmatpush1.msra.mxu0 0.0
    %1104 = vmatprep.subr.mxu0 0.0
    %1105 = vmatpush1.msra.mxu0 0.0
    %1106 = vmatprep.subr.mxu0 0.0
    %1107 = vmatpush1.msra.mxu0 0.0
    %1108 = vmatprep.subr.mxu0 0.0
    %1109 = vmatpush1.msra.mxu0 0.0
    %1110 = vmatprep.subr.mxu0 0.0
    %1111 = vmatpush1.msra.mxu0 0.0
    %1112 = vmatprep.subr.mxu0 0.0
    %1113 = vmatpush1.msra.mxu0 0.0
    %1114 = vmatprep.subr.mxu0 0.0
    %1115 = vmatpush1.msra.mxu0 0.0
    %1116 = vmatprep.subr.mxu0 0.0
    %1117 = vmatpush1.msra.mxu0 0.0
    %1118 = vmatprep.subr.mxu0 0.0
    %1119 = vmatpush1.msra.mxu0 0.0
    %1120 = vmatprep.subr.mxu0 0.0
    %1121 = vmatpush1.msra.mxu0 0.0
    %1122 = vmatprep.subr.mxu0 0.0
    %1123 = vmatpush1.msra.mxu0 0.0
    %1124 = vmatprep.subr.mxu0 0.0
    %1125 = vmatpush1.msra.mxu0 0.0
    %1126 = vmatprep.mubr.f32.mxu0 0.0
    %1127 = vmatmul.mubr.f32.gmra.mrb[0].mxu0 %v1057
    %v1128 = vpop.f32.mrb[0].mxu0
    %v1129 = vadd.f32 0.0, %v1128
    %v1130 = vpop.f32.mrb[0].mxu0
    %1131 = vdwg.mxu0
    %s1132 = scalar_lea.vmem %s0, 96
    %v1133 = vld [vmem:[%s1132] sm:$0xff]
    %s1134 = scalar_lea.vmem [#allocation2], 1248
    %v1135 = vld [vmem:[%s1134] sm:$0xff]
    %v1136 = vld [vmem:[%s1134 + $0x8] sm:$0xff]
    %v1137 = vld [vmem:[%s1134 + $0x10] sm:$0xff]
    %v1138 = vld [vmem:[%s1134 + $0x18] sm:$0xff]
    %v1139 = vld [vmem:[%s1134 + $0x20] sm:$0xff]
    %v1140 = vld [vmem:[%s1134 + $0x28] sm:$0xff]
    %v1141 = vld [vmem:[%s1134 + $0x30] sm:$0xff]
    %v1142 = vld [vmem:[%s1134 + $0x38] sm:$0xff]
    %v1143 = vld [vmem:[%s1134 + $0x40] sm:$0xff]
    %v1144 = vld [vmem:[%s1134 + $0x48] sm:$0xff]
    %v1145 = vld [vmem:[%s1134 + $0x50] sm:$0xff]
    %v1146 = vld [vmem:[%s1134 + $0x58] sm:$0xff]
    %v1147 = vld [vmem:[%s1134 + $0x60] sm:$0xf]
    %v1149 = vsel %vm42, %v1133, 0
    %v1152 = vsel %vm46, %v1147, 0
    %1154 = vmatprep.subr.mxu0 0.0
    %1155 = vmatpush1.msra.mxu0 %v1135
    %1156 = vmatprep.subr.mxu0 0.0
    %1157 = vmatpush1.msra.mxu0 %v1136
    %1158 = vmatprep.subr.mxu0 0.0
    %1159 = vmatpush1.msra.mxu0 %v1137
    %1160 = vmatprep.subr.mxu0 0.0
    %1161 = vmatpush1.msra.mxu0 %v1138
    %1162 = vmatprep.subr.mxu0 0.0
    %1163 = vmatpush1.msra.mxu0 %v1139
    %1164 = vmatprep.subr.mxu0 0.0
    %1165 = vmatpush1.msra.mxu0 %v1140
    %1166 = vmatprep.subr.mxu0 0.0
    %1167 = vmatpush1.msra.mxu0 %v1141
    %1168 = vmatprep.subr.mxu0 0.0
    %1169 = vmatpush1.msra.mxu0 %v1142
    %1170 = vmatprep.subr.mxu0 0.0
    %1171 = vmatpush1.msra.mxu0 %v1143
    %1172 = vmatprep.subr.mxu0 0.0
    %1173 = vmatpush1.msra.mxu0 %v1144
    %1174 = vmatprep.subr.mxu0 0.0
    %1175 = vmatpush1.msra.mxu0 %v1145
    %1176 = vmatprep.subr.mxu0 0.0
    %1177 = vmatpush1.msra.mxu0 %v1146
    %1178 = vmatprep.subr.mxu0 0.0
    %1179 = vmatpush1.msra.mxu0 %v1152
    %1180 = vmatprep.subr.mxu0 0.0
    %1181 = vmatpush1.msra.mxu0 0.0
    %1182 = vmatprep.subr.mxu0 0.0
    %1183 = vmatpush1.msra.mxu0 0.0
    %1184 = vmatprep.subr.mxu0 0.0
    %1185 = vmatpush1.msra.mxu0 0.0
    %1186 = vmatprep.subr.mxu0 0.0
    %1187 = vmatpush1.msra.mxu0 0.0
    %1188 = vmatprep.subr.mxu0 0.0
    %1189 = vmatpush1.msra.mxu0 0.0
    %1190 = vmatprep.subr.mxu0 0.0
    %1191 = vmatpush1.msra.mxu0 0.0
    %1192 = vmatprep.subr.mxu0 0.0
    %1193 = vmatpush1.msra.mxu0 0.0
    %1194 = vmatprep.subr.mxu0 0.0
    %1195 = vmatpush1.msra.mxu0 0.0
    %1196 = vmatprep.subr.mxu0 0.0
    %1197 = vmatpush1.msra.mxu0 0.0
    %1198 = vmatprep.subr.mxu0 0.0
    %1199 = vmatpush1.msra.mxu0 0.0
    %1200 = vmatprep.subr.mxu0 0.0
    %1201 = vmatpush1.msra.mxu0 0.0
    %1202 = vmatprep.subr.mxu0 0.0
    %1203 = vmatpush1.msra.mxu0 0.0
    %1204 = vmatprep.subr.mxu0 0.0
    %1205 = vmatpush1.msra.mxu0 0.0
    %1206 = vmatprep.subr.mxu0 0.0
    %1207 = vmatpush1.msra.mxu0 0.0
    %1208 = vmatprep.subr.mxu0 0.0
    %1209 = vmatpush1.msra.mxu0 0.0
    %1210 = vmatprep.subr.mxu0 0.0
    %1211 = vmatpush1.msra.mxu0 0.0
    %1212 = vmatprep.subr.mxu0 0.0
    %1213 = vmatpush1.msra.mxu0 0.0
    %1214 = vmatprep.subr.mxu0 0.0
    %1215 = vmatpush1.msra.mxu0 0.0
    %1216 = vmatprep.subr.mxu0 0.0
    %1217 = vmatpush1.msra.mxu0 0.0
    %1218 = vmatprep.mubr.f32.mxu0 0.0
    %1219 = vmatmul.mubr.f32.gmra.mrb[0].mxu0 %v1149
    %v1220 = vpop.f32.mrb[0].mxu0
    %v1221 = vadd.f32 0.0, %v1220
    %v1222 = vpop.f32.mrb[0].mxu0
    %1223 = vdwg.mxu0
    %s1224 = scalar_lea.vmem %s0, 104
    %v1225 = vld [vmem:[%s1224] sm:$0xff]
    %s1226 = scalar_lea.vmem [#allocation2], 1352
    %v1227 = vld [vmem:[%s1226] sm:$0xff]
    %v1228 = vld [vmem:[%s1226 + $0x8] sm:$0xff]
    %v1229 = vld [vmem:[%s1226 + $0x10] sm:$0xff]
    %v1230 = vld [vmem:[%s1226 + $0x18] sm:$0xff]
    %v1231 = vld [vmem:[%s1226 + $0x20] sm:$0xff]
    %v1232 = vld [vmem:[%s1226 + $0x28] sm:$0xff]
    %v1233 = vld [vmem:[%s1226 + $0x30] sm:$0xff]
    %v1234 = vld [vmem:[%s1226 + $0x38] sm:$0xff]
    %v1235 = vld [vmem:[%s1226 + $0x40] sm:$0xff]
    %v1236 = vld [vmem:[%s1226 + $0x48] sm:$0xff]
    %v1237 = vld [vmem:[%s1226 + $0x50] sm:$0xff]
    %v1238 = vld [vmem:[%s1226 + $0x58] sm:$0xff]
    %v1239 = vld [vmem:[%s1226 + $0x60] sm:$0xf]
    %v1241 = vsel %vm42, %v1225, 0
    %v1244 = vsel %vm46, %v1239, 0
    %1246 = vmatprep.subr.mxu0 0.0
    %1247 = vmatpush1.msra.mxu0 %v1227
    %1248 = vmatprep.subr.mxu0 0.0
    %1249 = vmatpush1.msra.mxu0 %v1228
    %1250 = vmatprep.subr.mxu0 0.0
    %1251 = vmatpush1.msra.mxu0 %v1229
    %1252 = vmatprep.subr.mxu0 0.0
    %1253 = vmatpush1.msra.mxu0 %v1230
    %1254 = vmatprep.subr.mxu0 0.0
    %1255 = vmatpush1.msra.mxu0 %v1231
    %1256 = vmatprep.subr.mxu0 0.0
    %1257 = vmatpush1.msra.mxu0 %v1232
    %1258 = vmatprep.subr.mxu0 0.0
    %1259 = vmatpush1.msra.mxu0 %v1233
    %1260 = vmatprep.subr.mxu0 0.0
    %1261 = vmatpush1.msra.mxu0 %v1234
    %1262 = vmatprep.subr.mxu0 0.0
    %1263 = vmatpush1.msra.mxu0 %v1235
    %1264 = vmatprep.subr.mxu0 0.0
    %1265 = vmatpush1.msra.mxu0 %v1236
    %1266 = vmatprep.subr.mxu0 0.0
    %1267 = vmatpush1.msra.mxu0 %v1237
    %1268 = vmatprep.subr.mxu0 0.0
    %1269 = vmatpush1.msra.mxu0 %v1238
    %1270 = vmatprep.subr.mxu0 0.0
    %1271 = vmatpush1.msra.mxu0 %v1244
    %1272 = vmatprep.subr.mxu0 0.0
    %1273 = vmatpush1.msra.mxu0 0.0
    %1274 = vmatprep.subr.mxu0 0.0
    %1275 = vmatpush1.msra.mxu0 0.0
    %1276 = vmatprep.subr.mxu0 0.0
    %1277 = vmatpush1.msra.mxu0 0.0
    %1278 = vmatprep.subr.mxu0 0.0
    %1279 = vmatpush1.msra.mxu0 0.0
    %1280 = vmatprep.subr.mxu0 0.0
    %1281 = vmatpush1.msra.mxu0 0.0
    %1282 = vmatprep.subr.mxu0 0.0
    %1283 = vmatpush1.msra.mxu0 0.0
    %1284 = vmatprep.subr.mxu0 0.0
    %1285 = vmatpush1.msra.mxu0 0.0
    %1286 = vmatprep.subr.mxu0 0.0
    %1287 = vmatpush1.msra.mxu0 0.0
    %1288 = vmatprep.subr.mxu0 0.0
    %1289 = vmatpush1.msra.mxu0 0.0
    %1290 = vmatprep.subr.mxu0 0.0
    %1291 = vmatpush1.msra.mxu0 0.0
    %1292 = vmatprep.subr.mxu0 0.0
    %1293 = vmatpush1.msra.mxu0 0.0
    %1294 = vmatprep.subr.mxu0 0.0
    %1295 = vmatpush1.msra.mxu0 0.0
    %1296 = vmatprep.subr.mxu0 0.0
    %1297 = vmatpush1.msra.mxu0 0.0
    %1298 = vmatprep.subr.mxu0 0.0
    %1299 = vmatpush1.msra.mxu0 0.0
    %1300 = vmatprep.subr.mxu0 0.0
    %1301 = vmatpush1.msra.mxu0 0.0
    %1302 = vmatprep.subr.mxu0 0.0
    %1303 = vmatpush1.msra.mxu0 0.0
    %1304 = vmatprep.subr.mxu0 0.0
    %1305 = vmatpush1.msra.mxu0 0.0
    %1306 = vmatprep.subr.mxu0 0.0
    %1307 = vmatpush1.msra.mxu0 0.0
    %1308 = vmatprep.subr.mxu0 0.0
    %1309 = vmatpush1.msra.mxu0 0.0
    %1310 = vmatprep.mubr.f32.mxu0 0.0
    %1311 = vmatmul.mubr.f32.gmra.mrb[0].mxu0 %v1241
    %v1312 = vpop.f32.mrb[0].mxu0
    %v1313 = vadd.f32 0.0, %v1312
    %v1314 = vpop.f32.mrb[0].mxu0
    %1315 = vdwg.mxu0
    %s1316 = scalar_lea.vmem %s0, 112
    %v1317 = vld [vmem:[%s1316] sm:$0xff]
    %s1318 = scalar_lea.vmem [#allocation2], 1456
    %v1319 = vld [vmem:[%s1318] sm:$0xff]
    %v1320 = vld [vmem:[%s1318 + $0x8] sm:$0xff]
    %v1321 = vld [vmem:[%s1318 + $0x10] sm:$0xff]
    %v1322 = vld [vmem:[%s1318 + $0x18] sm:$0xff]
    %v1323 = vld [vmem:[%s1318 + $0x20] sm:$0xff]
    %v1324 = vld [vmem:[%s1318 + $0x28] sm:$0xff]
    %v1325 = vld [vmem:[%s1318 + $0x30] sm:$0xff]
    %v1326 = vld [vmem:[%s1318 + $0x38] sm:$0xff]
    %v1327 = vld [vmem:[%s1318 + $0x40] sm:$0xff]
    %v1328 = vld [vmem:[%s1318 + $0x48] sm:$0xff]
    %v1329 = vld [vmem:[%s1318 + $0x50] sm:$0xff]
    %v1330 = vld [vmem:[%s1318 + $0x58] sm:$0xff]
    %v1331 = vld [vmem:[%s1318 + $0x60] sm:$0xf]
    %v1333 = vsel %vm42, %v1317, 0
    %v1336 = vsel %vm46, %v1331, 0
    %1338 = vmatprep.subr.mxu0 0.0
    %1339 = vmatpush1.msra.mxu0 %v1319
    %1340 = vmatprep.subr.mxu0 0.0
    %1341 = vmatpush1.msra.mxu0 %v1320
    %1342 = vmatprep.subr.mxu0 0.0
    %1343 = vmatpush1.msra.mxu0 %v1321
    %1344 = vmatprep.subr.mxu0 0.0
    %1345 = vmatpush1.msra.mxu0 %v1322
    %1346 = vmatprep.subr.mxu0 0.0
    %1347 = vmatpush1.msra.mxu0 %v1323
    %1348 = vmatprep.subr.mxu0 0.0
    %1349 = vmatpush1.msra.mxu0 %v1324
    %1350 = vmatprep.subr.mxu0 0.0
    %1351 = vmatpush1.msra.mxu0 %v1325
    %1352 = vmatprep.subr.mxu0 0.0
    %1353 = vmatpush1.msra.mxu0 %v1326
    %1354 = vmatprep.subr.mxu0 0.0
    %1355 = vmatpush1.msra.mxu0 %v1327
    %1356 = vmatprep.subr.mxu0 0.0
    %1357 = vmatpush1.msra.mxu0 %v1328
    %1358 = vmatprep.subr.mxu0 0.0
    %1359 = vmatpush1.msra.mxu0 %v1329
    %1360 = vmatprep.subr.mxu0 0.0
    %1361 = vmatpush1.msra.mxu0 %v1330
    %1362 = vmatprep.subr.mxu0 0.0
    %1363 = vmatpush1.msra.mxu0 %v1336
    %1364 = vmatprep.subr.mxu0 0.0
    %1365 = vmatpush1.msra.mxu0 0.0
    %1366 = vmatprep.subr.mxu0 0.0
    %1367 = vmatpush1.msra.mxu0 0.0
    %1368 = vmatprep.subr.mxu0 0.0
    %1369 = vmatpush1.msra.mxu0 0.0
    %1370 = vmatprep.subr.mxu0 0.0
    %1371 = vmatpush1.msra.mxu0 0.0
    %1372 = vmatprep.subr.mxu0 0.0
    %1373 = vmatpush1.msra.mxu0 0.0
    %1374 = vmatprep.subr.mxu0 0.0
    %1375 = vmatpush1.msra.mxu0 0.0
    %1376 = vmatprep.subr.mxu0 0.0
    %1377 = vmatpush1.msra.mxu0 0.0
    %1378 = vmatprep.subr.mxu0 0.0
    %1379 = vmatpush1.msra.mxu0 0.0
    %1380 = vmatprep.subr.mxu0 0.0
    %1381 = vmatpush1.msra.mxu0 0.0
    %1382 = vmatprep.subr.mxu0 0.0
    %1383 = vmatpush1.msra.mxu0 0.0
    %1384 = vmatprep.subr.mxu0 0.0
    %1385 = vmatpush1.msra.mxu0 0.0
    %1386 = vmatprep.subr.mxu0 0.0
    %1387 = vmatpush1.msra.mxu0 0.0
    %1388 = vmatprep.subr.mxu0 0.0
    %1389 = vmatpush1.msra.mxu0 0.0
    %1390 = vmatprep.subr.mxu0 0.0
    %1391 = vmatpush1.msra.mxu0 0.0
    %1392 = vmatprep.subr.mxu0 0.0
    %1393 = vmatpush1.msra.mxu0 0.0
    %1394 = vmatprep.subr.mxu0 0.0
    %1395 = vmatpush1.msra.mxu0 0.0
    %1396 = vmatprep.subr.mxu0 0.0
    %1397 = vmatpush1.msra.mxu0 0.0
    %1398 = vmatprep.subr.mxu0 0.0
    %1399 = vmatpush1.msra.mxu0 0.0
    %1400 = vmatprep.subr.mxu0 0.0
    %1401 = vmatpush1.msra.mxu0 0.0
    %1402 = vmatprep.mubr.f32.mxu0 0.0
    %1403 = vmatmul.mubr.f32.gmra.mrb[0].mxu0 %v1333
    %v1404 = vpop.f32.mrb[0].mxu0
    %v1405 = vadd.f32 0.0, %v1404
    %v1406 = vpop.f32.mrb[0].mxu0
    %1407 = vdwg.mxu0
    %s1408 = scalar_lea.vmem %s0, 120
    %v1409 = vld [vmem:[%s1408] sm:$0xff]
    %s1410 = scalar_lea.vmem [#allocation2], 1560
    %v1411 = vld [vmem:[%s1410] sm:$0xff]
    %v1412 = vld [vmem:[%s1410 + $0x8] sm:$0xff]
    %v1413 = vld [vmem:[%s1410 + $0x10] sm:$0xff]
    %v1414 = vld [vmem:[%s1410 + $0x18] sm:$0xff]
    %v1415 = vld [vmem:[%s1410 + $0x20] sm:$0xff]
    %v1416 = vld [vmem:[%s1410 + $0x28] sm:$0xff]
    %v1417 = vld [vmem:[%s1410 + $0x30] sm:$0xff]
    %v1418 = vld [vmem:[%s1410 + $0x38] sm:$0xff]
    %v1419 = vld [vmem:[%s1410 + $0x40] sm:$0xff]
    %v1420 = vld [vmem:[%s1410 + $0x48] sm:$0xff]
    %v1421 = vld [vmem:[%s1410 + $0x50] sm:$0xff]
    %v1422 = vld [vmem:[%s1410 + $0x58] sm:$0xff]
    %v1423 = vld [vmem:[%s1410 + $0x60] sm:$0xf]
    %v1425 = vsel %vm42, %v1409, 0
    %v1428 = vsel %vm46, %v1423, 0
    %1430 = vmatprep.subr.mxu0 0.0
    %1431 = vmatpush1.msra.mxu0 %v1411
    %1432 = vmatprep.subr.mxu0 0.0
    %1433 = vmatpush1.msra.mxu0 %v1412
    %1434 = vmatprep.subr.mxu0 0.0
    %1435 = vmatpush1.msra.mxu0 %v1413
    %1436 = vmatprep.subr.mxu0 0.0
    %1437 = vmatpush1.msra.mxu0 %v1414
    %1438 = vmatprep.subr.mxu0 0.0
    %1439 = vmatpush1.msra.mxu0 %v1415
    %1440 = vmatprep.subr.mxu0 0.0
    %1441 = vmatpush1.msra.mxu0 %v1416
    %1442 = vmatprep.subr.mxu0 0.0
    %1443 = vmatpush1.msra.mxu0 %v1417
    %1444 = vmatprep.subr.mxu0 0.0
    %1445 = vmatpush1.msra.mxu0 %v1418
    %1446 = vmatprep.subr.mxu0 0.0
    %1447 = vmatpush1.msra.mxu0 %v1419
    %1448 = vmatprep.subr.mxu0 0.0
    %1449 = vmatpush1.msra.mxu0 %v1420
    %1450 = vmatprep.subr.mxu0 0.0
    %1451 = vmatpush1.msra.mxu0 %v1421
    %1452 = vmatprep.subr.mxu0 0.0
    %1453 = vmatpush1.msra.mxu0 %v1422
    %1454 = vmatprep.subr.mxu0 0.0
    %1455 = vmatpush1.msra.mxu0 %v1428
    %1456 = vmatprep.subr.mxu0 0.0
    %1457 = vmatpush1.msra.mxu0 0.0
    %1458 = vmatprep.subr.mxu0 0.0
    %1459 = vmatpush1.msra.mxu0 0.0
    %1460 = vmatprep.subr.mxu0 0.0
    %1461 = vmatpush1.msra.mxu0 0.0
    %1462 = vmatprep.subr.mxu0 0.0
    %1463 = vmatpush1.msra.mxu0 0.0
    %1464 = vmatprep.subr.mxu0 0.0
    %1465 = vmatpush1.msra.mxu0 0.0
    %1466 = vmatprep.subr.mxu0 0.0
    %1467 = vmatpush1.msra.mxu0 0.0
    %1468 = vmatprep.subr.mxu0 0.0
    %1469 = vmatpush1.msra.mxu0 0.0
    %1470 = vmatprep.subr.mxu0 0.0
    %1471 = vmatpush1.msra.mxu0 0.0
    %1472 = vmatprep.subr.mxu0 0.0
    %1473 = vmatpush1.msra.mxu0 0.0
    %1474 = vmatprep.subr.mxu0 0.0
    %1475 = vmatpush1.msra.mxu0 0.0
    %1476 = vmatprep.subr.mxu0 0.0
    %1477 = vmatpush1.msra.mxu0 0.0
    %1478 = vmatprep.subr.mxu0 0.0
    %1479 = vmatpush1.msra.mxu0 0.0
    %1480 = vmatprep.subr.mxu0 0.0
    %1481 = vmatpush1.msra.mxu0 0.0
    %1482 = vmatprep.subr.mxu0 0.0
    %1483 = vmatpush1.msra.mxu0 0.0
    %1484 = vmatprep.subr.mxu0 0.0
    %1485 = vmatpush1.msra.mxu0 0.0
    %1486 = vmatprep.subr.mxu0 0.0
    %1487 = vmatpush1.msra.mxu0 0.0
    %1488 = vmatprep.subr.mxu0 0.0
    %1489 = vmatpush1.msra.mxu0 0.0
    %1490 = vmatprep.subr.mxu0 0.0
    %1491 = vmatpush1.msra.mxu0 0.0
    %1492 = vmatprep.subr.mxu0 0.0
    %1493 = vmatpush1.msra.mxu0 0.0
    %1494 = vmatprep.mubr.f32.mxu0 0.0
    %1495 = vmatmul.mubr.f32.gmra.mrb[0].mxu0 %v1425
    %v1496 = vpop.f32.mrb[0].mxu0
    %v1497 = vadd.f32 0.0, %v1496
    %v1498 = vpop.f32.mrb[0].mxu0
    %1499 = vdwg.mxu0
    %s1500 = scalar_lea.vmem %s0, 128
    %v1501 = vld [vmem:[%s1500] sm:$0xff]
    %s1502 = scalar_lea.vmem [#allocation2], 1664
    %v1503 = vld [vmem:[%s1502] sm:$0xff]
    %v1504 = vld [vmem:[%s1502 + $0x8] sm:$0xff]
    %v1505 = vld [vmem:[%s1502 + $0x10] sm:$0xff]
    %v1506 = vld [vmem:[%s1502 + $0x18] sm:$0xff]
    %v1507 = vld [vmem:[%s1502 + $0x20] sm:$0xff]
    %v1508 = vld [vmem:[%s1502 + $0x28] sm:$0xff]
    %v1509 = vld [vmem:[%s1502 + $0x30] sm:$0xff]
    %v1510 = vld [vmem:[%s1502 + $0x38] sm:$0xff]
    %v1511 = vld [vmem:[%s1502 + $0x40] sm:$0xff]
    %v1512 = vld [vmem:[%s1502 + $0x48] sm:$0xff]
    %v1513 = vld [vmem:[%s1502 + $0x50] sm:$0xff]
    %v1514 = vld [vmem:[%s1502 + $0x58] sm:$0xff]
    %v1515 = vld [vmem:[%s1502 + $0x60] sm:$0xf]
    %v1517 = vsel %vm42, %v1501, 0
    %v1520 = vsel %vm46, %v1515, 0
    %1522 = vmatprep.subr.mxu0 0.0
    %1523 = vmatpush1.msra.mxu0 %v1503
    %1524 = vmatprep.subr.mxu0 0.0
    %1525 = vmatpush1.msra.mxu0 %v1504
    %1526 = vmatprep.subr.mxu0 0.0
    %1527 = vmatpush1.msra.mxu0 %v1505
    %1528 = vmatprep.subr.mxu0 0.0
    %1529 = vmatpush1.msra.mxu0 %v1506
    %1530 = vmatprep.subr.mxu0 0.0
    %1531 = vmatpush1.msra.mxu0 %v1507
    %1532 = vmatprep.subr.mxu0 0.0
    %1533 = vmatpush1.msra.mxu0 %v1508
    %1534 = vmatprep.subr.mxu0 0.0
    %1535 = vmatpush1.msra.mxu0 %v1509
    %1536 = vmatprep.subr.mxu0 0.0
    %1537 = vmatpush1.msra.mxu0 %v1510
    %1538 = vmatprep.subr.mxu0 0.0
    %1539 = vmatpush1.msra.mxu0 %v1511
    %1540 = vmatprep.subr.mxu0 0.0
    %1541 = vmatpush1.msra.mxu0 %v1512
    %1542 = vmatprep.subr.mxu0 0.0
    %1543 = vmatpush1.msra.mxu0 %v1513
    %1544 = vmatprep.subr.mxu0 0.0
    %1545 = vmatpush1.msra.mxu0 %v1514
    %1546 = vmatprep.subr.mxu0 0.0
    %1547 = vmatpush1.msra.mxu0 %v1520
    %1548 = vmatprep.subr.mxu0 0.0
    %1549 = vmatpush1.msra.mxu0 0.0
    %1550 = vmatprep.subr.mxu0 0.0
    %1551 = vmatpush1.msra.mxu0 0.0
    %1552 = vmatprep.subr.mxu0 0.0
    %1553 = vmatpush1.msra.mxu0 0.0
    %1554 = vmatprep.subr.mxu0 0.0
    %1555 = vmatpush1.msra.mxu0 0.0
    %1556 = vmatprep.subr.mxu0 0.0
    %1557 = vmatpush1.msra.mxu0 0.0
    %1558 = vmatprep.subr.mxu0 0.0
    %1559 = vmatpush1.msra.mxu0 0.0
    %1560 = vmatprep.subr.mxu0 0.0
    %1561 = vmatpush1.msra.mxu0 0.0
    %1562 = vmatprep.subr.mxu0 0.0
    %1563 = vmatpush1.msra.mxu0 0.0
    %1564 = vmatprep.subr.mxu0 0.0
    %1565 = vmatpush1.msra.mxu0 0.0
    %1566 = vmatprep.subr.mxu0 0.0
    %1567 = vmatpush1.msra.mxu0 0.0
    %1568 = vmatprep.subr.mxu0 0.0
    %1569 = vmatpush1.msra.mxu0 0.0
    %1570 = vmatprep.subr.mxu0 0.0
    %1571 = vmatpush1.msra.mxu0 0.0
    %1572 = vmatprep.subr.mxu0 0.0
    %1573 = vmatpush1.msra.mxu0 0.0
    %1574 = vmatprep.subr.mxu0 0.0
    %1575 = vmatpush1.msra.mxu0 0.0
    %1576 = vmatprep.subr.mxu0 0.0
    %1577 = vmatpush1.msra.mxu0 0.0
    %1578 = vmatprep.subr.mxu0 0.0
    %1579 = vmatpush1.msra.mxu0 0.0
    %1580 = vmatprep.subr.mxu0 0.0
    %1581 = vmatpush1.msra.mxu0 0.0
    %1582 = vmatprep.subr.mxu0 0.0
    %1583 = vmatpush1.msra.mxu0 0.0
    %1584 = vmatprep.subr.mxu0 0.0
    %1585 = vmatpush1.msra.mxu0 0.0
    %1586 = vmatprep.mubr.f32.mxu0 0.0
    %1587 = vmatmul.mubr.f32.gmra.mrb[0].mxu0 %v1517
    %v1588 = vpop.f32.mrb[0].mxu0
    %v1589 = vadd.f32 0.0, %v1588
    %v1590 = vpop.f32.mrb[0].mxu0
    %1591 = vdwg.mxu0
    %s1592 = scalar_lea.vmem %s0, 136
    %v1593 = vld [vmem:[%s1592] sm:$0xff]
    %s1594 = scalar_lea.vmem [#allocation2], 1768
    %v1595 = vld [vmem:[%s1594] sm:$0xff]
    %v1596 = vld [vmem:[%s1594 + $0x8] sm:$0xff]
    %v1597 = vld [vmem:[%s1594 + $0x10] sm:$0xff]
    %v1598 = vld [vmem:[%s1594 + $0x18] sm:$0xff]
    %v1599 = vld [vmem:[%s1594 + $0x20] sm:$0xff]
    %v1600 = vld [vmem:[%s1594 + $0x28] sm:$0xff]
    %v1601 = vld [vmem:[%s1594 + $0x30] sm:$0xff]
    %v1602 = vld [vmem:[%s1594 + $0x38] sm:$0xff]
    %v1603 = vld [vmem:[%s1594 + $0x40] sm:$0xff]
    %v1604 = vld [vmem:[%s1594 + $0x48] sm:$0xff]
    %v1605 = vld [vmem:[%s1594 + $0x50] sm:$0xff]
    %v1606 = vld [vmem:[%s1594 + $0x58] sm:$0xff]
    %v1607 = vld [vmem:[%s1594 + $0x60] sm:$0xf]
    %v1609 = vsel %vm42, %v1593, 0
    %v1612 = vsel %vm46, %v1607, 0
    %1614 = vmatprep.subr.mxu0 0.0
    %1615 = vmatpush1.msra.mxu0 %v1595
    %1616 = vmatprep.subr.mxu0 0.0
    %1617 = vmatpush1.msra.mxu0 %v1596
    %1618 = vmatprep.subr.mxu0 0.0
    %1619 = vmatpush1.msra.mxu0 %v1597
    %1620 = vmatprep.subr.mxu0 0.0
    %1621 = vmatpush1.msra.mxu0 %v1598
    %1622 = vmatprep.subr.mxu0 0.0
    %1623 = vmatpush1.msra.mxu0 %v1599
    %1624 = vmatprep.subr.mxu0 0.0
    %1625 = vmatpush1.msra.mxu0 %v1600
    %1626 = vmatprep.subr.mxu0 0.0
    %1627 = vmatpush1.msra.mxu0 %v1601
    %1628 = vmatprep.subr.mxu0 0.0
    %1629 = vmatpush1.msra.mxu0 %v1602
    %1630 = vmatprep.subr.mxu0 0.0
    %1631 = vmatpush1.msra.mxu0 %v1603
    %1632 = vmatprep.subr.mxu0 0.0
    %1633 = vmatpush1.msra.mxu0 %v1604
    %1634 = vmatprep.subr.mxu0 0.0
    %1635 = vmatpush1.msra.mxu0 %v1605
    %1636 = vmatprep.subr.mxu0 0.0
    %1637 = vmatpush1.msra.mxu0 %v1606
    %1638 = vmatprep.subr.mxu0 0.0
    %1639 = vmatpush1.msra.mxu0 %v1612
    %1640 = vmatprep.subr.mxu0 0.0
    %1641 = vmatpush1.msra.mxu0 0.0
    %1642 = vmatprep.subr.mxu0 0.0
    %1643 = vmatpush1.msra.mxu0 0.0
    %1644 = vmatprep.subr.mxu0 0.0
    %1645 = vmatpush1.msra.mxu0 0.0
    %1646 = vmatprep.subr.mxu0 0.0
    %1647 = vmatpush1.msra.mxu0 0.0
    %1648 = vmatprep.subr.mxu0 0.0
    %1649 = vmatpush1.msra.mxu0 0.0
    %1650 = vmatprep.subr.mxu0 0.0
    %1651 = vmatpush1.msra.mxu0 0.0
    %1652 = vmatprep.subr.mxu0 0.0
    %1653 = vmatpush1.msra.mxu0 0.0
    %1654 = vmatprep.subr.mxu0 0.0
    %1655 = vmatpush1.msra.mxu0 0.0
    %1656 = vmatprep.subr.mxu0 0.0
    %1657 = vmatpush1.msra.mxu0 0.0
    %1658 = vmatprep.subr.mxu0 0.0
    %1659 = vmatpush1.msra.mxu0 0.0
    %1660 = vmatprep.subr.mxu0 0.0
    %1661 = vmatpush1.msra.mxu0 0.0
    %1662 = vmatprep.subr.mxu0 0.0
    %1663 = vmatpush1.msra.mxu0 0.0
    %1664 = vmatprep.subr.mxu0 0.0
    %1665 = vmatpush1.msra.mxu0 0.0
    %1666 = vmatprep.subr.mxu0 0.0
    %1667 = vmatpush1.msra.mxu0 0.0
    %1668 = vmatprep.subr.mxu0 0.0
    %1669 = vmatpush1.msra.mxu0 0.0
    %1670 = vmatprep.subr.mxu0 0.0
    %1671 = vmatpush1.msra.mxu0 0.0
    %1672 = vmatprep.subr.mxu0 0.0
    %1673 = vmatpush1.msra.mxu0 0.0
    %1674 = vmatprep.subr.mxu0 0.0
    %1675 = vmatpush1.msra.mxu0 0.0
    %1676 = vmatprep.subr.mxu0 0.0
    %1677 = vmatpush1.msra.mxu0 0.0
    %1678 = vmatprep.mubr.f32.mxu0 0.0
    %1679 = vmatmul.mubr.f32.gmra.mrb[0].mxu0 %v1609
    %v1680 = vpop.f32.mrb[0].mxu0
    %v1681 = vadd.f32 0.0, %v1680
    %v1682 = vpop.f32.mrb[0].mxu0
    %1683 = vdwg.mxu0
    %s1684 = scalar_lea.vmem %s0, 144
    %v1685 = vld [vmem:[%s1684] sm:$0xff]
    %s1686 = scalar_lea.vmem [#allocation2], 1872
    %v1687 = vld [vmem:[%s1686] sm:$0xff]
    %v1688 = vld [vmem:[%s1686 + $0x8] sm:$0xff]
    %v1689 = vld [vmem:[%s1686 + $0x10] sm:$0xff]
    %v1690 = vld [vmem:[%s1686 + $0x18] sm:$0xff]
    %v1691 = vld [vmem:[%s1686 + $0x20] sm:$0xff]
    %v1692 = vld [vmem:[%s1686 + $0x28] sm:$0xff]
    %v1693 = vld [vmem:[%s1686 + $0x30] sm:$0xff]
    %v1694 = vld [vmem:[%s1686 + $0x38] sm:$0xff]
    %v1695 = vld [vmem:[%s1686 + $0x40] sm:$0xff]
    %v1696 = vld [vmem:[%s1686 + $0x48] sm:$0xff]
    %v1697 = vld [vmem:[%s1686 + $0x50] sm:$0xff]
    %v1698 = vld [vmem:[%s1686 + $0x58] sm:$0xff]
    %v1699 = vld [vmem:[%s1686 + $0x60] sm:$0xf]
    %v1701 = vsel %vm42, %v1685, 0
    %v1704 = vsel %vm46, %v1699, 0
    %1706 = vmatprep.subr.mxu0 0.0
    %1707 = vmatpush1.msra.mxu0 %v1687
    %1708 = vmatprep.subr.mxu0 0.0
    %1709 = vmatpush1.msra.mxu0 %v1688
    %1710 = vmatprep.subr.mxu0 0.0
    %1711 = vmatpush1.msra.mxu0 %v1689
    %1712 = vmatprep.subr.mxu0 0.0
    %1713 = vmatpush1.msra.mxu0 %v1690
    %1714 = vmatprep.subr.mxu0 0.0
    %1715 = vmatpush1.msra.mxu0 %v1691
    %1716 = vmatprep.subr.mxu0 0.0
    %1717 = vmatpush1.msra.mxu0 %v1692
    %1718 = vmatprep.subr.mxu0 0.0
    %1719 = vmatpush1.msra.mxu0 %v1693
    %1720 = vmatprep.subr.mxu0 0.0
    %1721 = vmatpush1.msra.mxu0 %v1694
    %1722 = vmatprep.subr.mxu0 0.0
    %1723 = vmatpush1.msra.mxu0 %v1695
    %1724 = vmatprep.subr.mxu0 0.0
    %1725 = vmatpush1.msra.mxu0 %v1696
    %1726 = vmatprep.subr.mxu0 0.0
    %1727 = vmatpush1.msra.mxu0 %v1697
    %1728 = vmatprep.subr.mxu0 0.0
    %1729 = vmatpush1.msra.mxu0 %v1698
    %1730 = vmatprep.subr.mxu0 0.0
    %1731 = vmatpush1.msra.mxu0 %v1704
    %1732 = vmatprep.subr.mxu0 0.0
    %1733 = vmatpush1.msra.mxu0 0.0
    %1734 = vmatprep.subr.mxu0 0.0
    %1735 = vmatpush1.msra.mxu0 0.0
    %1736 = vmatprep.subr.mxu0 0.0
    %1737 = vmatpush1.msra.mxu0 0.0
    %1738 = vmatprep.subr.mxu0 0.0
    %1739 = vmatpush1.msra.mxu0 0.0
    %1740 = vmatprep.subr.mxu0 0.0
    %1741 = vmatpush1.msra.mxu0 0.0
    %1742 = vmatprep.subr.mxu0 0.0
    %1743 = vmatpush1.msra.mxu0 0.0
    %1744 = vmatprep.subr.mxu0 0.0
    %1745 = vmatpush1.msra.mxu0 0.0
    %1746 = vmatprep.subr.mxu0 0.0
    %1747 = vmatpush1.msra.mxu0 0.0
    %1748 = vmatprep.subr.mxu0 0.0
    %1749 = vmatpush1.msra.mxu0 0.0
    %1750 = vmatprep.subr.mxu0 0.0
    %1751 = vmatpush1.msra.mxu0 0.0
    %1752 = vmatprep.subr.mxu0 0.0
    %1753 = vmatpush1.msra.mxu0 0.0
    %1754 = vmatprep.subr.mxu0 0.0
    %1755 = vmatpush1.msra.mxu0 0.0
    %1756 = vmatprep.subr.mxu0 0.0
    %1757 = vmatpush1.msra.mxu0 0.0
    %1758 = vmatprep.subr.mxu0 0.0
    %1759 = vmatpush1.msra.mxu0 0.0
    %1760 = vmatprep.subr.mxu0 0.0
    %1761 = vmatpush1.msra.mxu0 0.0
    %1762 = vmatprep.subr.mxu0 0.0
    %1763 = vmatpush1.msra.mxu0 0.0
    %1764 = vmatprep.subr.mxu0 0.0
    %1765 = vmatpush1.msra.mxu0 0.0
    %1766 = vmatprep.subr.mxu0 0.0
    %1767 = vmatpush1.msra.mxu0 0.0
    %1768 = vmatprep.subr.mxu0 0.0
    %1769 = vmatpush1.msra.mxu0 0.0
    %1770 = vmatprep.mubr.f32.mxu0 0.0
    %1771 = vmatmul.mubr.f32.gmra.mrb[0].mxu0 %v1701
    %v1772 = vpop.f32.mrb[0].mxu0
    %v1773 = vadd.f32 0.0, %v1772
    %v1774 = vpop.f32.mrb[0].mxu0
    %1775 = vdwg.mxu0
    %s1776 = scalar_lea.vmem %s0, 152
    %v1777 = vld [vmem:[%s1776] sm:$0xff]
    %s1778 = scalar_lea.vmem [#allocation2], 1976
    %v1779 = vld [vmem:[%s1778] sm:$0xff]
    %v1780 = vld [vmem:[%s1778 + $0x8] sm:$0xff]
    %v1781 = vld [vmem:[%s1778 + $0x10] sm:$0xff]
    %v1782 = vld [vmem:[%s1778 + $0x18] sm:$0xff]
    %v1783 = vld [vmem:[%s1778 + $0x20] sm:$0xff]
    %v1784 = vld [vmem:[%s1778 + $0x28] sm:$0xff]
    %v1785 = vld [vmem:[%s1778 + $0x30] sm:$0xff]
    %v1786 = vld [vmem:[%s1778 + $0x38] sm:$0xff]
    %v1787 = vld [vmem:[%s1778 + $0x40] sm:$0xff]
    %v1788 = vld [vmem:[%s1778 + $0x48] sm:$0xff]
    %v1789 = vld [vmem:[%s1778 + $0x50] sm:$0xff]
    %v1790 = vld [vmem:[%s1778 + $0x58] sm:$0xff]
    %v1791 = vld [vmem:[%s1778 + $0x60] sm:$0xf]
    %v1793 = vsel %vm42, %v1777, 0
    %v1796 = vsel %vm46, %v1791, 0
    %1798 = vmatprep.subr.mxu0 0.0
    %1799 = vmatpush1.msra.mxu0 %v1779
    %1800 = vmatprep.subr.mxu0 0.0
    %1801 = vmatpush1.msra.mxu0 %v1780
    %1802 = vmatprep.subr.mxu0 0.0
    %1803 = vmatpush1.msra.mxu0 %v1781
    %1804 = vmatprep.subr.mxu0 0.0
    %1805 = vmatpush1.msra.mxu0 %v1782
    %1806 = vmatprep.subr.mxu0 0.0
    %1807 = vmatpush1.msra.mxu0 %v1783
    %1808 = vmatprep.subr.mxu0 0.0
    %1809 = vmatpush1.msra.mxu0 %v1784
    %1810 = vmatprep.subr.mxu0 0.0
    %1811 = vmatpush1.msra.mxu0 %v1785
    %1812 = vmatprep.subr.mxu0 0.0
    %1813 = vmatpush1.msra.mxu0 %v1786
    %1814 = vmatprep.subr.mxu0 0.0
    %1815 = vmatpush1.msra.mxu0 %v1787
    %1816 = vmatprep.subr.mxu0 0.0
    %1817 = vmatpush1.msra.mxu0 %v1788
    %1818 = vmatprep.subr.mxu0 0.0
    %1819 = vmatpush1.msra.mxu0 %v1789
    %1820 = vmatprep.subr.mxu0 0.0
    %1821 = vmatpush1.msra.mxu0 %v1790
    %1822 = vmatprep.subr.mxu0 0.0
    %1823 = vmatpush1.msra.mxu0 %v1796
    %1824 = vmatprep.subr.mxu0 0.0
    %1825 = vmatpush1.msra.mxu0 0.0
    %1826 = vmatprep.subr.mxu0 0.0
    %1827 = vmatpush1.msra.mxu0 0.0
    %1828 = vmatprep.subr.mxu0 0.0
    %1829 = vmatpush1.msra.mxu0 0.0
    %1830 = vmatprep.subr.mxu0 0.0
    %1831 = vmatpush1.msra.mxu0 0.0
    %1832 = vmatprep.subr.mxu0 0.0
    %1833 = vmatpush1.msra.mxu0 0.0
    %1834 = vmatprep.subr.mxu0 0.0
    %1835 = vmatpush1.msra.mxu0 0.0
    %1836 = vmatprep.subr.mxu0 0.0
    %1837 = vmatpush1.msra.mxu0 0.0
    %1838 = vmatprep.subr.mxu0 0.0
    %1839 = vmatpush1.msra.mxu0 0.0
    %1840 = vmatprep.subr.mxu0 0.0
    %1841 = vmatpush1.msra.mxu0 0.0
    %1842 = vmatprep.subr.mxu0 0.0
    %1843 = vmatpush1.msra.mxu0 0.0
    %1844 = vmatprep.subr.mxu0 0.0
    %1845 = vmatpush1.msra.mxu0 0.0
    %1846 = vmatprep.subr.mxu0 0.0
    %1847 = vmatpush1.msra.mxu0 0.0
    %1848 = vmatprep.subr.mxu0 0.0
    %1849 = vmatpush1.msra.mxu0 0.0
    %1850 = vmatprep.subr.mxu0 0.0
    %1851 = vmatpush1.msra.mxu0 0.0
    %1852 = vmatprep.subr.mxu0 0.0
    %1853 = vmatpush1.msra.mxu0 0.0
    %1854 = vmatprep.subr.mxu0 0.0
    %1855 = vmatpush1.msra.mxu0 0.0
    %1856 = vmatprep.subr.mxu0 0.0
    %1857 = vmatpush1.msra.mxu0 0.0
    %1858 = vmatprep.subr.mxu0 0.0
    %1859 = vmatpush1.msra.mxu0 0.0
    %1860 = vmatprep.subr.mxu0 0.0
    %1861 = vmatpush1.msra.mxu0 0.0
    %1862 = vmatprep.mubr.f32.mxu0 0.0
    %1863 = vmatmul.mubr.f32.gmra.mrb[0].mxu0 %v1793
    %v1864 = vpop.f32.mrb[0].mxu0
    %v1865 = vadd.f32 0.0, %v1864
    %v1866 = vpop.f32.mrb[0].mxu0
    %1867 = vdwg.mxu0
    %s1868 = scalar_lea.vmem %s0, 160
    %v1869 = vld [vmem:[%s1868] sm:$0xff]
    %s1870 = scalar_lea.vmem [#allocation2], 2080
    %v1871 = vld [vmem:[%s1870] sm:$0xff]
    %v1872 = vld [vmem:[%s1870 + $0x8] sm:$0xff]
    %v1873 = vld [vmem:[%s1870 + $0x10] sm:$0xff]
    %v1874 = vld [vmem:[%s1870 + $0x18] sm:$0xff]
    %v1875 = vld [vmem:[%s1870 + $0x20] sm:$0xff]
    %v1876 = vld [vmem:[%s1870 + $0x28] sm:$0xff]
    %v1877 = vld [vmem:[%s1870 + $0x30] sm:$0xff]
    %v1878 = vld [vmem:[%s1870 + $0x38] sm:$0xff]
    %v1879 = vld [vmem:[%s1870 + $0x40] sm:$0xff]
    %v1880 = vld [vmem:[%s1870 + $0x48] sm:$0xff]
    %v1881 = vld [vmem:[%s1870 + $0x50] sm:$0xff]
    %v1882 = vld [vmem:[%s1870 + $0x58] sm:$0xff]
    %v1883 = vld [vmem:[%s1870 + $0x60] sm:$0xf]
    %v1885 = vsel %vm42, %v1869, 0
    %v1888 = vsel %vm46, %v1883, 0
    %1890 = vmatprep.subr.mxu0 0.0
    %1891 = vmatpush1.msra.mxu0 %v1871
    %1892 = vmatprep.subr.mxu0 0.0
    %1893 = vmatpush1.msra.mxu0 %v1872
    %1894 = vmatprep.subr.mxu0 0.0
    %1895 = vmatpush1.msra.mxu0 %v1873
    %1896 = vmatprep.subr.mxu0 0.0
    %1897 = vmatpush1.msra.mxu0 %v1874
    %1898 = vmatprep.subr.mxu0 0.0
    %1899 = vmatpush1.msra.mxu0 %v1875
    %1900 = vmatprep.subr.mxu0 0.0
    %1901 = vmatpush1.msra.mxu0 %v1876
    %1902 = vmatprep.subr.mxu0 0.0
    %1903 = vmatpush1.msra.mxu0 %v1877
    %1904 = vmatprep.subr.mxu0 0.0
    %1905 = vmatpush1.msra.mxu0 %v1878
    %1906 = vmatprep.subr.mxu0 0.0
    %1907 = vmatpush1.msra.mxu0 %v1879
    %1908 = vmatprep.subr.mxu0 0.0
    %1909 = vmatpush1.msra.mxu0 %v1880
    %1910 = vmatprep.subr.mxu0 0.0
    %1911 = vmatpush1.msra.mxu0 %v1881
    %1912 = vmatprep.subr.mxu0 0.0
    %1913 = vmatpush1.msra.mxu0 %v1882
    %1914 = vmatprep.subr.mxu0 0.0
    %1915 = vmatpush1.msra.mxu0 %v1888
    %1916 = vmatprep.subr.mxu0 0.0
    %1917 = vmatpush1.msra.mxu0 0.0
    %1918 = vmatprep.subr.mxu0 0.0
    %1919 = vmatpush1.msra.mxu0 0.0
    %1920 = vmatprep.subr.mxu0 0.0
    %1921 = vmatpush1.msra.mxu0 0.0
    %1922 = vmatprep.subr.mxu0 0.0
    %1923 = vmatpush1.msra.mxu0 0.0
    %1924 = vmatprep.subr.mxu0 0.0
    %1925 = vmatpush1.msra.mxu0 0.0
    %1926 = vmatprep.subr.mxu0 0.0
    %1927 = vmatpush1.msra.mxu0 0.0
    %1928 = vmatprep.subr.mxu0 0.0
    %1929 = vmatpush1.msra.mxu0 0.0
    %1930 = vmatprep.subr.mxu0 0.0
    %1931 = vmatpush1.msra.mxu0 0.0
    %1932 = vmatprep.subr.mxu0 0.0
    %1933 = vmatpush1.msra.mxu0 0.0
    %1934 = vmatprep.subr.mxu0 0.0
    %1935 = vmatpush1.msra.mxu0 0.0
    %1936 = vmatprep.subr.mxu0 0.0
    %1937 = vmatpush1.msra.mxu0 0.0
    %1938 = vmatprep.subr.mxu0 0.0
    %1939 = vmatpush1.msra.mxu0 0.0
    %1940 = vmatprep.subr.mxu0 0.0
    %1941 = vmatpush1.msra.mxu0 0.0
    %1942 = vmatprep.subr.mxu0 0.0
    %1943 = vmatpush1.msra.mxu0 0.0
    %1944 = vmatprep.subr.mxu0 0.0
    %1945 = vmatpush1.msra.mxu0 0.0
    %1946 = vmatprep.subr.mxu0 0.0
    %1947 = vmatpush1.msra.mxu0 0.0
    %1948 = vmatprep.subr.mxu0 0.0
    %1949 = vmatpush1.msra.mxu0 0.0
    %1950 = vmatprep.subr.mxu0 0.0
    %1951 = vmatpush1.msra.mxu0 0.0
    %1952 = vmatprep.subr.mxu0 0.0
    %1953 = vmatpush1.msra.mxu0 0.0
    %1954 = vmatprep.mubr.f32.mxu0 0.0
    %1955 = vmatmul.mubr.f32.gmra.mrb[0].mxu0 %v1885
    %v1956 = vpop.f32.mrb[0].mxu0
    %v1957 = vadd.f32 0.0, %v1956
    %v1958 = vpop.f32.mrb[0].mxu0
    %1959 = vdwg.mxu0
    %s1960 = scalar_lea.vmem %s0, 168
    %v1961 = vld [vmem:[%s1960] sm:$0xff]
    %s1962 = scalar_lea.vmem [#allocation2], 2184
    %v1963 = vld [vmem:[%s1962] sm:$0xff]
    %v1964 = vld [vmem:[%s1962 + $0x8] sm:$0xff]
    %v1965 = vld [vmem:[%s1962 + $0x10] sm:$0xff]
    %v1966 = vld [vmem:[%s1962 + $0x18] sm:$0xff]
    %v1967 = vld [vmem:[%s1962 + $0x20] sm:$0xff]
    %v1968 = vld [vmem:[%s1962 + $0x28] sm:$0xff]
    %v1969 = vld [vmem:[%s1962 + $0x30] sm:$0xff]
    %v1970 = vld [vmem:[%s1962 + $0x38] sm:$0xff]
    %v1971 = vld [vmem:[%s1962 + $0x40] sm:$0xff]
    %v1972 = vld [vmem:[%s1962 + $0x48] sm:$0xff]
    %v1973 = vld [vmem:[%s1962 + $0x50] sm:$0xff]
    %v1974 = vld [vmem:[%s1962 + $0x58] sm:$0xff]
    %v1975 = vld [vmem:[%s1962 + $0x60] sm:$0xf]
    %v1977 = vsel %vm42, %v1961, 0
    %v1980 = vsel %vm46, %v1975, 0
    %1982 = vmatprep.subr.mxu0 0.0
    %1983 = vmatpush1.msra.mxu0 %v1963
    %1984 = vmatprep.subr.mxu0 0.0
    %1985 = vmatpush1.msra.mxu0 %v1964
    %1986 = vmatprep.subr.mxu0 0.0
    %1987 = vmatpush1.msra.mxu0 %v1965
    %1988 = vmatprep.subr.mxu0 0.0
    %1989 = vmatpush1.msra.mxu0 %v1966
    %1990 = vmatprep.subr.mxu0 0.0
    %1991 = vmatpush1.msra.mxu0 %v1967
    %1992 = vmatprep.subr.mxu0 0.0
    %1993 = vmatpush1.msra.mxu0 %v1968
    %1994 = vmatprep.subr.mxu0 0.0
    %1995 = vmatpush1.msra.mxu0 %v1969
    %1996 = vmatprep.subr.mxu0 0.0
    %1997 = vmatpush1.msra.mxu0 %v1970
    %1998 = vmatprep.subr.mxu0 0.0
    %1999 = vmatpush1.msra.mxu0 %v1971
    %2000 = vmatprep.subr.mxu0 0.0
    %2001 = vmatpush1.msra.mxu0 %v1972
    %2002 = vmatprep.subr.mxu0 0.0
    %2003 = vmatpush1.msra.mxu0 %v1973
    %2004 = vmatprep.subr.mxu0 0.0
    %2005 = vmatpush1.msra.mxu0 %v1974
    %2006 = vmatprep.subr.mxu0 0.0
    %2007 = vmatpush1.msra.mxu0 %v1980
    %2008 = vmatprep.subr.mxu0 0.0
    %2009 = vmatpush1.msra.mxu0 0.0
    %2010 = vmatprep.subr.mxu0 0.0
    %2011 = vmatpush1.msra.mxu0 0.0
    %2012 = vmatprep.subr.mxu0 0.0
    %2013 = vmatpush1.msra.mxu0 0.0
    %2014 = vmatprep.subr.mxu0 0.0
    %2015 = vmatpush1.msra.mxu0 0.0
    %2016 = vmatprep.subr.mxu0 0.0
    %2017 = vmatpush1.msra.mxu0 0.0
    %2018 = vmatprep.subr.mxu0 0.0
    %2019 = vmatpush1.msra.mxu0 0.0
    %2020 = vmatprep.subr.mxu0 0.0
    %2021 = vmatpush1.msra.mxu0 0.0
    %2022 = vmatprep.subr.mxu0 0.0
    %2023 = vmatpush1.msra.mxu0 0.0
    %2024 = vmatprep.subr.mxu0 0.0
    %2025 = vmatpush1.msra.mxu0 0.0
    %2026 = vmatprep.subr.mxu0 0.0
    %2027 = vmatpush1.msra.mxu0 0.0
    %2028 = vmatprep.subr.mxu0 0.0
    %2029 = vmatpush1.msra.mxu0 0.0
    %2030 = vmatprep.subr.mxu0 0.0
    %2031 = vmatpush1.msra.mxu0 0.0
    %2032 = vmatprep.subr.mxu0 0.0
    %2033 = vmatpush1.msra.mxu0 0.0
    %2034 = vmatprep.subr.mxu0 0.0
    %2035 = vmatpush1.msra.mxu0 0.0
    %2036 = vmatprep.subr.mxu0 0.0
    %2037 = vmatpush1.msra.mxu0 0.0
    %2038 = vmatprep.subr.mxu0 0.0
    %2039 = vmatpush1.msra.mxu0 0.0
    %2040 = vmatprep.subr.mxu0 0.0
    %2041 = vmatpush1.msra.mxu0 0.0
    %2042 = vmatprep.subr.mxu0 0.0
    %2043 = vmatpush1.msra.mxu0 0.0
    %2044 = vmatprep.subr.mxu0 0.0
    %2045 = vmatpush1.msra.mxu0 0.0
    %2046 = vmatprep.mubr.f32.mxu0 0.0
    %2047 = vmatmul.mubr.f32.gmra.mrb[0].mxu0 %v1977
    %v2048 = vpop.f32.mrb[0].mxu0
    %v2049 = vadd.f32 0.0, %v2048
    %v2050 = vpop.f32.mrb[0].mxu0
    %2051 = vdwg.mxu0
    %s2052 = scalar_lea.vmem %s0, 176
    %v2053 = vld [vmem:[%s2052] sm:$0xff]
    %s2054 = scalar_lea.vmem [#allocation2], 2288
    %v2055 = vld [vmem:[%s2054] sm:$0xff]
    %v2056 = vld [vmem:[%s2054 + $0x8] sm:$0xff]
    %v2057 = vld [vmem:[%s2054 + $0x10] sm:$0xff]
    %v2058 = vld [vmem:[%s2054 + $0x18] sm:$0xff]
    %v2059 = vld [vmem:[%s2054 + $0x20] sm:$0xff]
    %v2060 = vld [vmem:[%s2054 + $0x28] sm:$0xff]
    %v2061 = vld [vmem:[%s2054 + $0x30] sm:$0xff]
    %v2062 = vld [vmem:[%s2054 + $0x38] sm:$0xff]
    %v2063 = vld [vmem:[%s2054 + $0x40] sm:$0xff]
    %v2064 = vld [vmem:[%s2054 + $0x48] sm:$0xff]
    %v2065 = vld [vmem:[%s2054 + $0x50] sm:$0xff]
    %v2066 = vld [vmem:[%s2054 + $0x58] sm:$0xff]
    %v2067 = vld [vmem:[%s2054 + $0x60] sm:$0xf]
    %v2069 = vsel %vm42, %v2053, 0
    %v2072 = vsel %vm46, %v2067, 0
    %2074 = vmatprep.subr.mxu0 0.0
    %2075 = vmatpush1.msra.mxu0 %v2055
    %2076 = vmatprep.subr.mxu0 0.0
    %2077 = vmatpush1.msra.mxu0 %v2056
    %2078 = vmatprep.subr.mxu0 0.0
    %2079 = vmatpush1.msra.mxu0 %v2057
    %2080 = vmatprep.subr.mxu0 0.0
    %2081 = vmatpush1.msra.mxu0 %v2058
    %2082 = vmatprep.subr.mxu0 0.0
    %2083 = vmatpush1.msra.mxu0 %v2059
    %2084 = vmatprep.subr.mxu0 0.0
    %2085 = vmatpush1.msra.mxu0 %v2060
    %2086 = vmatprep.subr.mxu0 0.0
    %2087 = vmatpush1.msra.mxu0 %v2061
    %2088 = vmatprep.subr.mxu0 0.0
    %2089 = vmatpush1.msra.mxu0 %v2062
    %2090 = vmatprep.subr.mxu0 0.0
    %2091 = vmatpush1.msra.mxu0 %v2063
    %2092 = vmatprep.subr.mxu0 0.0
    %2093 = vmatpush1.msra.mxu0 %v2064
    %2094 = vmatprep.subr.mxu0 0.0
    %2095 = vmatpush1.msra.mxu0 %v2065
    %2096 = vmatprep.subr.mxu0 0.0
    %2097 = vmatpush1.msra.mxu0 %v2066
    %2098 = vmatprep.subr.mxu0 0.0
    %2099 = vmatpush1.msra.mxu0 %v2072
    %2100 = vmatprep.subr.mxu0 0.0
    %2101 = vmatpush1.msra.mxu0 0.0
    %2102 = vmatprep.subr.mxu0 0.0
    %2103 = vmatpush1.msra.mxu0 0.0
    %2104 = vmatprep.subr.mxu0 0.0
    %2105 = vmatpush1.msra.mxu0 0.0
    %2106 = vmatprep.subr.mxu0 0.0
    %2107 = vmatpush1.msra.mxu0 0.0
    %2108 = vmatprep.subr.mxu0 0.0
    %2109 = vmatpush1.msra.mxu0 0.0
    %2110 = vmatprep.subr.mxu0 0.0
    %2111 = vmatpush1.msra.mxu0 0.0
    %2112 = vmatprep.subr.mxu0 0.0
    %2113 = vmatpush1.msra.mxu0 0.0
    %2114 = vmatprep.subr.mxu0 0.0
    %2115 = vmatpush1.msra.mxu0 0.0
    %2116 = vmatprep.subr.mxu0 0.0
    %2117 = vmatpush1.msra.mxu0 0.0
    %2118 = vmatprep.subr.mxu0 0.0
    %2119 = vmatpush1.msra.mxu0 0.0
    %2120 = vmatprep.subr.mxu0 0.0
    %2121 = vmatpush1.msra.mxu0 0.0
    %2122 = vmatprep.subr.mxu0 0.0
    %2123 = vmatpush1.msra.mxu0 0.0
    %2124 = vmatprep.subr.mxu0 0.0
    %2125 = vmatpush1.msra.mxu0 0.0
    %2126 = vmatprep.subr.mxu0 0.0
    %2127 = vmatpush1.msra.mxu0 0.0
    %2128 = vmatprep.subr.mxu0 0.0
    %2129 = vmatpush1.msra.mxu0 0.0
    %2130 = vmatprep.subr.mxu0 0.0
    %2131 = vmatpush1.msra.mxu0 0.0
    %2132 = vmatprep.subr.mxu0 0.0
    %2133 = vmatpush1.msra.mxu0 0.0
    %2134 = vmatprep.subr.mxu0 0.0
    %2135 = vmatpush1.msra.mxu0 0.0
    %2136 = vmatprep.subr.mxu0 0.0
    %2137 = vmatpush1.msra.mxu0 0.0
    %2138 = vmatprep.mubr.f32.mxu0 0.0
    %2139 = vmatmul.mubr.f32.gmra.mrb[0].mxu0 %v2069
    %v2140 = vpop.f32.mrb[0].mxu0
    %v2141 = vadd.f32 0.0, %v2140
    %v2142 = vpop.f32.mrb[0].mxu0
    %2143 = vdwg.mxu0
    %s2144 = scalar_lea.vmem %s0, 184
    %v2145 = vld [vmem:[%s2144] sm:$0xff]
    %s2146 = scalar_lea.vmem [#allocation2], 2392
    %v2147 = vld [vmem:[%s2146] sm:$0xff]
    %v2148 = vld [vmem:[%s2146 + $0x8] sm:$0xff]
    %v2149 = vld [vmem:[%s2146 + $0x10] sm:$0xff]
    %v2150 = vld [vmem:[%s2146 + $0x18] sm:$0xff]
    %v2151 = vld [vmem:[%s2146 + $0x20] sm:$0xff]
    %v2152 = vld [vmem:[%s2146 + $0x28] sm:$0xff]
    %v2153 = vld [vmem:[%s2146 + $0x30] sm:$0xff]
    %v2154 = vld [vmem:[%s2146 + $0x38] sm:$0xff]
    %v2155 = vld [vmem:[%s2146 + $0x40] sm:$0xff]
    %v2156 = vld [vmem:[%s2146 + $0x48] sm:$0xff]
    %v2157 = vld [vmem:[%s2146 + $0x50] sm:$0xff]
    %v2158 = vld [vmem:[%s2146 + $0x58] sm:$0xff]
    %v2159 = vld [vmem:[%s2146 + $0x60] sm:$0xf]
    %v2161 = vsel %vm42, %v2145, 0
    %v2164 = vsel %vm46, %v2159, 0
    %2166 = vmatprep.subr.mxu0 0.0
    %2167 = vmatpush1.msra.mxu0 %v2147
    %2168 = vmatprep.subr.mxu0 0.0
    %2169 = vmatpush1.msra.mxu0 %v2148
    %2170 = vmatprep.subr.mxu0 0.0
    %2171 = vmatpush1.msra.mxu0 %v2149
    %2172 = vmatprep.subr.mxu0 0.0
    %2173 = vmatpush1.msra.mxu0 %v2150
    %2174 = vmatprep.subr.mxu0 0.0
    %2175 = vmatpush1.msra.mxu0 %v2151
    %2176 = vmatprep.subr.mxu0 0.0
    %2177 = vmatpush1.msra.mxu0 %v2152
    %2178 = vmatprep.subr.mxu0 0.0
    %2179 = vmatpush1.msra.mxu0 %v2153
    %2180 = vmatprep.subr.mxu0 0.0
    %2181 = vmatpush1.msra.mxu0 %v2154
    %2182 = vmatprep.subr.mxu0 0.0
    %2183 = vmatpush1.msra.mxu0 %v2155
    %2184 = vmatprep.subr.mxu0 0.0
    %2185 = vmatpush1.msra.mxu0 %v2156
    %2186 = vmatprep.subr.mxu0 0.0
    %2187 = vmatpush1.msra.mxu0 %v2157
    %2188 = vmatprep.subr.mxu0 0.0
    %2189 = vmatpush1.msra.mxu0 %v2158
    %2190 = vmatprep.subr.mxu0 0.0
    %2191 = vmatpush1.msra.mxu0 %v2164
    %2192 = vmatprep.subr.mxu0 0.0
    %2193 = vmatpush1.msra.mxu0 0.0
    %2194 = vmatprep.subr.mxu0 0.0
    %2195 = vmatpush1.msra.mxu0 0.0
    %2196 = vmatprep.subr.mxu0 0.0
    %2197 = vmatpush1.msra.mxu0 0.0
    %2198 = vmatprep.subr.mxu0 0.0
    %2199 = vmatpush1.msra.mxu0 0.0
    %2200 = vmatprep.subr.mxu0 0.0
    %2201 = vmatpush1.msra.mxu0 0.0
    %2202 = vmatprep.subr.mxu0 0.0
    %2203 = vmatpush1.msra.mxu0 0.0
    %2204 = vmatprep.subr.mxu0 0.0
    %2205 = vmatpush1.msra.mxu0 0.0
    %2206 = vmatprep.subr.mxu0 0.0
    %2207 = vmatpush1.msra.mxu0 0.0
    %2208 = vmatprep.subr.mxu0 0.0
    %2209 = vmatpush1.msra.mxu0 0.0
    %2210 = vmatprep.subr.mxu0 0.0
    %2211 = vmatpush1.msra.mxu0 0.0
    %2212 = vmatprep.subr.mxu0 0.0
    %2213 = vmatpush1.msra.mxu0 0.0
    %2214 = vmatprep.subr.mxu0 0.0
    %2215 = vmatpush1.msra.mxu0 0.0
    %2216 = vmatprep.subr.mxu0 0.0
    %2217 = vmatpush1.msra.mxu0 0.0
    %2218 = vmatprep.subr.mxu0 0.0
    %2219 = vmatpush1.msra.mxu0 0.0
    %2220 = vmatprep.subr.mxu0 0.0
    %2221 = vmatpush1.msra.mxu0 0.0
    %2222 = vmatprep.subr.mxu0 0.0
    %2223 = vmatpush1.msra.mxu0 0.0
    %2224 = vmatprep.subr.mxu0 0.0
    %2225 = vmatpush1.msra.mxu0 0.0
    %2226 = vmatprep.subr.mxu0 0.0
    %2227 = vmatpush1.msra.mxu0 0.0
    %2228 = vmatprep.subr.mxu0 0.0
    %2229 = vmatpush1.msra.mxu0 0.0
    %2230 = vmatprep.mubr.f32.mxu0 0.0
    %2231 = vmatmul.mubr.f32.gmra.mrb[0].mxu0 %v2161
    %v2232 = vpop.f32.mrb[0].mxu0
    %v2233 = vadd.f32 0.0, %v2232
    %v2234 = vpop.f32.mrb[0].mxu0
    %2235 = vdwg.mxu0
    %s2236 = scalar_lea.vmem %s0, 192
    %v2237 = vld [vmem:[%s2236] sm:$0xff]
    %s2238 = scalar_lea.vmem [#allocation2], 2496
    %v2239 = vld [vmem:[%s2238] sm:$0xff]
    %v2240 = vld [vmem:[%s2238 + $0x8] sm:$0xff]
    %v2241 = vld [vmem:[%s2238 + $0x10] sm:$0xff]
    %v2242 = vld [vmem:[%s2238 + $0x18] sm:$0xff]
    %v2243 = vld [vmem:[%s2238 + $0x20] sm:$0xff]
    %v2244 = vld [vmem:[%s2238 + $0x28] sm:$0xff]
    %v2245 = vld [vmem:[%s2238 + $0x30] sm:$0xff]
    %v2246 = vld [vmem:[%s2238 + $0x38] sm:$0xff]
    %v2247 = vld [vmem:[%s2238 + $0x40] sm:$0xff]
    %v2248 = vld [vmem:[%s2238 + $0x48] sm:$0xff]
    %v2249 = vld [vmem:[%s2238 + $0x50] sm:$0xff]
    %v2250 = vld [vmem:[%s2238 + $0x58] sm:$0xff]
    %v2251 = vld [vmem:[%s2238 + $0x60] sm:$0xf]
    %v2253 = vsel %vm42, %v2237, 0
    %v2256 = vsel %vm46, %v2251, 0
    %2258 = vmatprep.subr.mxu0 0.0
    %2259 = vmatpush1.msra.mxu0 %v2239
    %2260 = vmatprep.subr.mxu0 0.0
    %2261 = vmatpush1.msra.mxu0 %v2240
    %2262 = vmatprep.subr.mxu0 0.0
    %2263 = vmatpush1.msra.mxu0 %v2241
    %2264 = vmatprep.subr.mxu0 0.0
    %2265 = vmatpush1.msra.mxu0 %v2242
    %2266 = vmatprep.subr.mxu0 0.0
    %2267 = vmatpush1.msra.mxu0 %v2243
    %2268 = vmatprep.subr.mxu0 0.0
    %2269 = vmatpush1.msra.mxu0 %v2244
    %2270 = vmatprep.subr.mxu0 0.0
    %2271 = vmatpush1.msra.mxu0 %v2245
    %2272 = vmatprep.subr.mxu0 0.0
    %2273 = vmatpush1.msra.mxu0 %v2246
    %2274 = vmatprep.subr.mxu0 0.0
    %2275 = vmatpush1.msra.mxu0 %v2247
    %2276 = vmatprep.subr.mxu0 0.0
    %2277 = vmatpush1.msra.mxu0 %v2248
    %2278 = vmatprep.subr.mxu0 0.0
    %2279 = vmatpush1.msra.mxu0 %v2249
    %2280 = vmatprep.subr.mxu0 0.0
    %2281 = vmatpush1.msra.mxu0 %v2250
    %2282 = vmatprep.subr.mxu0 0.0
    %2283 = vmatpush1.msra.mxu0 %v2256
    %2284 = vmatprep.subr.mxu0 0.0
    %2285 = vmatpush1.msra.mxu0 0.0
    %2286 = vmatprep.subr.mxu0 0.0
    %2287 = vmatpush1.msra.mxu0 0.0
    %2288 = vmatprep.subr.mxu0 0.0
    %2289 = vmatpush1.msra.mxu0 0.0
    %2290 = vmatprep.subr.mxu0 0.0
    %2291 = vmatpush1.msra.mxu0 0.0
    %2292 = vmatprep.subr.mxu0 0.0
    %2293 = vmatpush1.msra.mxu0 0.0
    %2294 = vmatprep.subr.mxu0 0.0
    %2295 = vmatpush1.msra.mxu0 0.0
    %2296 = vmatprep.subr.mxu0 0.0
    %2297 = vmatpush1.msra.mxu0 0.0
    %2298 = vmatprep.subr.mxu0 0.0
    %2299 = vmatpush1.msra.mxu0 0.0
    %2300 = vmatprep.subr.mxu0 0.0
    %2301 = vmatpush1.msra.mxu0 0.0
    %2302 = vmatprep.subr.mxu0 0.0
    %2303 = vmatpush1.msra.mxu0 0.0
    %2304 = vmatprep.subr.mxu0 0.0
    %2305 = vmatpush1.msra.mxu0 0.0
    %2306 = vmatprep.subr.mxu0 0.0
    %2307 = vmatpush1.msra.mxu0 0.0
    %2308 = vmatprep.subr.mxu0 0.0
    %2309 = vmatpush1.msra.mxu0 0.0
    %2310 = vmatprep.subr.mxu0 0.0
    %2311 = vmatpush1.msra.mxu0 0.0
    %2312 = vmatprep.subr.mxu0 0.0
    %2313 = vmatpush1.msra.mxu0 0.0
    %2314 = vmatprep.subr.mxu0 0.0
    %2315 = vmatpush1.msra.mxu0 0.0
    %2316 = vmatprep.subr.mxu0 0.0
    %2317 = vmatpush1.msra.mxu0 0.0
    %2318 = vmatprep.subr.mxu0 0.0
    %2319 = vmatpush1.msra.mxu0 0.0
    %2320 = vmatprep.subr.mxu0 0.0
    %2321 = vmatpush1.msra.mxu0 0.0
    %2322 = vmatprep.mubr.f32.mxu0 0.0
    %2323 = vmatmul.mubr.f32.gmra.mrb[0].mxu0 %v2253
    %v2324 = vpop.f32.mrb[0].mxu0
    %v2325 = vadd.f32 0.0, %v2324
    %v2326 = vpop.f32.mrb[0].mxu0
    %2327 = vdwg.mxu0
    %s2328 = scalar_lea.vmem %s0, 200
    %v2329 = vld [vmem:[%s2328] sm:$0xff]
    %s2330 = scalar_lea.vmem [#allocation2], 2600
    %v2331 = vld [vmem:[%s2330] sm:$0xff]
    %v2332 = vld [vmem:[%s2330 + $0x8] sm:$0xff]
    %v2333 = vld [vmem:[%s2330 + $0x10] sm:$0xff]
    %v2334 = vld [vmem:[%s2330 + $0x18] sm:$0xff]
    %v2335 = vld [vmem:[%s2330 + $0x20] sm:$0xff]
    %v2336 = vld [vmem:[%s2330 + $0x28] sm:$0xff]
    %v2337 = vld [vmem:[%s2330 + $0x30] sm:$0xff]
    %v2338 = vld [vmem:[%s2330 + $0x38] sm:$0xff]
    %v2339 = vld [vmem:[%s2330 + $0x40] sm:$0xff]
    %v2340 = vld [vmem:[%s2330 + $0x48] sm:$0xff]
    %v2341 = vld [vmem:[%s2330 + $0x50] sm:$0xff]
    %v2342 = vld [vmem:[%s2330 + $0x58] sm:$0xff]
    %v2343 = vld [vmem:[%s2330 + $0x60] sm:$0xf]
    %v2345 = vsel %vm42, %v2329, 0
    %v2348 = vsel %vm46, %v2343, 0
    %2350 = vmatprep.subr.mxu0 0.0
    %2351 = vmatpush1.msra.mxu0 %v2331
    %2352 = vmatprep.subr.mxu0 0.0
    %2353 = vmatpush1.msra.mxu0 %v2332
    %2354 = vmatprep.subr.mxu0 0.0
    %2355 = vmatpush1.msra.mxu0 %v2333
    %2356 = vmatprep.subr.mxu0 0.0
    %2357 = vmatpush1.msra.mxu0 %v2334
    %2358 = vmatprep.subr.mxu0 0.0
    %2359 = vmatpush1.msra.mxu0 %v2335
    %2360 = vmatprep.subr.mxu0 0.0
    %2361 = vmatpush1.msra.mxu0 %v2336
    %2362 = vmatprep.subr.mxu0 0.0
    %2363 = vmatpush1.msra.mxu0 %v2337
    %2364 = vmatprep.subr.mxu0 0.0
    %2365 = vmatpush1.msra.mxu0 %v2338
    %2366 = vmatprep.subr.mxu0 0.0
    %2367 = vmatpush1.msra.mxu0 %v2339
    %2368 = vmatprep.subr.mxu0 0.0
    %2369 = vmatpush1.msra.mxu0 %v2340
    %2370 = vmatprep.subr.mxu0 0.0
    %2371 = vmatpush1.msra.mxu0 %v2341
    %2372 = vmatprep.subr.mxu0 0.0
    %2373 = vmatpush1.msra.mxu0 %v2342
    %2374 = vmatprep.subr.mxu0 0.0
    %2375 = vmatpush1.msra.mxu0 %v2348
    %2376 = vmatprep.subr.mxu0 0.0
    %2377 = vmatpush1.msra.mxu0 0.0
    %2378 = vmatprep.subr.mxu0 0.0
    %2379 = vmatpush1.msra.mxu0 0.0
    %2380 = vmatprep.subr.mxu0 0.0
    %2381 = vmatpush1.msra.mxu0 0.0
    %2382 = vmatprep.subr.mxu0 0.0
    %2383 = vmatpush1.msra.mxu0 0.0
    %2384 = vmatprep.subr.mxu0 0.0
    %2385 = vmatpush1.msra.mxu0 0.0
    %2386 = vmatprep.subr.mxu0 0.0
    %2387 = vmatpush1.msra.mxu0 0.0
    %2388 = vmatprep.subr.mxu0 0.0
    %2389 = vmatpush1.msra.mxu0 0.0
    %2390 = vmatprep.subr.mxu0 0.0
    %2391 = vmatpush1.msra.mxu0 0.0
    %2392 = vmatprep.subr.mxu0 0.0
    %2393 = vmatpush1.msra.mxu0 0.0
    %2394 = vmatprep.subr.mxu0 0.0
    %2395 = vmatpush1.msra.mxu0 0.0
    %2396 = vmatprep.subr.mxu0 0.0
    %2397 = vmatpush1.msra.mxu0 0.0
    %2398 = vmatprep.subr.mxu0 0.0
    %2399 = vmatpush1.msra.mxu0 0.0
    %2400 = vmatprep.subr.mxu0 0.0
    %2401 = vmatpush1.msra.mxu0 0.0
    %2402 = vmatprep.subr.mxu0 0.0
    %2403 = vmatpush1.msra.mxu0 0.0
    %2404 = vmatprep.subr.mxu0 0.0
    %2405 = vmatpush1.msra.mxu0 0.0
    %2406 = vmatprep.subr.mxu0 0.0
    %2407 = vmatpush1.msra.mxu0 0.0
    %2408 = vmatprep.subr.mxu0 0.0
    %2409 = vmatpush1.msra.mxu0 0.0
    %2410 = vmatprep.subr.mxu0 0.0
    %2411 = vmatpush1.msra.mxu0 0.0
    %2412 = vmatprep.subr.mxu0 0.0
    %2413 = vmatpush1.msra.mxu0 0.0
    %2414 = vmatprep.mubr.f32.mxu0 0.0
    %2415 = vmatmul.mubr.f32.gmra.mrb[0].mxu0 %v2345
    %v2416 = vpop.f32.mrb[0].mxu0
    %v2417 = vadd.f32 0.0, %v2416
    %v2418 = vpop.f32.mrb[0].mxu0
    %2419 = vdwg.mxu0
    %s2420 = scalar_lea.vmem %s0, 208
    %v2421 = vld [vmem:[%s2420] sm:$0xff]
    %s2422 = scalar_lea.vmem [#allocation2], 2704
    %v2423 = vld [vmem:[%s2422] sm:$0xff]
    %v2424 = vld [vmem:[%s2422 + $0x8] sm:$0xff]
    %v2425 = vld [vmem:[%s2422 + $0x10] sm:$0xff]
    %v2426 = vld [vmem:[%s2422 + $0x18] sm:$0xff]
    %v2427 = vld [vmem:[%s2422 + $0x20] sm:$0xff]
    %v2428 = vld [vmem:[%s2422 + $0x28] sm:$0xff]
    %v2429 = vld [vmem:[%s2422 + $0x30] sm:$0xff]
    %v2430 = vld [vmem:[%s2422 + $0x38] sm:$0xff]
    %v2431 = vld [vmem:[%s2422 + $0x40] sm:$0xff]
    %v2432 = vld [vmem:[%s2422 + $0x48] sm:$0xff]
    %v2433 = vld [vmem:[%s2422 + $0x50] sm:$0xff]
    %v2434 = vld [vmem:[%s2422 + $0x58] sm:$0xff]
    %v2435 = vld [vmem:[%s2422 + $0x60] sm:$0xf]
    %v2437 = vsel %vm42, %v2421, 0
    %v2440 = vsel %vm46, %v2435, 0
    %2442 = vmatprep.subr.mxu0 0.0
    %2443 = vmatpush1.msra.mxu0 %v2423
    %2444 = vmatprep.subr.mxu0 0.0
    %2445 = vmatpush1.msra.mxu0 %v2424
    %2446 = vmatprep.subr.mxu0 0.0
    %2447 = vmatpush1.msra.mxu0 %v2425
    %2448 = vmatprep.subr.mxu0 0.0
    %2449 = vmatpush1.msra.mxu0 %v2426
    %2450 = vmatprep.subr.mxu0 0.0
    %2451 = vmatpush1.msra.mxu0 %v2427
    %2452 = vmatprep.subr.mxu0 0.0
    %2453 = vmatpush1.msra.mxu0 %v2428
    %2454 = vmatprep.subr.mxu0 0.0
    %2455 = vmatpush1.msra.mxu0 %v2429
    %2456 = vmatprep.subr.mxu0 0.0
    %2457 = vmatpush1.msra.mxu0 %v2430
    %2458 = vmatprep.subr.mxu0 0.0
    %2459 = vmatpush1.msra.mxu0 %v2431
    %2460 = vmatprep.subr.mxu0 0.0
    %2461 = vmatpush1.msra.mxu0 %v2432
    %2462 = vmatprep.subr.mxu0 0.0
    %2463 = vmatpush1.msra.mxu0 %v2433
    %2464 = vmatprep.subr.mxu0 0.0
    %2465 = vmatpush1.msra.mxu0 %v2434
    %2466 = vmatprep.subr.mxu0 0.0
    %2467 = vmatpush1.msra.mxu0 %v2440
    %2468 = vmatprep.subr.mxu0 0.0
    %2469 = vmatpush1.msra.mxu0 0.0
    %2470 = vmatprep.subr.mxu0 0.0
    %2471 = vmatpush1.msra.mxu0 0.0
    %2472 = vmatprep.subr.mxu0 0.0
    %2473 = vmatpush1.msra.mxu0 0.0
    %2474 = vmatprep.subr.mxu0 0.0
    %2475 = vmatpush1.msra.mxu0 0.0
    %2476 = vmatprep.subr.mxu0 0.0
    %2477 = vmatpush1.msra.mxu0 0.0
    %2478 = vmatprep.subr.mxu0 0.0
    %2479 = vmatpush1.msra.mxu0 0.0
    %2480 = vmatprep.subr.mxu0 0.0
    %2481 = vmatpush1.msra.mxu0 0.0
    %2482 = vmatprep.subr.mxu0 0.0
    %2483 = vmatpush1.msra.mxu0 0.0
    %2484 = vmatprep.subr.mxu0 0.0
    %2485 = vmatpush1.msra.mxu0 0.0
    %2486 = vmatprep.subr.mxu0 0.0
    %2487 = vmatpush1.msra.mxu0 0.0
    %2488 = vmatprep.subr.mxu0 0.0
    %2489 = vmatpush1.msra.mxu0 0.0
    %2490 = vmatprep.subr.mxu0 0.0
    %2491 = vmatpush1.msra.mxu0 0.0
    %2492 = vmatprep.subr.mxu0 0.0
    %2493 = vmatpush1.msra.mxu0 0.0
    %2494 = vmatprep.subr.mxu0 0.0
    %2495 = vmatpush1.msra.mxu0 0.0
    %2496 = vmatprep.subr.mxu0 0.0
    %2497 = vmatpush1.msra.mxu0 0.0
    %2498 = vmatprep.subr.mxu0 0.0
    %2499 = vmatpush1.msra.mxu0 0.0
    %2500 = vmatprep.subr.mxu0 0.0
    %2501 = vmatpush1.msra.mxu0 0.0
    %2502 = vmatprep.subr.mxu0 0.0
    %2503 = vmatpush1.msra.mxu0 0.0
    %2504 = vmatprep.subr.mxu0 0.0
    %2505 = vmatpush1.msra.mxu0 0.0
    %2506 = vmatprep.mubr.f32.mxu0 0.0
    %2507 = vmatmul.mubr.f32.gmra.mrb[0].mxu0 %v2437
    %v2508 = vpop.f32.mrb[0].mxu0
    %v2509 = vadd.f32 0.0, %v2508
    %v2510 = vpop.f32.mrb[0].mxu0
    %2511 = vdwg.mxu0
    %s2512 = scalar_lea.vmem %s0, 216
    %v2513 = vld [vmem:[%s2512] sm:$0xff]
    %s2514 = scalar_lea.vmem [#allocation2], 2808
    %v2515 = vld [vmem:[%s2514] sm:$0xff]
    %v2516 = vld [vmem:[%s2514 + $0x8] sm:$0xff]
    %v2517 = vld [vmem:[%s2514 + $0x10] sm:$0xff]
    %v2518 = vld [vmem:[%s2514 + $0x18] sm:$0xff]
    %v2519 = vld [vmem:[%s2514 + $0x20] sm:$0xff]
    %v2520 = vld [vmem:[%s2514 + $0x28] sm:$0xff]
    %v2521 = vld [vmem:[%s2514 + $0x30] sm:$0xff]
    %v2522 = vld [vmem:[%s2514 + $0x38] sm:$0xff]
    %v2523 = vld [vmem:[%s2514 + $0x40] sm:$0xff]
    %v2524 = vld [vmem:[%s2514 + $0x48] sm:$0xff]
    %v2525 = vld [vmem:[%s2514 + $0x50] sm:$0xff]
    %v2526 = vld [vmem:[%s2514 + $0x58] sm:$0xff]
    %v2527 = vld [vmem:[%s2514 + $0x60] sm:$0xf]
    %v2529 = vsel %vm42, %v2513, 0
    %v2532 = vsel %vm46, %v2527, 0
    %2534 = vmatprep.subr.mxu0 0.0
    %2535 = vmatpush1.msra.mxu0 %v2515
    %2536 = vmatprep.subr.mxu0 0.0
    %2537 = vmatpush1.msra.mxu0 %v2516
    %2538 = vmatprep.subr.mxu0 0.0
    %2539 = vmatpush1.msra.mxu0 %v2517
    %2540 = vmatprep.subr.mxu0 0.0
    %2541 = vmatpush1.msra.mxu0 %v2518
    %2542 = vmatprep.subr.mxu0 0.0
    %2543 = vmatpush1.msra.mxu0 %v2519
    %2544 = vmatprep.subr.mxu0 0.0
    %2545 = vmatpush1.msra.mxu0 %v2520
    %2546 = vmatprep.subr.mxu0 0.0
    %2547 = vmatpush1.msra.mxu0 %v2521
    %2548 = vmatprep.subr.mxu0 0.0
    %2549 = vmatpush1.msra.mxu0 %v2522
    %2550 = vmatprep.subr.mxu0 0.0
    %2551 = vmatpush1.msra.mxu0 %v2523
    %2552 = vmatprep.subr.mxu0 0.0
    %2553 = vmatpush1.msra.mxu0 %v2524
    %2554 = vmatprep.subr.mxu0 0.0
    %2555 = vmatpush1.msra.mxu0 %v2525
    %2556 = vmatprep.subr.mxu0 0.0
    %2557 = vmatpush1.msra.mxu0 %v2526
    %2558 = vmatprep.subr.mxu0 0.0
    %2559 = vmatpush1.msra.mxu0 %v2532
    %2560 = vmatprep.subr.mxu0 0.0
    %2561 = vmatpush1.msra.mxu0 0.0
    %2562 = vmatprep.subr.mxu0 0.0
    %2563 = vmatpush1.msra.mxu0 0.0
    %2564 = vmatprep.subr.mxu0 0.0
    %2565 = vmatpush1.msra.mxu0 0.0
    %2566 = vmatprep.subr.mxu0 0.0
    %2567 = vmatpush1.msra.mxu0 0.0
    %2568 = vmatprep.subr.mxu0 0.0
    %2569 = vmatpush1.msra.mxu0 0.0
    %2570 = vmatprep.subr.mxu0 0.0
    %2571 = vmatpush1.msra.mxu0 0.0
    %2572 = vmatprep.subr.mxu0 0.0
    %2573 = vmatpush1.msra.mxu0 0.0
    %2574 = vmatprep.subr.mxu0 0.0
    %2575 = vmatpush1.msra.mxu0 0.0
    %2576 = vmatprep.subr.mxu0 0.0
    %2577 = vmatpush1.msra.mxu0 0.0
    %2578 = vmatprep.subr.mxu0 0.0
    %2579 = vmatpush1.msra.mxu0 0.0
    %2580 = vmatprep.subr.mxu0 0.0
    %2581 = vmatpush1.msra.mxu0 0.0
    %2582 = vmatprep.subr.mxu0 0.0
    %2583 = vmatpush1.msra.mxu0 0.0
    %2584 = vmatprep.subr.mxu0 0.0
    %2585 = vmatpush1.msra.mxu0 0.0
    %2586 = vmatprep.subr.mxu0 0.0
    %2587 = vmatpush1.msra.mxu0 0.0
    %2588 = vmatprep.subr.mxu0 0.0
    %2589 = vmatpush1.msra.mxu0 0.0
    %2590 = vmatprep.subr.mxu0 0.0
    %2591 = vmatpush1.msra.mxu0 0.0
    %2592 = vmatprep.subr.mxu0 0.0
    %2593 = vmatpush1.msra.mxu0 0.0
    %2594 = vmatprep.subr.mxu0 0.0
    %2595 = vmatpush1.msra.mxu0 0.0
    %2596 = vmatprep.subr.mxu0 0.0
    %2597 = vmatpush1.msra.mxu0 0.0
    %2598 = vmatprep.mubr.f32.mxu0 0.0
    %2599 = vmatmul.mubr.f32.gmra.mrb[0].mxu0 %v2529
    %v2600 = vpop.f32.mrb[0].mxu0
    %v2601 = vadd.f32 0.0, %v2600
    %v2602 = vpop.f32.mrb[0].mxu0
    %2603 = vdwg.mxu0
    %s2604 = scalar_lea.vmem %s0, 224
    %v2605 = vld [vmem:[%s2604] sm:$0xff]
    %s2606 = scalar_lea.vmem [#allocation2], 2912
    %v2607 = vld [vmem:[%s2606] sm:$0xff]
    %v2608 = vld [vmem:[%s2606 + $0x8] sm:$0xff]
    %v2609 = vld [vmem:[%s2606 + $0x10] sm:$0xff]
    %v2610 = vld [vmem:[%s2606 + $0x18] sm:$0xff]
    %v2611 = vld [vmem:[%s2606 + $0x20] sm:$0xff]
    %v2612 = vld [vmem:[%s2606 + $0x28] sm:$0xff]
    %v2613 = vld [vmem:[%s2606 + $0x30] sm:$0xff]
    %v2614 = vld [vmem:[%s2606 + $0x38] sm:$0xff]
    %v2615 = vld [vmem:[%s2606 + $0x40] sm:$0xff]
    %v2616 = vld [vmem:[%s2606 + $0x48] sm:$0xff]
    %v2617 = vld [vmem:[%s2606 + $0x50] sm:$0xff]
    %v2618 = vld [vmem:[%s2606 + $0x58] sm:$0xff]
    %v2619 = vld [vmem:[%s2606 + $0x60] sm:$0xf]
    %v2621 = vsel %vm42, %v2605, 0
    %v2624 = vsel %vm46, %v2619, 0
    %2626 = vmatprep.subr.mxu0 0.0
    %2627 = vmatpush1.msra.mxu0 %v2607
    %2628 = vmatprep.subr.mxu0 0.0
    %2629 = vmatpush1.msra.mxu0 %v2608
    %2630 = vmatprep.subr.mxu0 0.0
    %2631 = vmatpush1.msra.mxu0 %v2609
    %2632 = vmatprep.subr.mxu0 0.0
    %2633 = vmatpush1.msra.mxu0 %v2610
    %2634 = vmatprep.subr.mxu0 0.0
    %2635 = vmatpush1.msra.mxu0 %v2611
    %2636 = vmatprep.subr.mxu0 0.0
    %2637 = vmatpush1.msra.mxu0 %v2612
    %2638 = vmatprep.subr.mxu0 0.0
    %2639 = vmatpush1.msra.mxu0 %v2613
    %2640 = vmatprep.subr.mxu0 0.0
    %2641 = vmatpush1.msra.mxu0 %v2614
    %2642 = vmatprep.subr.mxu0 0.0
    %2643 = vmatpush1.msra.mxu0 %v2615
    %2644 = vmatprep.subr.mxu0 0.0
    %2645 = vmatpush1.msra.mxu0 %v2616
    %2646 = vmatprep.subr.mxu0 0.0
    %2647 = vmatpush1.msra.mxu0 %v2617
    %2648 = vmatprep.subr.mxu0 0.0
    %2649 = vmatpush1.msra.mxu0 %v2618
    %2650 = vmatprep.subr.mxu0 0.0
    %2651 = vmatpush1.msra.mxu0 %v2624
    %2652 = vmatprep.subr.mxu0 0.0
    %2653 = vmatpush1.msra.mxu0 0.0
    %2654 = vmatprep.subr.mxu0 0.0
    %2655 = vmatpush1.msra.mxu0 0.0
    %2656 = vmatprep.subr.mxu0 0.0
    %2657 = vmatpush1.msra.mxu0 0.0
    %2658 = vmatprep.subr.mxu0 0.0
    %2659 = vmatpush1.msra.mxu0 0.0
    %2660 = vmatprep.subr.mxu0 0.0
    %2661 = vmatpush1.msra.mxu0 0.0
    %2662 = vmatprep.subr.mxu0 0.0
    %2663 = vmatpush1.msra.mxu0 0.0
    %2664 = vmatprep.subr.mxu0 0.0
    %2665 = vmatpush1.msra.mxu0 0.0
    %2666 = vmatprep.subr.mxu0 0.0
    %2667 = vmatpush1.msra.mxu0 0.0
    %2668 = vmatprep.subr.mxu0 0.0
    %2669 = vmatpush1.msra.mxu0 0.0
    %2670 = vmatprep.subr.mxu0 0.0
    %2671 = vmatpush1.msra.mxu0 0.0
    %2672 = vmatprep.subr.mxu0 0.0
    %2673 = vmatpush1.msra.mxu0 0.0
    %2674 = vmatprep.subr.mxu0 0.0
    %2675 = vmatpush1.msra.mxu0 0.0
    %2676 = vmatprep.subr.mxu0 0.0
    %2677 = vmatpush1.msra.mxu0 0.0
    %2678 = vmatprep.subr.mxu0 0.0
    %2679 = vmatpush1.msra.mxu0 0.0
    %2680 = vmatprep.subr.mxu0 0.0
    %2681 = vmatpush1.msra.mxu0 0.0
    %2682 = vmatprep.subr.mxu0 0.0
    %2683 = vmatpush1.msra.mxu0 0.0
    %2684 = vmatprep.subr.mxu0 0.0
    %2685 = vmatpush1.msra.mxu0 0.0
    %2686 = vmatprep.subr.mxu0 0.0
    %2687 = vmatpush1.msra.mxu0 0.0
    %2688 = vmatprep.subr.mxu0 0.0
    %2689 = vmatpush1.msra.mxu0 0.0
    %2690 = vmatprep.mubr.f32.mxu0 0.0
    %2691 = vmatmul.mubr.f32.gmra.mrb[0].mxu0 %v2621
    %v2692 = vpop.f32.mrb[0].mxu0
    %v2693 = vadd.f32 0.0, %v2692
    %v2694 = vpop.f32.mrb[0].mxu0
    %2695 = vdwg.mxu0
    %s2696 = scalar_lea.vmem %s0, 232
    %v2697 = vld [vmem:[%s2696] sm:$0xff]
    %s2698 = scalar_lea.vmem [#allocation2], 3016
    %v2699 = vld [vmem:[%s2698] sm:$0xff]
    %v2700 = vld [vmem:[%s2698 + $0x8] sm:$0xff]
    %v2701 = vld [vmem:[%s2698 + $0x10] sm:$0xff]
    %v2702 = vld [vmem:[%s2698 + $0x18] sm:$0xff]
    %v2703 = vld [vmem:[%s2698 + $0x20] sm:$0xff]
    %v2704 = vld [vmem:[%s2698 + $0x28] sm:$0xff]
    %v2705 = vld [vmem:[%s2698 + $0x30] sm:$0xff]
    %v2706 = vld [vmem:[%s2698 + $0x38] sm:$0xff]
    %v2707 = vld [vmem:[%s2698 + $0x40] sm:$0xff]
    %v2708 = vld [vmem:[%s2698 + $0x48] sm:$0xff]
    %v2709 = vld [vmem:[%s2698 + $0x50] sm:$0xff]
    %v2710 = vld [vmem:[%s2698 + $0x58] sm:$0xff]
    %v2711 = vld [vmem:[%s2698 + $0x60] sm:$0xf]
    %v2713 = vsel %vm42, %v2697, 0
    %v2716 = vsel %vm46, %v2711, 0
    %2718 = vmatprep.subr.mxu0 0.0
    %2719 = vmatpush1.msra.mxu0 %v2699
    %2720 = vmatprep.subr.mxu0 0.0
    %2721 = vmatpush1.msra.mxu0 %v2700
    %2722 = vmatprep.subr.mxu0 0.0
    %2723 = vmatpush1.msra.mxu0 %v2701
    %2724 = vmatprep.subr.mxu0 0.0
    %2725 = vmatpush1.msra.mxu0 %v2702
    %2726 = vmatprep.subr.mxu0 0.0
    %2727 = vmatpush1.msra.mxu0 %v2703
    %2728 = vmatprep.subr.mxu0 0.0
    %2729 = vmatpush1.msra.mxu0 %v2704
    %2730 = vmatprep.subr.mxu0 0.0
    %2731 = vmatpush1.msra.mxu0 %v2705
    %2732 = vmatprep.subr.mxu0 0.0
    %2733 = vmatpush1.msra.mxu0 %v2706
    %2734 = vmatprep.subr.mxu0 0.0
    %2735 = vmatpush1.msra.mxu0 %v2707
    %2736 = vmatprep.subr.mxu0 0.0
    %2737 = vmatpush1.msra.mxu0 %v2708
    %2738 = vmatprep.subr.mxu0 0.0
    %2739 = vmatpush1.msra.mxu0 %v2709
    %2740 = vmatprep.subr.mxu0 0.0
    %2741 = vmatpush1.msra.mxu0 %v2710
    %2742 = vmatprep.subr.mxu0 0.0
    %2743 = vmatpush1.msra.mxu0 %v2716
    %2744 = vmatprep.subr.mxu0 0.0
    %2745 = vmatpush1.msra.mxu0 0.0
    %2746 = vmatprep.subr.mxu0 0.0
    %2747 = vmatpush1.msra.mxu0 0.0
    %2748 = vmatprep.subr.mxu0 0.0
    %2749 = vmatpush1.msra.mxu0 0.0
    %2750 = vmatprep.subr.mxu0 0.0
    %2751 = vmatpush1.msra.mxu0 0.0
    %2752 = vmatprep.subr.mxu0 0.0
    %2753 = vmatpush1.msra.mxu0 0.0
    %2754 = vmatprep.subr.mxu0 0.0
    %2755 = vmatpush1.msra.mxu0 0.0
    %2756 = vmatprep.subr.mxu0 0.0
    %2757 = vmatpush1.msra.mxu0 0.0
    %2758 = vmatprep.subr.mxu0 0.0
    %2759 = vmatpush1.msra.mxu0 0.0
    %2760 = vmatprep.subr.mxu0 0.0
    %2761 = vmatpush1.msra.mxu0 0.0
    %2762 = vmatprep.subr.mxu0 0.0
    %2763 = vmatpush1.msra.mxu0 0.0
    %2764 = vmatprep.subr.mxu0 0.0
    %2765 = vmatpush1.msra.mxu0 0.0
    %2766 = vmatprep.subr.mxu0 0.0
    %2767 = vmatpush1.msra.mxu0 0.0
    %2768 = vmatprep.subr.mxu0 0.0
    %2769 = vmatpush1.msra.mxu0 0.0
    %2770 = vmatprep.subr.mxu0 0.0
    %2771 = vmatpush1.msra.mxu0 0.0
    %2772 = vmatprep.subr.mxu0 0.0
    %2773 = vmatpush1.msra.mxu0 0.0
    %2774 = vmatprep.subr.mxu0 0.0
    %2775 = vmatpush1.msra.mxu0 0.0
    %2776 = vmatprep.subr.mxu0 0.0
    %2777 = vmatpush1.msra.mxu0 0.0
    %2778 = vmatprep.subr.mxu0 0.0
    %2779 = vmatpush1.msra.mxu0 0.0
    %2780 = vmatprep.subr.mxu0 0.0
    %2781 = vmatpush1.msra.mxu0 0.0
    %2782 = vmatprep.mubr.f32.mxu0 0.0
    %2783 = vmatmul.mubr.f32.gmra.mrb[0].mxu0 %v2713
    %v2784 = vpop.f32.mrb[0].mxu0
    %v2785 = vadd.f32 0.0, %v2784
    %v2786 = vpop.f32.mrb[0].mxu0
    %2787 = vdwg.mxu0
    %s2788 = scalar_lea.vmem %s0, 240
    %v2789 = vld [vmem:[%s2788] sm:$0xff]
    %s2790 = scalar_lea.vmem [#allocation2], 3120
    %v2791 = vld [vmem:[%s2790] sm:$0xff]
    %v2792 = vld [vmem:[%s2790 + $0x8] sm:$0xff]
    %v2793 = vld [vmem:[%s2790 + $0x10] sm:$0xff]
    %v2794 = vld [vmem:[%s2790 + $0x18] sm:$0xff]
    %v2795 = vld [vmem:[%s2790 + $0x20] sm:$0xff]
    %v2796 = vld [vmem:[%s2790 + $0x28] sm:$0xff]
    %v2797 = vld [vmem:[%s2790 + $0x30] sm:$0xff]
    %v2798 = vld [vmem:[%s2790 + $0x38] sm:$0xff]
    %v2799 = vld [vmem:[%s2790 + $0x40] sm:$0xff]
    %v2800 = vld [vmem:[%s2790 + $0x48] sm:$0xff]
    %v2801 = vld [vmem:[%s2790 + $0x50] sm:$0xff]
    %v2802 = vld [vmem:[%s2790 + $0x58] sm:$0xff]
    %v2803 = vld [vmem:[%s2790 + $0x60] sm:$0xf]
    %v2805 = vsel %vm42, %v2789, 0
    %v2808 = vsel %vm46, %v2803, 0
    %2810 = vmatprep.subr.mxu0 0.0
    %2811 = vmatpush1.msra.mxu0 %v2791
    %2812 = vmatprep.subr.mxu0 0.0
    %2813 = vmatpush1.msra.mxu0 %v2792
    %2814 = vmatprep.subr.mxu0 0.0
    %2815 = vmatpush1.msra.mxu0 %v2793
    %2816 = vmatprep.subr.mxu0 0.0
    %2817 = vmatpush1.msra.mxu0 %v2794
    %2818 = vmatprep.subr.mxu0 0.0
    %2819 = vmatpush1.msra.mxu0 %v2795
    %2820 = vmatprep.subr.mxu0 0.0
    %2821 = vmatpush1.msra.mxu0 %v2796
    %2822 = vmatprep.subr.mxu0 0.0
    %2823 = vmatpush1.msra.mxu0 %v2797
    %2824 = vmatprep.subr.mxu0 0.0
    %2825 = vmatpush1.msra.mxu0 %v2798
    %2826 = vmatprep.subr.mxu0 0.0
    %2827 = vmatpush1.msra.mxu0 %v2799
    %2828 = vmatprep.subr.mxu0 0.0
    %2829 = vmatpush1.msra.mxu0 %v2800
    %2830 = vmatprep.subr.mxu0 0.0
    %2831 = vmatpush1.msra.mxu0 %v2801
    %2832 = vmatprep.subr.mxu0 0.0
    %2833 = vmatpush1.msra.mxu0 %v2802
    %2834 = vmatprep.subr.mxu0 0.0
    %2835 = vmatpush1.msra.mxu0 %v2808
    %2836 = vmatprep.subr.mxu0 0.0
    %2837 = vmatpush1.msra.mxu0 0.0
    %2838 = vmatprep.subr.mxu0 0.0
    %2839 = vmatpush1.msra.mxu0 0.0
    %2840 = vmatprep.subr.mxu0 0.0
    %2841 = vmatpush1.msra.mxu0 0.0
    %2842 = vmatprep.subr.mxu0 0.0
    %2843 = vmatpush1.msra.mxu0 0.0
    %2844 = vmatprep.subr.mxu0 0.0
    %2845 = vmatpush1.msra.mxu0 0.0
    %2846 = vmatprep.subr.mxu0 0.0
    %2847 = vmatpush1.msra.mxu0 0.0
    %2848 = vmatprep.subr.mxu0 0.0
    %2849 = vmatpush1.msra.mxu0 0.0
    %2850 = vmatprep.subr.mxu0 0.0
    %2851 = vmatpush1.msra.mxu0 0.0
    %2852 = vmatprep.subr.mxu0 0.0
    %2853 = vmatpush1.msra.mxu0 0.0
    %2854 = vmatprep.subr.mxu0 0.0
    %2855 = vmatpush1.msra.mxu0 0.0
    %2856 = vmatprep.subr.mxu0 0.0
    %2857 = vmatpush1.msra.mxu0 0.0
    %2858 = vmatprep.subr.mxu0 0.0
    %2859 = vmatpush1.msra.mxu0 0.0
    %2860 = vmatprep.subr.mxu0 0.0
    %2861 = vmatpush1.msra.mxu0 0.0
    %2862 = vmatprep.subr.mxu0 0.0
    %2863 = vmatpush1.msra.mxu0 0.0
    %2864 = vmatprep.subr.mxu0 0.0
    %2865 = vmatpush1.msra.mxu0 0.0
    %2866 = vmatprep.subr.mxu0 0.0
    %2867 = vmatpush1.msra.mxu0 0.0
    %2868 = vmatprep.subr.mxu0 0.0
    %2869 = vmatpush1.msra.mxu0 0.0
    %2870 = vmatprep.subr.mxu0 0.0
    %2871 = vmatpush1.msra.mxu0 0.0
    %2872 = vmatprep.subr.mxu0 0.0
    %2873 = vmatpush1.msra.mxu0 0.0
    %2874 = vmatprep.mubr.f32.mxu0 0.0
    %2875 = vmatmul.mubr.f32.gmra.mrb[0].mxu0 %v2805
    %v2876 = vpop.f32.mrb[0].mxu0
    %v2877 = vadd.f32 0.0, %v2876
    %v2878 = vpop.f32.mrb[0].mxu0
    %2879 = vdwg.mxu0
    %s2880 = scalar_lea.vmem %s0, 248
    %v2881 = vld [vmem:[%s2880] sm:$0xff]
    %s2882 = scalar_lea.vmem [#allocation2], 3224
    %v2883 = vld [vmem:[%s2882] sm:$0xff]
    %v2884 = vld [vmem:[%s2882 + $0x8] sm:$0xff]
    %v2885 = vld [vmem:[%s2882 + $0x10] sm:$0xff]
    %v2886 = vld [vmem:[%s2882 + $0x18] sm:$0xff]
    %v2887 = vld [vmem:[%s2882 + $0x20] sm:$0xff]
    %v2888 = vld [vmem:[%s2882 + $0x28] sm:$0xff]
    %v2889 = vld [vmem:[%s2882 + $0x30] sm:$0xff]
    %v2890 = vld [vmem:[%s2882 + $0x38] sm:$0xff]
    %v2891 = vld [vmem:[%s2882 + $0x40] sm:$0xff]
    %v2892 = vld [vmem:[%s2882 + $0x48] sm:$0xff]
    %v2893 = vld [vmem:[%s2882 + $0x50] sm:$0xff]
    %v2894 = vld [vmem:[%s2882 + $0x58] sm:$0xff]
    %v2895 = vld [vmem:[%s2882 + $0x60] sm:$0xf]
    %v2897 = vsel %vm42, %v2881, 0
    %v2900 = vsel %vm46, %v2895, 0
    %2902 = vmatprep.subr.mxu0 0.0
    %2903 = vmatpush1.msra.mxu0 %v2883
    %2904 = vmatprep.subr.mxu0 0.0
    %2905 = vmatpush1.msra.mxu0 %v2884
    %2906 = vmatprep.subr.mxu0 0.0
    %2907 = vmatpush1.msra.mxu0 %v2885
    %2908 = vmatprep.subr.mxu0 0.0
    %2909 = vmatpush1.msra.mxu0 %v2886
    %2910 = vmatprep.subr.mxu0 0.0
    %2911 = vmatpush1.msra.mxu0 %v2887
    %2912 = vmatprep.subr.mxu0 0.0
    %2913 = vmatpush1.msra.mxu0 %v2888
    %2914 = vmatprep.subr.mxu0 0.0
    %2915 = vmatpush1.msra.mxu0 %v2889
    %2916 = vmatprep.subr.mxu0 0.0
    %2917 = vmatpush1.msra.mxu0 %v2890
    %2918 = vmatprep.subr.mxu0 0.0
    %2919 = vmatpush1.msra.mxu0 %v2891
    %2920 = vmatprep.subr.mxu0 0.0
    %2921 = vmatpush1.msra.mxu0 %v2892
    %2922 = vmatprep.subr.mxu0 0.0
    %2923 = vmatpush1.msra.mxu0 %v2893
    %2924 = vmatprep.subr.mxu0 0.0
    %2925 = vmatpush1.msra.mxu0 %v2894
    %2926 = vmatprep.subr.mxu0 0.0
    %2927 = vmatpush1.msra.mxu0 %v2900
    %2928 = vmatprep.subr.mxu0 0.0
    %2929 = vmatpush1.msra.mxu0 0.0
    %2930 = vmatprep.subr.mxu0 0.0
    %2931 = vmatpush1.msra.mxu0 0.0
    %2932 = vmatprep.subr.mxu0 0.0
    %2933 = vmatpush1.msra.mxu0 0.0
    %2934 = vmatprep.subr.mxu0 0.0
    %2935 = vmatpush1.msra.mxu0 0.0
    %2936 = vmatprep.subr.mxu0 0.0
    %2937 = vmatpush1.msra.mxu0 0.0
    %2938 = vmatprep.subr.mxu0 0.0
    %2939 = vmatpush1.msra.mxu0 0.0
    %2940 = vmatprep.subr.mxu0 0.0
    %2941 = vmatpush1.msra.mxu0 0.0
    %2942 = vmatprep.subr.mxu0 0.0
    %2943 = vmatpush1.msra.mxu0 0.0
    %2944 = vmatprep.subr.mxu0 0.0
    %2945 = vmatpush1.msra.mxu0 0.0
    %2946 = vmatprep.subr.mxu0 0.0
    %2947 = vmatpush1.msra.mxu0 0.0
    %2948 = vmatprep.subr.mxu0 0.0
    %2949 = vmatpush1.msra.mxu0 0.0
    %2950 = vmatprep.subr.mxu0 0.0
    %2951 = vmatpush1.msra.mxu0 0.0
    %2952 = vmatprep.subr.mxu0 0.0
    %2953 = vmatpush1.msra.mxu0 0.0
    %2954 = vmatprep.subr.mxu0 0.0
    %2955 = vmatpush1.msra.mxu0 0.0
    %2956 = vmatprep.subr.mxu0 0.0
    %2957 = vmatpush1.msra.mxu0 0.0
    %2958 = vmatprep.subr.mxu0 0.0
    %2959 = vmatpush1.msra.mxu0 0.0
    %2960 = vmatprep.subr.mxu0 0.0
    %2961 = vmatpush1.msra.mxu0 0.0
    %2962 = vmatprep.subr.mxu0 0.0
    %2963 = vmatpush1.msra.mxu0 0.0
    %2964 = vmatprep.subr.mxu0 0.0
    %2965 = vmatpush1.msra.mxu0 0.0
    %2966 = vmatprep.mubr.f32.mxu0 0.0
    %2967 = vmatmul.mubr.f32.gmra.mrb[0].mxu0 %v2897
    %v2968 = vpop.f32.mrb[0].mxu0
    %v2969 = vadd.f32 0.0, %v2968
    %v2970 = vpop.f32.mrb[0].mxu0
    %2971 = vdwg.mxu0
    %s2972 = scalar_lea.vmem %s0, 256
    %v2973 = vld [vmem:[%s2972] sm:$0xff]
    %s2974 = scalar_lea.vmem [#allocation2], 3328
    %v2975 = vld [vmem:[%s2974] sm:$0xff]
    %v2976 = vld [vmem:[%s2974 + $0x8] sm:$0xff]
    %v2977 = vld [vmem:[%s2974 + $0x10] sm:$0xff]
    %v2978 = vld [vmem:[%s2974 + $0x18] sm:$0xff]
    %v2979 = vld [vmem:[%s2974 + $0x20] sm:$0xff]
    %v2980 = vld [vmem:[%s2974 + $0x28] sm:$0xff]
    %v2981 = vld [vmem:[%s2974 + $0x30] sm:$0xff]
    %v2982 = vld [vmem:[%s2974 + $0x38] sm:$0xff]
    %v2983 = vld [vmem:[%s2974 + $0x40] sm:$0xff]
    %v2984 = vld [vmem:[%s2974 + $0x48] sm:$0xff]
    %v2985 = vld [vmem:[%s2974 + $0x50] sm:$0xff]
    %v2986 = vld [vmem:[%s2974 + $0x58] sm:$0xff]
    %v2987 = vld [vmem:[%s2974 + $0x60] sm:$0xf]
    %v2989 = vsel %vm42, %v2973, 0
    %v2992 = vsel %vm46, %v2987, 0
    %2994 = vmatprep.subr.mxu0 0.0
    %2995 = vmatpush1.msra.mxu0 %v2975
    %2996 = vmatprep.subr.mxu0 0.0
    %2997 = vmatpush1.msra.mxu0 %v2976
    %2998 = vmatprep.subr.mxu0 0.0
    %2999 = vmatpush1.msra.mxu0 %v2977
    %3000 = vmatprep.subr.mxu0 0.0
    %3001 = vmatpush1.msra.mxu0 %v2978
    %3002 = vmatprep.subr.mxu0 0.0
    %3003 = vmatpush1.msra.mxu0 %v2979
    %3004 = vmatprep.subr.mxu0 0.0
    %3005 = vmatpush1.msra.mxu0 %v2980
    %3006 = vmatprep.subr.mxu0 0.0
    %3007 = vmatpush1.msra.mxu0 %v2981
    %3008 = vmatprep.subr.mxu0 0.0
    %3009 = vmatpush1.msra.mxu0 %v2982
    %3010 = vmatprep.subr.mxu0 0.0
    %3011 = vmatpush1.msra.mxu0 %v2983
    %3012 = vmatprep.subr.mxu0 0.0
    %3013 = vmatpush1.msra.mxu0 %v2984
    %3014 = vmatprep.subr.mxu0 0.0
    %3015 = vmatpush1.msra.mxu0 %v2985
    %3016 = vmatprep.subr.mxu0 0.0
    %3017 = vmatpush1.msra.mxu0 %v2986
    %3018 = vmatprep.subr.mxu0 0.0
    %3019 = vmatpush1.msra.mxu0 %v2992
    %3020 = vmatprep.subr.mxu0 0.0
    %3021 = vmatpush1.msra.mxu0 0.0
    %3022 = vmatprep.subr.mxu0 0.0
    %3023 = vmatpush1.msra.mxu0 0.0
    %3024 = vmatprep.subr.mxu0 0.0
    %3025 = vmatpush1.msra.mxu0 0.0
    %3026 = vmatprep.subr.mxu0 0.0
    %3027 = vmatpush1.msra.mxu0 0.0
    %3028 = vmatprep.subr.mxu0 0.0
    %3029 = vmatpush1.msra.mxu0 0.0
    %3030 = vmatprep.subr.mxu0 0.0
    %3031 = vmatpush1.msra.mxu0 0.0
    %3032 = vmatprep.subr.mxu0 0.0
    %3033 = vmatpush1.msra.mxu0 0.0
    %3034 = vmatprep.subr.mxu0 0.0
    %3035 = vmatpush1.msra.mxu0 0.0
    %3036 = vmatprep.subr.mxu0 0.0
    %3037 = vmatpush1.msra.mxu0 0.0
    %3038 = vmatprep.subr.mxu0 0.0
    %3039 = vmatpush1.msra.mxu0 0.0
    %3040 = vmatprep.subr.mxu0 0.0
    %3041 = vmatpush1.msra.mxu0 0.0
    %3042 = vmatprep.subr.mxu0 0.0
    %3043 = vmatpush1.msra.mxu0 0.0
    %3044 = vmatprep.subr.mxu0 0.0
    %3045 = vmatpush1.msra.mxu0 0.0
    %3046 = vmatprep.subr.mxu0 0.0
    %3047 = vmatpush1.msra.mxu0 0.0
    %3048 = vmatprep.subr.mxu0 0.0
    %3049 = vmatpush1.msra.mxu0 0.0
    %3050 = vmatprep.subr.mxu0 0.0
    %3051 = vmatpush1.msra.mxu0 0.0
    %3052 = vmatprep.subr.mxu0 0.0
    %3053 = vmatpush1.msra.mxu0 0.0
    %3054 = vmatprep.subr.mxu0 0.0
    %3055 = vmatpush1.msra.mxu0 0.0
    %3056 = vmatprep.subr.mxu0 0.0
    %3057 = vmatpush1.msra.mxu0 0.0
    %3058 = vmatprep.mubr.f32.mxu0 0.0
    %3059 = vmatmul.mubr.f32.gmra.mrb[0].mxu0 %v2989
    %v3060 = vpop.f32.mrb[0].mxu0
    %v3061 = vadd.f32 0.0, %v3060
    %v3062 = vpop.f32.mrb[0].mxu0
    %3063 = vdwg.mxu0
    %s3064 = scalar_lea.vmem %s0, 264
    %v3065 = vld [vmem:[%s3064] sm:$0xff]
    %s3066 = scalar_lea.vmem [#allocation2], 3432
    %v3067 = vld [vmem:[%s3066] sm:$0xff]
    %v3068 = vld [vmem:[%s3066 + $0x8] sm:$0xff]
    %v3069 = vld [vmem:[%s3066 + $0x10] sm:$0xff]
    %v3070 = vld [vmem:[%s3066 + $0x18] sm:$0xff]
    %v3071 = vld [vmem:[%s3066 + $0x20] sm:$0xff]
    %v3072 = vld [vmem:[%s3066 + $0x28] sm:$0xff]
    %v3073 = vld [vmem:[%s3066 + $0x30] sm:$0xff]
    %v3074 = vld [vmem:[%s3066 + $0x38] sm:$0xff]
    %v3075 = vld [vmem:[%s3066 + $0x40] sm:$0xff]
    %v3076 = vld [vmem:[%s3066 + $0x48] sm:$0xff]
    %v3077 = vld [vmem:[%s3066 + $0x50] sm:$0xff]
    %v3078 = vld [vmem:[%s3066 + $0x58] sm:$0xff]
    %v3079 = vld [vmem:[%s3066 + $0x60] sm:$0xf]
    %v3081 = vsel %vm42, %v3065, 0
    %v3084 = vsel %vm46, %v3079, 0
    %3086 = vmatprep.subr.mxu0 0.0
    %3087 = vmatpush1.msra.mxu0 %v3067
    %3088 = vmatprep.subr.mxu0 0.0
    %3089 = vmatpush1.msra.mxu0 %v3068
    %3090 = vmatprep.subr.mxu0 0.0
    %3091 = vmatpush1.msra.mxu0 %v3069
    %3092 = vmatprep.subr.mxu0 0.0
    %3093 = vmatpush1.msra.mxu0 %v3070
    %3094 = vmatprep.subr.mxu0 0.0
    %3095 = vmatpush1.msra.mxu0 %v3071
    %3096 = vmatprep.subr.mxu0 0.0
    %3097 = vmatpush1.msra.mxu0 %v3072
    %3098 = vmatprep.subr.mxu0 0.0
    %3099 = vmatpush1.msra.mxu0 %v3073
    %3100 = vmatprep.subr.mxu0 0.0
    %3101 = vmatpush1.msra.mxu0 %v3074
    %3102 = vmatprep.subr.mxu0 0.0
    %3103 = vmatpush1.msra.mxu0 %v3075
    %3104 = vmatprep.subr.mxu0 0.0
    %3105 = vmatpush1.msra.mxu0 %v3076
    %3106 = vmatprep.subr.mxu0 0.0
    %3107 = vmatpush1.msra.mxu0 %v3077
    %3108 = vmatprep.subr.mxu0 0.0
    %3109 = vmatpush1.msra.mxu0 %v3078
    %3110 = vmatprep.subr.mxu0 0.0
    %3111 = vmatpush1.msra.mxu0 %v3084
    %3112 = vmatprep.subr.mxu0 0.0
    %3113 = vmatpush1.msra.mxu0 0.0
    %3114 = vmatprep.subr.mxu0 0.0
    %3115 = vmatpush1.msra.mxu0 0.0
    %3116 = vmatprep.subr.mxu0 0.0
    %3117 = vmatpush1.msra.mxu0 0.0
    %3118 = vmatprep.subr.mxu0 0.0
    %3119 = vmatpush1.msra.mxu0 0.0
    %3120 = vmatprep.subr.mxu0 0.0
    %3121 = vmatpush1.msra.mxu0 0.0
    %3122 = vmatprep.subr.mxu0 0.0
    %3123 = vmatpush1.msra.mxu0 0.0
    %3124 = vmatprep.subr.mxu0 0.0
    %3125 = vmatpush1.msra.mxu0 0.0
    %3126 = vmatprep.subr.mxu0 0.0
    %3127 = vmatpush1.msra.mxu0 0.0
    %3128 = vmatprep.subr.mxu0 0.0
    %3129 = vmatpush1.msra.mxu0 0.0
    %3130 = vmatprep.subr.mxu0 0.0
    %3131 = vmatpush1.msra.mxu0 0.0
    %3132 = vmatprep.subr.mxu0 0.0
    %3133 = vmatpush1.msra.mxu0 0.0
    %3134 = vmatprep.subr.mxu0 0.0
    %3135 = vmatpush1.msra.mxu0 0.0
    %3136 = vmatprep.subr.mxu0 0.0
    %3137 = vmatpush1.msra.mxu0 0.0
    %3138 = vmatprep.subr.mxu0 0.0
    %3139 = vmatpush1.msra.mxu0 0.0
    %3140 = vmatprep.subr.mxu0 0.0
    %3141 = vmatpush1.msra.mxu0 0.0
    %3142 = vmatprep.subr.mxu0 0.0
    %3143 = vmatpush1.msra.mxu0 0.0
    %3144 = vmatprep.subr.mxu0 0.0
    %3145 = vmatpush1.msra.mxu0 0.0
    %3146 = vmatprep.subr.mxu0 0.0
    %3147 = vmatpush1.msra.mxu0 0.0
    %3148 = vmatprep.subr.mxu0 0.0
    %3149 = vmatpush1.msra.mxu0 0.0
    %3150 = vmatprep.mubr.f32.mxu0 0.0
    %3151 = vmatmul.mubr.f32.gmra.mrb[0].mxu0 %v3081
    %v3152 = vpop.f32.mrb[0].mxu0
    %v3153 = vadd.f32 0.0, %v3152
    %v3154 = vpop.f32.mrb[0].mxu0
    %3155 = vdwg.mxu0
    %s3156 = scalar_lea.vmem %s0, 272
    %v3157 = vld [vmem:[%s3156] sm:$0xff]
    %s3158 = scalar_lea.vmem [#allocation2], 3536
    %v3159 = vld [vmem:[%s3158] sm:$0xff]
    %v3160 = vld [vmem:[%s3158 + $0x8] sm:$0xff]
    %v3161 = vld [vmem:[%s3158 + $0x10] sm:$0xff]
    %v3162 = vld [vmem:[%s3158 + $0x18] sm:$0xff]
    %v3163 = vld [vmem:[%s3158 + $0x20] sm:$0xff]
    %v3164 = vld [vmem:[%s3158 + $0x28] sm:$0xff]
    %v3165 = vld [vmem:[%s3158 + $0x30] sm:$0xff]
    %v3166 = vld [vmem:[%s3158 + $0x38] sm:$0xff]
    %v3167 = vld [vmem:[%s3158 + $0x40] sm:$0xff]
    %v3168 = vld [vmem:[%s3158 + $0x48] sm:$0xff]
    %v3169 = vld [vmem:[%s3158 + $0x50] sm:$0xff]
    %v3170 = vld [vmem:[%s3158 + $0x58] sm:$0xff]
    %v3171 = vld [vmem:[%s3158 + $0x60] sm:$0xf]
    %v3173 = vsel %vm42, %v3157, 0
    %v3176 = vsel %vm46, %v3171, 0
    %3178 = vmatprep.subr.mxu0 0.0
    %3179 = vmatpush1.msra.mxu0 %v3159
    %3180 = vmatprep.subr.mxu0 0.0
    %3181 = vmatpush1.msra.mxu0 %v3160
    %3182 = vmatprep.subr.mxu0 0.0
    %3183 = vmatpush1.msra.mxu0 %v3161
    %3184 = vmatprep.subr.mxu0 0.0
    %3185 = vmatpush1.msra.mxu0 %v3162
    %3186 = vmatprep.subr.mxu0 0.0
    %3187 = vmatpush1.msra.mxu0 %v3163
    %3188 = vmatprep.subr.mxu0 0.0
    %3189 = vmatpush1.msra.mxu0 %v3164
    %3190 = vmatprep.subr.mxu0 0.0
    %3191 = vmatpush1.msra.mxu0 %v3165
    %3192 = vmatprep.subr.mxu0 0.0
    %3193 = vmatpush1.msra.mxu0 %v3166
    %3194 = vmatprep.subr.mxu0 0.0
    %3195 = vmatpush1.msra.mxu0 %v3167
    %3196 = vmatprep.subr.mxu0 0.0
    %3197 = vmatpush1.msra.mxu0 %v3168
    %3198 = vmatprep.subr.mxu0 0.0
    %3199 = vmatpush1.msra.mxu0 %v3169
    %3200 = vmatprep.subr.mxu0 0.0
    %3201 = vmatpush1.msra.mxu0 %v3170
    %3202 = vmatprep.subr.mxu0 0.0
    %3203 = vmatpush1.msra.mxu0 %v3176
    %3204 = vmatprep.subr.mxu0 0.0
    %3205 = vmatpush1.msra.mxu0 0.0
    %3206 = vmatprep.subr.mxu0 0.0
    %3207 = vmatpush1.msra.mxu0 0.0
    %3208 = vmatprep.subr.mxu0 0.0
    %3209 = vmatpush1.msra.mxu0 0.0
    %3210 = vmatprep.subr.mxu0 0.0
    %3211 = vmatpush1.msra.mxu0 0.0
    %3212 = vmatprep.subr.mxu0 0.0
    %3213 = vmatpush1.msra.mxu0 0.0
    %3214 = vmatprep.subr.mxu0 0.0
    %3215 = vmatpush1.msra.mxu0 0.0
    %3216 = vmatprep.subr.mxu0 0.0
    %3217 = vmatpush1.msra.mxu0 0.0
    %3218 = vmatprep.subr.mxu0 0.0
    %3219 = vmatpush1.msra.mxu0 0.0
    %3220 = vmatprep.subr.mxu0 0.0
    %3221 = vmatpush1.msra.mxu0 0.0
    %3222 = vmatprep.subr.mxu0 0.0
    %3223 = vmatpush1.msra.mxu0 0.0
    %3224 = vmatprep.subr.mxu0 0.0
    %3225 = vmatpush1.msra.mxu0 0.0
    %3226 = vmatprep.subr.mxu0 0.0
    %3227 = vmatpush1.msra.mxu0 0.0
    %3228 = vmatprep.subr.mxu0 0.0
    %3229 = vmatpush1.msra.mxu0 0.0
    %3230 = vmatprep.subr.mxu0 0.0
    %3231 = vmatpush1.msra.mxu0 0.0
    %3232 = vmatprep.subr.mxu0 0.0
    %3233 = vmatpush1.msra.mxu0 0.0
    %3234 = vmatprep.subr.mxu0 0.0
    %3235 = vmatpush1.msra.mxu0 0.0
    %3236 = vmatprep.subr.mxu0 0.0
    %3237 = vmatpush1.msra.mxu0 0.0
    %3238 = vmatprep.subr.mxu0 0.0
    %3239 = vmatpush1.msra.mxu0 0.0
    %3240 = vmatprep.subr.mxu0 0.0
    %3241 = vmatpush1.msra.mxu0 0.0
    %3242 = vmatprep.mubr.f32.mxu0 0.0
    %3243 = vmatmul.mubr.f32.gmra.mrb[0].mxu0 %v3173
    %v3244 = vpop.f32.mrb[0].mxu0
    %v3245 = vadd.f32 0.0, %v3244
    %v3246 = vpop.f32.mrb[0].mxu0
    %3247 = vdwg.mxu0
    %s3248 = scalar_lea.vmem %s0, 280
    %v3249 = vld [vmem:[%s3248] sm:$0xff]
    %s3250 = scalar_lea.vmem [#allocation2], 3640
    %v3251 = vld [vmem:[%s3250] sm:$0xff]
    %v3252 = vld [vmem:[%s3250 + $0x8] sm:$0xff]
    %v3253 = vld [vmem:[%s3250 + $0x10] sm:$0xff]
    %v3254 = vld [vmem:[%s3250 + $0x18] sm:$0xff]
    %v3255 = vld [vmem:[%s3250 + $0x20] sm:$0xff]
    %v3256 = vld [vmem:[%s3250 + $0x28] sm:$0xff]
    %v3257 = vld [vmem:[%s3250 + $0x30] sm:$0xff]
    %v3258 = vld [vmem:[%s3250 + $0x38] sm:$0xff]
    %v3259 = vld [vmem:[%s3250 + $0x40] sm:$0xff]
    %v3260 = vld [vmem:[%s3250 + $0x48] sm:$0xff]
    %v3261 = vld [vmem:[%s3250 + $0x50] sm:$0xff]
    %v3262 = vld [vmem:[%s3250 + $0x58] sm:$0xff]
    %v3263 = vld [vmem:[%s3250 + $0x60] sm:$0xf]
    %v3265 = vsel %vm42, %v3249, 0
    %v3268 = vsel %vm46, %v3263, 0
    %3270 = vmatprep.subr.mxu0 0.0
    %3271 = vmatpush1.msra.mxu0 %v3251
    %3272 = vmatprep.subr.mxu0 0.0
    %3273 = vmatpush1.msra.mxu0 %v3252
    %3274 = vmatprep.subr.mxu0 0.0
    %3275 = vmatpush1.msra.mxu0 %v3253
    %3276 = vmatprep.subr.mxu0 0.0
    %3277 = vmatpush1.msra.mxu0 %v3254
    %3278 = vmatprep.subr.mxu0 0.0
    %3279 = vmatpush1.msra.mxu0 %v3255
    %3280 = vmatprep.subr.mxu0 0.0
    %3281 = vmatpush1.msra.mxu0 %v3256
    %3282 = vmatprep.subr.mxu0 0.0
    %3283 = vmatpush1.msra.mxu0 %v3257
    %3284 = vmatprep.subr.mxu0 0.0
    %3285 = vmatpush1.msra.mxu0 %v3258
    %3286 = vmatprep.subr.mxu0 0.0
    %3287 = vmatpush1.msra.mxu0 %v3259
    %3288 = vmatprep.subr.mxu0 0.0
    %3289 = vmatpush1.msra.mxu0 %v3260
    %3290 = vmatprep.subr.mxu0 0.0
    %3291 = vmatpush1.msra.mxu0 %v3261
    %3292 = vmatprep.subr.mxu0 0.0
    %3293 = vmatpush1.msra.mxu0 %v3262
    %3294 = vmatprep.subr.mxu0 0.0
    %3295 = vmatpush1.msra.mxu0 %v3268
    %3296 = vmatprep.subr.mxu0 0.0
    %3297 = vmatpush1.msra.mxu0 0.0
    %3298 = vmatprep.subr.mxu0 0.0
    %3299 = vmatpush1.msra.mxu0 0.0
    %3300 = vmatprep.subr.mxu0 0.0
    %3301 = vmatpush1.msra.mxu0 0.0
    %3302 = vmatprep.subr.mxu0 0.0
    %3303 = vmatpush1.msra.mxu0 0.0
    %3304 = vmatprep.subr.mxu0 0.0
    %3305 = vmatpush1.msra.mxu0 0.0
    %3306 = vmatprep.subr.mxu0 0.0
    %3307 = vmatpush1.msra.mxu0 0.0
    %3308 = vmatprep.subr.mxu0 0.0
    %3309 = vmatpush1.msra.mxu0 0.0
    %3310 = vmatprep.subr.mxu0 0.0
    %3311 = vmatpush1.msra.mxu0 0.0
    %3312 = vmatprep.subr.mxu0 0.0
    %3313 = vmatpush1.msra.mxu0 0.0
    %3314 = vmatprep.subr.mxu0 0.0
    %3315 = vmatpush1.msra.mxu0 0.0
    %3316 = vmatprep.subr.mxu0 0.0
    %3317 = vmatpush1.msra.mxu0 0.0
    %3318 = vmatprep.subr.mxu0 0.0
    %3319 = vmatpush1.msra.mxu0 0.0
    %3320 = vmatprep.subr.mxu0 0.0
    %3321 = vmatpush1.msra.mxu0 0.0
    %3322 = vmatprep.subr.mxu0 0.0
    %3323 = vmatpush1.msra.mxu0 0.0
    %3324 = vmatprep.subr.mxu0 0.0
    %3325 = vmatpush1.msra.mxu0 0.0
    %3326 = vmatprep.subr.mxu0 0.0
    %3327 = vmatpush1.msra.mxu0 0.0
    %3328 = vmatprep.subr.mxu0 0.0
    %3329 = vmatpush1.msra.mxu0 0.0
    %3330 = vmatprep.subr.mxu0 0.0
    %3331 = vmatpush1.msra.mxu0 0.0
    %3332 = vmatprep.subr.mxu0 0.0
    %3333 = vmatpush1.msra.mxu0 0.0
    %3334 = vmatprep.mubr.f32.mxu0 0.0
    %3335 = vmatmul.mubr.f32.gmra.mrb[0].mxu0 %v3265
    %v3336 = vpop.f32.mrb[0].mxu0
    %v3337 = vadd.f32 0.0, %v3336
    %v3338 = vpop.f32.mrb[0].mxu0
    %3339 = vdwg.mxu0
    %s3340 = scalar_lea.vmem %s0, 288
    %v3341 = vld [vmem:[%s3340] sm:$0xff]
    %s3342 = scalar_lea.vmem [#allocation2], 3744
    %v3343 = vld [vmem:[%s3342] sm:$0xff]
    %v3344 = vld [vmem:[%s3342 + $0x8] sm:$0xff]
    %v3345 = vld [vmem:[%s3342 + $0x10] sm:$0xff]
    %v3346 = vld [vmem:[%s3342 + $0x18] sm:$0xff]
    %v3347 = vld [vmem:[%s3342 + $0x20] sm:$0xff]
    %v3348 = vld [vmem:[%s3342 + $0x28] sm:$0xff]
    %v3349 = vld [vmem:[%s3342 + $0x30] sm:$0xff]
    %v3350 = vld [vmem:[%s3342 + $0x38] sm:$0xff]
    %v3351 = vld [vmem:[%s3342 + $0x40] sm:$0xff]
    %v3352 = vld [vmem:[%s3342 + $0x48] sm:$0xff]
    %v3353 = vld [vmem:[%s3342 + $0x50] sm:$0xff]
    %v3354 = vld [vmem:[%s3342 + $0x58] sm:$0xff]
    %v3355 = vld [vmem:[%s3342 + $0x60] sm:$0xf]
    %v3357 = vsel %vm42, %v3341, 0
    %v3360 = vsel %vm46, %v3355, 0
    %3362 = vmatprep.subr.mxu0 0.0
    %3363 = vmatpush1.msra.mxu0 %v3343
    %3364 = vmatprep.subr.mxu0 0.0
    %3365 = vmatpush1.msra.mxu0 %v3344
    %3366 = vmatprep.subr.mxu0 0.0
    %3367 = vmatpush1.msra.mxu0 %v3345
    %3368 = vmatprep.subr.mxu0 0.0
    %3369 = vmatpush1.msra.mxu0 %v3346
    %3370 = vmatprep.subr.mxu0 0.0
    %3371 = vmatpush1.msra.mxu0 %v3347
    %3372 = vmatprep.subr.mxu0 0.0
    %3373 = vmatpush1.msra.mxu0 %v3348
    %3374 = vmatprep.subr.mxu0 0.0
    %3375 = vmatpush1.msra.mxu0 %v3349
    %3376 = vmatprep.subr.mxu0 0.0
    %3377 = vmatpush1.msra.mxu0 %v3350
    %3378 = vmatprep.subr.mxu0 0.0
    %3379 = vmatpush1.msra.mxu0 %v3351
    %3380 = vmatprep.subr.mxu0 0.0
    %3381 = vmatpush1.msra.mxu0 %v3352
    %3382 = vmatprep.subr.mxu0 0.0
    %3383 = vmatpush1.msra.mxu0 %v3353
    %3384 = vmatprep.subr.mxu0 0.0
    %3385 = vmatpush1.msra.mxu0 %v3354
    %3386 = vmatprep.subr.mxu0 0.0
    %3387 = vmatpush1.msra.mxu0 %v3360
    %3388 = vmatprep.subr.mxu0 0.0
    %3389 = vmatpush1.msra.mxu0 0.0
    %3390 = vmatprep.subr.mxu0 0.0
    %3391 = vmatpush1.msra.mxu0 0.0
    %3392 = vmatprep.subr.mxu0 0.0
    %3393 = vmatpush1.msra.mxu0 0.0
    %3394 = vmatprep.subr.mxu0 0.0
    %3395 = vmatpush1.msra.mxu0 0.0
    %3396 = vmatprep.subr.mxu0 0.0
    %3397 = vmatpush1.msra.mxu0 0.0
    %3398 = vmatprep.subr.mxu0 0.0
    %3399 = vmatpush1.msra.mxu0 0.0
    %3400 = vmatprep.subr.mxu0 0.0
    %3401 = vmatpush1.msra.mxu0 0.0
    %3402 = vmatprep.subr.mxu0 0.0
    %3403 = vmatpush1.msra.mxu0 0.0
    %3404 = vmatprep.subr.mxu0 0.0
    %3405 = vmatpush1.msra.mxu0 0.0
    %3406 = vmatprep.subr.mxu0 0.0
    %3407 = vmatpush1.msra.mxu0 0.0
    %3408 = vmatprep.subr.mxu0 0.0
    %3409 = vmatpush1.msra.mxu0 0.0
    %3410 = vmatprep.subr.mxu0 0.0
    %3411 = vmatpush1.msra.mxu0 0.0
    %3412 = vmatprep.subr.mxu0 0.0
    %3413 = vmatpush1.msra.mxu0 0.0
    %3414 = vmatprep.subr.mxu0 0.0
    %3415 = vmatpush1.msra.mxu0 0.0
    %3416 = vmatprep.subr.mxu0 0.0
    %3417 = vmatpush1.msra.mxu0 0.0
    %3418 = vmatprep.subr.mxu0 0.0
    %3419 = vmatpush1.msra.mxu0 0.0
    %3420 = vmatprep.subr.mxu0 0.0
    %3421 = vmatpush1.msra.mxu0 0.0
    %3422 = vmatprep.subr.mxu0 0.0
    %3423 = vmatpush1.msra.mxu0 0.0
    %3424 = vmatprep.subr.mxu0 0.0
    %3425 = vmatpush1.msra.mxu0 0.0
    %3426 = vmatprep.mubr.f32.mxu0 0.0
    %3427 = vmatmul.mubr.f32.gmra.mrb[0].mxu0 %v3357
    %v3428 = vpop.f32.mrb[0].mxu0
    %v3429 = vadd.f32 0.0, %v3428
    %v3430 = vpop.f32.mrb[0].mxu0
    %3431 = vdwg.mxu0
    %s3432 = scalar_lea.vmem %s0, 296
    %v3433 = vld [vmem:[%s3432] sm:$0xff]
    %s3434 = scalar_lea.vmem [#allocation2], 3848
    %v3435 = vld [vmem:[%s3434] sm:$0xff]
    %v3436 = vld [vmem:[%s3434 + $0x8] sm:$0xff]
    %v3437 = vld [vmem:[%s3434 + $0x10] sm:$0xff]
    %v3438 = vld [vmem:[%s3434 + $0x18] sm:$0xff]
    %v3439 = vld [vmem:[%s3434 + $0x20] sm:$0xff]
    %v3440 = vld [vmem:[%s3434 + $0x28] sm:$0xff]
    %v3441 = vld [vmem:[%s3434 + $0x30] sm:$0xff]
    %v3442 = vld [vmem:[%s3434 + $0x38] sm:$0xff]
    %v3443 = vld [vmem:[%s3434 + $0x40] sm:$0xff]
    %v3444 = vld [vmem:[%s3434 + $0x48] sm:$0xff]
    %v3445 = vld [vmem:[%s3434 + $0x50] sm:$0xff]
    %v3446 = vld [vmem:[%s3434 + $0x58] sm:$0xff]
    %v3447 = vld [vmem:[%s3434 + $0x60] sm:$0xf]
    %v3449 = vsel %vm42, %v3433, 0
    %v3452 = vsel %vm46, %v3447, 0
    %3454 = vmatprep.subr.mxu0 0.0
    %3455 = vmatpush1.msra.mxu0 %v3435
    %3456 = vmatprep.subr.mxu0 0.0
    %3457 = vmatpush1.msra.mxu0 %v3436
    %3458 = vmatprep.subr.mxu0 0.0
    %3459 = vmatpush1.msra.mxu0 %v3437
    %3460 = vmatprep.subr.mxu0 0.0
    %3461 = vmatpush1.msra.mxu0 %v3438
    %3462 = vmatprep.subr.mxu0 0.0
    %3463 = vmatpush1.msra.mxu0 %v3439
    %3464 = vmatprep.subr.mxu0 0.0
    %3465 = vmatpush1.msra.mxu0 %v3440
    %3466 = vmatprep.subr.mxu0 0.0
    %3467 = vmatpush1.msra.mxu0 %v3441
    %3468 = vmatprep.subr.mxu0 0.0
    %3469 = vmatpush1.msra.mxu0 %v3442
    %3470 = vmatprep.subr.mxu0 0.0
    %3471 = vmatpush1.msra.mxu0 %v3443
    %3472 = vmatprep.subr.mxu0 0.0
    %3473 = vmatpush1.msra.mxu0 %v3444
    %3474 = vmatprep.subr.mxu0 0.0
    %3475 = vmatpush1.msra.mxu0 %v3445
    %3476 = vmatprep.subr.mxu0 0.0
    %3477 = vmatpush1.msra.mxu0 %v3446
    %3478 = vmatprep.subr.mxu0 0.0
    %3479 = vmatpush1.msra.mxu0 %v3452
    %3480 = vmatprep.subr.mxu0 0.0
    %3481 = vmatpush1.msra.mxu0 0.0
    %3482 = vmatprep.subr.mxu0 0.0
    %3483 = vmatpush1.msra.mxu0 0.0
    %3484 = vmatprep.subr.mxu0 0.0
    %3485 = vmatpush1.msra.mxu0 0.0
    %3486 = vmatprep.subr.mxu0 0.0
    %3487 = vmatpush1.msra.mxu0 0.0
    %3488 = vmatprep.subr.mxu0 0.0
    %3489 = vmatpush1.msra.mxu0 0.0
    %3490 = vmatprep.subr.mxu0 0.0
    %3491 = vmatpush1.msra.mxu0 0.0
    %3492 = vmatprep.subr.mxu0 0.0
    %3493 = vmatpush1.msra.mxu0 0.0
    %3494 = vmatprep.subr.mxu0 0.0
    %3495 = vmatpush1.msra.mxu0 0.0
    %3496 = vmatprep.subr.mxu0 0.0
    %3497 = vmatpush1.msra.mxu0 0.0
    %3498 = vmatprep.subr.mxu0 0.0
    %3499 = vmatpush1.msra.mxu0 0.0
    %3500 = vmatprep.subr.mxu0 0.0
    %3501 = vmatpush1.msra.mxu0 0.0
    %3502 = vmatprep.subr.mxu0 0.0
    %3503 = vmatpush1.msra.mxu0 0.0
    %3504 = vmatprep.subr.mxu0 0.0
    %3505 = vmatpush1.msra.mxu0 0.0
    %3506 = vmatprep.subr.mxu0 0.0
    %3507 = vmatpush1.msra.mxu0 0.0
    %3508 = vmatprep.subr.mxu0 0.0
    %3509 = vmatpush1.msra.mxu0 0.0
    %3510 = vmatprep.subr.mxu0 0.0
    %3511 = vmatpush1.msra.mxu0 0.0
    %3512 = vmatprep.subr.mxu0 0.0
    %3513 = vmatpush1.msra.mxu0 0.0
    %3514 = vmatprep.subr.mxu0 0.0
    %3515 = vmatpush1.msra.mxu0 0.0
    %3516 = vmatprep.subr.mxu0 0.0
    %3517 = vmatpush1.msra.mxu0 0.0
    %3518 = vmatprep.mubr.f32.mxu0 0.0
    %3519 = vmatmul.mubr.f32.gmra.mrb[0].mxu0 %v3449
    %v3520 = vpop.f32.mrb[0].mxu0
    %v3521 = vadd.f32 0.0, %v3520
    %v3522 = vpop.f32.mrb[0].mxu0
    %3523 = vdwg.mxu0
    %s3524 = scalar_lea.vmem %s0, 304
    %v3525 = vld [vmem:[%s3524] sm:$0xff]
    %s3526 = scalar_lea.vmem [#allocation2], 3952
    %v3527 = vld [vmem:[%s3526] sm:$0xff]
    %v3528 = vld [vmem:[%s3526 + $0x8] sm:$0xff]
    %v3529 = vld [vmem:[%s3526 + $0x10] sm:$0xff]
    %v3530 = vld [vmem:[%s3526 + $0x18] sm:$0xff]
    %v3531 = vld [vmem:[%s3526 + $0x20] sm:$0xff]
    %v3532 = vld [vmem:[%s3526 + $0x28] sm:$0xff]
    %v3533 = vld [vmem:[%s3526 + $0x30] sm:$0xff]
    %v3534 = vld [vmem:[%s3526 + $0x38] sm:$0xff]
    %v3535 = vld [vmem:[%s3526 + $0x40] sm:$0xff]
    %v3536 = vld [vmem:[%s3526 + $0x48] sm:$0xff]
    %v3537 = vld [vmem:[%s3526 + $0x50] sm:$0xff]
    %v3538 = vld [vmem:[%s3526 + $0x58] sm:$0xff]
    %v3539 = vld [vmem:[%s3526 + $0x60] sm:$0xf]
    %v3541 = vsel %vm42, %v3525, 0
    %v3544 = vsel %vm46, %v3539, 0
    %3546 = vmatprep.subr.mxu0 0.0
    %3547 = vmatpush1.msra.mxu0 %v3527
    %3548 = vmatprep.subr.mxu0 0.0
    %3549 = vmatpush1.msra.mxu0 %v3528
    %3550 = vmatprep.subr.mxu0 0.0
    %3551 = vmatpush1.msra.mxu0 %v3529
    %3552 = vmatprep.subr.mxu0 0.0
    %3553 = vmatpush1.msra.mxu0 %v3530
    %3554 = vmatprep.subr.mxu0 0.0
    %3555 = vmatpush1.msra.mxu0 %v3531
    %3556 = vmatprep.subr.mxu0 0.0
    %3557 = vmatpush1.msra.mxu0 %v3532
    %3558 = vmatprep.subr.mxu0 0.0
    %3559 = vmatpush1.msra.mxu0 %v3533
    %3560 = vmatprep.subr.mxu0 0.0
    %3561 = vmatpush1.msra.mxu0 %v3534
    %3562 = vmatprep.subr.mxu0 0.0
    %3563 = vmatpush1.msra.mxu0 %v3535
    %3564 = vmatprep.subr.mxu0 0.0
    %3565 = vmatpush1.msra.mxu0 %v3536
    %3566 = vmatprep.subr.mxu0 0.0
    %3567 = vmatpush1.msra.mxu0 %v3537
    %3568 = vmatprep.subr.mxu0 0.0
    %3569 = vmatpush1.msra.mxu0 %v3538
    %3570 = vmatprep.subr.mxu0 0.0
    %3571 = vmatpush1.msra.mxu0 %v3544
    %3572 = vmatprep.subr.mxu0 0.0
    %3573 = vmatpush1.msra.mxu0 0.0
    %3574 = vmatprep.subr.mxu0 0.0
    %3575 = vmatpush1.msra.mxu0 0.0
    %3576 = vmatprep.subr.mxu0 0.0
    %3577 = vmatpush1.msra.mxu0 0.0
    %3578 = vmatprep.subr.mxu0 0.0
    %3579 = vmatpush1.msra.mxu0 0.0
    %3580 = vmatprep.subr.mxu0 0.0
    %3581 = vmatpush1.msra.mxu0 0.0
    %3582 = vmatprep.subr.mxu0 0.0
    %3583 = vmatpush1.msra.mxu0 0.0
    %3584 = vmatprep.subr.mxu0 0.0
    %3585 = vmatpush1.msra.mxu0 0.0
    %3586 = vmatprep.subr.mxu0 0.0
    %3587 = vmatpush1.msra.mxu0 0.0
    %3588 = vmatprep.subr.mxu0 0.0
    %3589 = vmatpush1.msra.mxu0 0.0
    %3590 = vmatprep.subr.mxu0 0.0
    %3591 = vmatpush1.msra.mxu0 0.0
    %3592 = vmatprep.subr.mxu0 0.0
    %3593 = vmatpush1.msra.mxu0 0.0
    %3594 = vmatprep.subr.mxu0 0.0
    %3595 = vmatpush1.msra.mxu0 0.0
    %3596 = vmatprep.subr.mxu0 0.0
    %3597 = vmatpush1.msra.mxu0 0.0
    %3598 = vmatprep.subr.mxu0 0.0
    %3599 = vmatpush1.msra.mxu0 0.0
    %3600 = vmatprep.subr.mxu0 0.0
    %3601 = vmatpush1.msra.mxu0 0.0
    %3602 = vmatprep.subr.mxu0 0.0
    %3603 = vmatpush1.msra.mxu0 0.0
    %3604 = vmatprep.subr.mxu0 0.0
    %3605 = vmatpush1.msra.mxu0 0.0
    %3606 = vmatprep.subr.mxu0 0.0
    %3607 = vmatpush1.msra.mxu0 0.0
    %3608 = vmatprep.subr.mxu0 0.0
    %3609 = vmatpush1.msra.mxu0 0.0
    %3610 = vmatprep.mubr.f32.mxu0 0.0
    %3611 = vmatmul.mubr.f32.gmra.mrb[0].mxu0 %v3541
    %v3612 = vpop.f32.mrb[0].mxu0
    %v3613 = vadd.f32 0.0, %v3612
    %v3614 = vpop.f32.mrb[0].mxu0
    %3615 = vdwg.mxu0
    %s3616 = scalar_lea.vmem %s0, 312
    %v3617 = vld [vmem:[%s3616] sm:$0xff]
    %s3618 = scalar_lea.vmem [#allocation2], 4056
    %v3619 = vld [vmem:[%s3618] sm:$0xff]
    %v3620 = vld [vmem:[%s3618 + $0x8] sm:$0xff]
    %v3621 = vld [vmem:[%s3618 + $0x10] sm:$0xff]
    %v3622 = vld [vmem:[%s3618 + $0x18] sm:$0xff]
    %v3623 = vld [vmem:[%s3618 + $0x20] sm:$0xff]
    %v3624 = vld [vmem:[%s3618 + $0x28] sm:$0xff]
    %v3625 = vld [vmem:[%s3618 + $0x30] sm:$0xff]
    %v3626 = vld [vmem:[%s3618 + $0x38] sm:$0xff]
    %v3627 = vld [vmem:[%s3618 + $0x40] sm:$0xff]
    %v3628 = vld [vmem:[%s3618 + $0x48] sm:$0xff]
    %v3629 = vld [vmem:[%s3618 + $0x50] sm:$0xff]
    %v3630 = vld [vmem:[%s3618 + $0x58] sm:$0xff]
    %v3631 = vld [vmem:[%s3618 + $0x60] sm:$0xf]
    %v3633 = vsel %vm42, %v3617, 0
    %v3636 = vsel %vm46, %v3631, 0
    %3638 = vmatprep.subr.mxu0 0.0
    %3639 = vmatpush1.msra.mxu0 %v3619
    %3640 = vmatprep.subr.mxu0 0.0
    %3641 = vmatpush1.msra.mxu0 %v3620
    %3642 = vmatprep.subr.mxu0 0.0
    %3643 = vmatpush1.msra.mxu0 %v3621
    %3644 = vmatprep.subr.mxu0 0.0
    %3645 = vmatpush1.msra.mxu0 %v3622
    %3646 = vmatprep.subr.mxu0 0.0
    %3647 = vmatpush1.msra.mxu0 %v3623
    %3648 = vmatprep.subr.mxu0 0.0
    %3649 = vmatpush1.msra.mxu0 %v3624
    %3650 = vmatprep.subr.mxu0 0.0
    %3651 = vmatpush1.msra.mxu0 %v3625
    %3652 = vmatprep.subr.mxu0 0.0
    %3653 = vmatpush1.msra.mxu0 %v3626
    %3654 = vmatprep.subr.mxu0 0.0
    %3655 = vmatpush1.msra.mxu0 %v3627
    %3656 = vmatprep.subr.mxu0 0.0
    %3657 = vmatpush1.msra.mxu0 %v3628
    %3658 = vmatprep.subr.mxu0 0.0
    %3659 = vmatpush1.msra.mxu0 %v3629
    %3660 = vmatprep.subr.mxu0 0.0
    %3661 = vmatpush1.msra.mxu0 %v3630
    %3662 = vmatprep.subr.mxu0 0.0
    %3663 = vmatpush1.msra.mxu0 %v3636
    %3664 = vmatprep.subr.mxu0 0.0
    %3665 = vmatpush1.msra.mxu0 0.0
    %3666 = vmatprep.subr.mxu0 0.0
    %3667 = vmatpush1.msra.mxu0 0.0
    %3668 = vmatprep.subr.mxu0 0.0
    %3669 = vmatpush1.msra.mxu0 0.0
    %3670 = vmatprep.subr.mxu0 0.0
    %3671 = vmatpush1.msra.mxu0 0.0
    %3672 = vmatprep.subr.mxu0 0.0
    %3673 = vmatpush1.msra.mxu0 0.0
    %3674 = vmatprep.subr.mxu0 0.0
    %3675 = vmatpush1.msra.mxu0 0.0
    %3676 = vmatprep.subr.mxu0 0.0
    %3677 = vmatpush1.msra.mxu0 0.0
    %3678 = vmatprep.subr.mxu0 0.0
    %3679 = vmatpush1.msra.mxu0 0.0
    %3680 = vmatprep.subr.mxu0 0.0
    %3681 = vmatpush1.msra.mxu0 0.0
    %3682 = vmatprep.subr.mxu0 0.0
    %3683 = vmatpush1.msra.mxu0 0.0
    %3684 = vmatprep.subr.mxu0 0.0
    %3685 = vmatpush1.msra.mxu0 0.0
    %3686 = vmatprep.subr.mxu0 0.0
    %3687 = vmatpush1.msra.mxu0 0.0
    %3688 = vmatprep.subr.mxu0 0.0
    %3689 = vmatpush1.msra.mxu0 0.0
    %3690 = vmatprep.subr.mxu0 0.0
    %3691 = vmatpush1.msra.mxu0 0.0
    %3692 = vmatprep.subr.mxu0 0.0
    %3693 = vmatpush1.msra.mxu0 0.0
    %3694 = vmatprep.subr.mxu0 0.0
    %3695 = vmatpush1.msra.mxu0 0.0
    %3696 = vmatprep.subr.mxu0 0.0
    %3697 = vmatpush1.msra.mxu0 0.0
    %3698 = vmatprep.subr.mxu0 0.0
    %3699 = vmatpush1.msra.mxu0 0.0
    %3700 = vmatprep.subr.mxu0 0.0
    %3701 = vmatpush1.msra.mxu0 0.0
    %3702 = vmatprep.mubr.f32.mxu0 0.0
    %3703 = vmatmul.mubr.f32.gmra.mrb[0].mxu0 %v3633
    %v3704 = vpop.f32.mrb[0].mxu0
    %v3705 = vadd.f32 0.0, %v3704
    %v3706 = vpop.f32.mrb[0].mxu0
    %3707 = vdwg.mxu0
    %3709 = vrot.lane.b32.xlu0 %v209, 16
    %v3710 = vpop.permute.xlu0 %3709
    %3713 = vrot.lane.b32.xlu0 %v301, 32
    %v3714 = vpop.permute.xlu0 %3713
    %3717 = vrot.lane.b32.xlu0 %v393, 48
    %v3718 = vpop.permute.xlu0 %3717
    %3721 = vrot.lane.b32.xlu0 %v485, 64
    %v3722 = vpop.permute.xlu0 %3721
    %3725 = vrot.lane.b32.xlu0 %v577, 80
    %v3726 = vpop.permute.xlu0 %3725
    %3729 = vrot.lane.b32.xlu0 %v669, 96
    %v3730 = vpop.permute.xlu0 %3729
    %3733 = vrot.lane.b32.xlu0 %v761, 112
    %v3734 = vpop.permute.xlu0 %3733
    %3737 = vrot.lane.b32.xlu0 %v945, 16
    %v3738 = vpop.permute.xlu0 %3737
    %3741 = vrot.lane.b32.xlu0 %v1037, 32
    %v3742 = vpop.permute.xlu0 %3741
    %3745 = vrot.lane.b32.xlu0 %v1129, 48
    %v3746 = vpop.permute.xlu0 %3745
    %3749 = vrot.lane.b32.xlu0 %v1221, 64
    %v3750 = vpop.permute.xlu0 %3749
    %3753 = vrot.lane.b32.xlu0 %v1313, 80
    %v3754 = vpop.permute.xlu0 %3753
    %3757 = vrot.lane.b32.xlu0 %v1405, 96
    %v3758 = vpop.permute.xlu0 %3757
    %3761 = vrot.lane.b32.xlu0 %v1497, 112
    %v3762 = vpop.permute.xlu0 %3761
    %vm3764 = vcmask 130048
    %v3765 = vsel %vm3764, %v117, %v3710
    %vm3766 = vcmask 261120
    %v3767 = vsel %vm3766, %v3765, %v3714
    %vm3768 = vcmask 392192
    %v3769 = vsel %vm3768, %v3767, %v3718
    %vm3770 = vcmask 523264
    %v3771 = vsel %vm3770, %v3769, %v3722
    %vm3772 = vcmask 654336
    %v3773 = vsel %vm3772, %v3771, %v3726
    %vm3774 = vcmask 785408
    %v3775 = vsel %vm3774, %v3773, %v3730
    %vm3776 = vcmask 916480
    %v3777 = vsel %vm3776, %v3775, %v3734
    %v3778 = vsel %vm3764, %v853, %v3738
    %v3779 = vsel %vm3766, %v3778, %v3742
    %v3780 = vsel %vm3768, %v3779, %v3746
    %v3781 = vsel %vm3770, %v3780, %v3750
    %v3782 = vsel %vm3772, %v3781, %v3754
    %v3783 = vsel %vm3774, %v3782, %v3758
    %v3784 = vsel %vm3776, %v3783, %v3762
    %3786 = vrot.lane.b32.xlu0 %v1681, 16
    %v3787 = vpop.permute.xlu0 %3786
    %3790 = vrot.lane.b32.xlu0 %v1773, 32
    %v3791 = vpop.permute.xlu0 %3790
    %3794 = vrot.lane.b32.xlu0 %v1865, 48
    %v3795 = vpop.permute.xlu0 %3794
    %3798 = vrot.lane.b32.xlu0 %v1957, 64
    %v3799 = vpop.permute.xlu0 %3798
    %3802 = vrot.lane.b32.xlu0 %v2049, 80
    %v3803 = vpop.permute.xlu0 %3802
    %3806 = vrot.lane.b32.xlu0 %v2141, 96
    %v3807 = vpop.permute.xlu0 %3806
    %3810 = vrot.lane.b32.xlu0 %v2233, 112
    %v3811 = vpop.permute.xlu0 %3810
    %3814 = vrot.lane.b32.xlu0 %v2417, 16
    %v3815 = vpop.permute.xlu0 %3814
    %3818 = vrot.lane.b32.xlu0 %v2509, 32
    %v3819 = vpop.permute.xlu0 %3818
    %3822 = vrot.lane.b32.xlu0 %v2601, 48
    %v3823 = vpop.permute.xlu0 %3822
    %3826 = vrot.lane.b32.xlu0 %v2693, 64
    %v3827 = vpop.permute.xlu0 %3826
    %3830 = vrot.lane.b32.xlu0 %v2785, 80
    %v3831 = vpop.permute.xlu0 %3830
    %3834 = vrot.lane.b32.xlu0 %v2877, 96
    %v3835 = vpop.permute.xlu0 %3834
    %3838 = vrot.lane.b32.xlu0 %v2969, 112
    %v3839 = vpop.permute.xlu0 %3838
    %v3841 = vsel %vm3764, %v1589, %v3787
    %v3842 = vsel %vm3766, %v3841, %v3791
    %v3843 = vsel %vm3768, %v3842, %v3795
    %v3844 = vsel %vm3770, %v3843, %v3799
    %v3845 = vsel %vm3772, %v3844, %v3803
    %v3846 = vsel %vm3774, %v3845, %v3807
    %v3847 = vsel %vm3776, %v3846, %v3811
    %v3848 = vsel %vm3764, %v2325, %v3815
    %v3849 = vsel %vm3766, %v3848, %v3819
    %v3850 = vsel %vm3768, %v3849, %v3823
    %v3851 = vsel %vm3770, %v3850, %v3827
    %v3852 = vsel %vm3772, %v3851, %v3831
    %v3853 = vsel %vm3774, %v3852, %v3835
    %v3854 = vsel %vm3776, %v3853, %v3839
    %3856 = vrot.lane.b32.xlu0 %v3153, 16
    %v3857 = vpop.permute.xlu0 %3856
    %3860 = vrot.lane.b32.xlu0 %v3245, 32
    %v3861 = vpop.permute.xlu0 %3860
    %3864 = vrot.lane.b32.xlu0 %v3337, 48
    %v3865 = vpop.permute.xlu0 %3864
    %3868 = vrot.lane.b32.xlu0 %v3429, 64
    %v3869 = vpop.permute.xlu0 %3868
    %3872 = vrot.lane.b32.xlu0 %v3521, 80
    %v3873 = vpop.permute.xlu0 %3872
    %3876 = vrot.lane.b32.xlu0 %v3613, 96
    %v3877 = vpop.permute.xlu0 %3876
    %3880 = vrot.lane.b32.xlu0 %v3705, 112
    %v3881 = vpop.permute.xlu0 %3880
    %v3883 = vsel %vm3764, %v3061, %v3857
    %v3884 = vsel %vm3766, %v3883, %v3861
    %v3885 = vsel %vm3768, %v3884, %v3865
    %v3886 = vsel %vm3770, %v3885, %v3869
    %v3887 = vsel %vm3772, %v3886, %v3873
    %v3888 = vsel %vm3774, %v3887, %v3877
    %v3889 = vsel %vm3776, %v3888, %v3881
    %v3890 = vld [vmem:[%s2] sm:$0x1f]
    %v3892 = vlaneseq
    %v3893 = vshrl.u32 %v3892, 7
    %v3894 = vsub.s32 0, %v3893
    %v3895 = vrot.slane %v3890, %v3894
    %v3896 = vlaneseq
    %v3897 = vshrl.u32 %v3896, 7
    %v3898 = vsub.s32 1, %v3897
    %v3899 = vrot.slane %v3890, %v3898
    %v3900 = vlaneseq
    %v3901 = vshrl.u32 %v3900, 7
    %v3902 = vsub.s32 2, %v3901
    %v3903 = vrot.slane %v3890, %v3902
    %v3904 = vlaneseq
    %v3905 = vshrl.u32 %v3904, 7
    %v3906 = vsub.s32 3, %v3905
    %v3907 = vrot.slane %v3890, %v3906
    %v3908 = vlaneseq
    %v3909 = vshrl.u32 %v3908, 7
    %v3910 = vsub.s32 4, %v3909
    %v3911 = vrot.slane %v3890, %v3910
    %v3917 = vadd.f32 %v3777, %v3895
    %v3918 = vadd.f32 %v3784, %v3899
    %v3919 = vadd.f32 %v3847, %v3903
    %v3920 = vadd.f32 %v3854, %v3907
    %v3921 = vadd.f32 %v3889, %v3911
    %3922 = vst [vmem:[%s3] sm:$0xff] %v3917
    %3923 = vst [vmem:[%s3 + $0x8] sm:$0xff] %v3918
    %3924 = vst [vmem:[%s3 + $0x10] sm:$0xff] %v3919
    %3925 = vst [vmem:[%s3 + $0x18] sm:$0xff] %v3920
    %3926 = vst [vmem:[%s3 + $0x20] sm:$0xff] %v3921
    // Predicated region
    $region18: #{_lambda_.1} parent=1 // pred_check
      _
    $region19: #{_lambda_.1} parent=1 // pred_check_branch
      %3928 = sbr.rel (0) target = $region21
    $region20: #{_lambda_.1} parent=1 // pred_region
      _
    $region21: #{_lambda_.1} parent=1 // pred_fallthru
      _
    // Predicated region
    $region22: #{_lambda_.1} parent=1 // pred_check
      _
    $region23: #{_lambda_.1} parent=1 // pred_check_branch
      %3930 = sbr.rel (0) target = $region25
    $region24: #{_lambda_.1} parent=1 // pred_region
      _
    $region25: #{_lambda_.1} parent=1 // pred_fallthru
      _
    %3931 = vsyncpa [#allocation3], 1

</llo_original>
